<compile_context>
chip_gen: v7x
topology: tpu7x:2x2x1
jax: 0.10.0
libtpu: 0.0.40
codegen_flags: <defaults>
</compile_context>

<pallas_src>
import jax
import jax.numpy as jnp
from jax.experimental import pallas as pl
from jax.experimental.pallas import tpu as pltpu

_BN_EPS = 1e-5
_LANES = 128


# ------------------------------ small helpers ------------------------------

def _same_pad(k):
    """Conv2dSamePadding: (k//2 + (k - 2*(k//2)) - 1, k//2) == (left, right)."""
    return (k // 2 + (k % 2) - 1, k // 2)


def _pick_batch_block(batch, bytes_per_sample):
    """Samples per grid step.

    Largest block that (a) divides the batch, (b) leaves >= 2 grid steps so
    both v7x TensorCores get work, and (c) keeps the biggest per-step live
    activation under a small budget.  Falls back to 1 otherwise.
    """
    if batch <= 1:
        return 1
    budget = 2 << 20  # 2 MiB of live f32 activations per step is plenty safe
    for cand in (32, 16, 8, 4, 2):
        if batch % cand == 0 and batch // cand >= 2 and cand * bytes_per_sample <= budget:
            return cand
    return 1


def _bn_scale(num_features, eps=_BN_EPS):
    # Eval-mode BatchNorm2d with fresh parameters / running stats:
    #   gamma=1, beta=0, mean=0, var=1  ->  y = x / sqrt(1 + eps)  (zero shift)
    # The scale is folded into the conv weights; the zero shift is dropped.
    # TODO(synk): plumb trained running stats (adds a per-channel shift before ReLU).
    return jnp.ones((num_features,), jnp.float32) / jnp.sqrt(1.0 + eps)


def _conv1_patches(x, k1, s1, num_electrodes):
    """im2col for conv1 (kernel (k1, E), stride (s1, E), 'same' padding).

    Returns (B, T1, k1*E) patches whose K ordering matches the PyTorch weight
    reshape (dh-major, dw-minor).  The W output dim collapses to 1.
    """
    ph = _same_pad(k1)
    pw = _same_pad(num_electrodes)
    xp = jnp.pad(x[:, 0], ((0, 0), ph, pw))              # (B, Hp, Wp)
    hp_len, wp_len = xp.shape[1], xp.shape[2]
    t1 = (hp_len - k1) // s1 + 1
    wo = (wp_len - num_electrodes) // num_electrodes + 1
    assert wo == 1, f"conv1 W-output must collapse to 1, got {wo}"
    cols = [xp[:, dh:dh + s1 * t1:s1, dw]
            for dh in range(k1) for dw in range(num_electrodes)]
    return jnp.stack(cols, axis=-1), t1                  # (B, T1, k1*E)


# ------------------------- fused forward Pallas call ------------------------

def _fused_forward_call(patches, w1, w2, w3, w4, fcw, fcb, *, batch, pool1,
                        pool2, pad_l):
    """One pallas_call running the whole TinySleepNet forward.

    patches : (B*T1, K1)      conv1 im2col patches (T1 truncated to T2*pool1)
    w1      : (K1, F1)        conv1 weight (BN scale folded)
    w2..w4  : (k3, Ci, F3)    conv2-4 weights, laid out (tap, in, out)
    fcw     : (T3*F3, NP)     classifier weight, rows ordered t3*F3 + c, 128-lane padded
    fcb     : (1, NP)         classifier bias, 128-lane padded
    returns : (B, NP) logits  (caller slices to num_classes)
    """
    BT1, K1 = patches.shape
    T1 = BT1 // batch
    F1 = w1.shape[1]
    k3, _, F3 = w2.shape
    KFC, NP = fcw.shape
    assert T1 % pool1 == 0, "wrapper must truncate T1 to a multiple of pool1"
    T2 = T1 // pool1
    T3 = (T2 - pool2) // pool2 + 1
    assert KFC == T3 * F3
    Cmax = max(F1, F3)
    Hpad = T2 + k3 - 1                      # 'same'-padded conv2-4 input length
    bb = _pick_batch_block(batch, T1 * Cmax * 4)
    grid_n = batch // bb

    def kernel(p_ref, w1_ref, w2_ref, w3_ref, w4_ref, fcw_ref, fcb_ref,
               o_ref, hp_ref):
        # Zero the padded activation scratch once per grid step (the pad rows
        # must be zero for the 'same'-padded conv2-4 taps).
        hp_ref[...] = jnp.zeros_like(hp_ref)

        # --- conv1 (+folded BN) + ReLU: one (bb*T1, K1) @ (K1, F1) MXU dot ---
        h1 = jnp.maximum(
            jnp.dot(p_ref[...], w1_ref[...],
                    preferred_element_type=jnp.float32), 0.0)       # (bb*T1, F1)

        # --- maxpool1 (window pool1, stride pool1), vectorized, one store ---
        pooled1 = jnp.max(h1.reshape(bb * T2, pool1, F1), axis=1)   # (bb*T2, F1)
        hp_ref[:, pl.ds(pad_l, T2), pl.ds(0, F1)] = pooled1.reshape(bb, T2, F1)

        # --- conv2..4 (+folded BN) + ReLU; each tap is one batched MXU dot ---
        ci = F1
        h = None
        for li, w_ref in enumerate((w2_ref, w3_ref, w4_ref)):
            def tap(dh, ci=ci, w_ref=w_ref):
                a = hp_ref[:, pl.ds(dh, T2), pl.ds(0, ci)]          # (bb, T2, ci)
                return jnp.dot(a.reshape(bb * T2, ci), w_ref[dh],
                               preferred_element_type=jnp.float32)
            acc = tap(0)
            for dh in range(1, k3):
                acc = acc + tap(dh)
            h = jnp.maximum(acc, 0.0)                               # (bb*T2, F3)
            if li < 2:                       # conv4 output stays in vregs
                hp_ref[:, pl.ds(pad_l, T2), pl.ds(0, F3)] = h.reshape(bb, T2, F3)
                ci = F3

        # --- maxpool2 + NCHW flatten + classifier: ONE matmul per step ---
        h4 = h.reshape(bb, T2, F3)
        prs = [jnp.max(h4[:, t3 * pool2:(t3 + 1) * pool2, :], axis=1)
               for t3 in range(T3)]                                 # each (bb, F3)
        feat = jnp.concatenate(prs, axis=-1)                        # (bb, T3*F3)
        o_ref[0] = (jnp.dot(feat, fcw_ref[...],
                            preferred_element_type=jnp.float32)
                    + fcb_ref[...])

    out = pl.pallas_call(
        kernel,
        grid=(grid_n,),
        out_shape=jax.ShapeDtypeStruct((grid_n, bb, NP), jnp.float32),
        in_specs=[
            pl.BlockSpec((bb * T1, K1), lambda b: (b, 0)),
            pl.BlockSpec((K1, F1), lambda b: (0, 0)),
            pl.BlockSpec((k3, F1, F3), lambda b: (0, 0, 0)),
            pl.BlockSpec((k3, F3, F3), lambda b: (0, 0, 0)),
            pl.BlockSpec((k3, F3, F3), lambda b: (0, 0, 0)),
            pl.BlockSpec((KFC, NP), lambda b: (0, 0)),
            pl.BlockSpec((1, NP), lambda b: (0, 0)),
        ],
        out_specs=pl.BlockSpec((1, bb, NP), lambda b: (b, 0, 0)),
        scratch_shapes=[pltpu.VMEM((bb, Hpad, Cmax), jnp.float32)],
        compiler_params=pltpu.CompilerParams(
            dimension_semantics=("parallel",)),
    )(patches, w1, w2, w3, w4, fcw, fcb)
    return out.reshape(batch, NP)


# -------------------------------- parameters --------------------------------

def init_params(key, cfg):
    """Same initializers as the PyTorch module (kaiming fan_out / Linear default)."""
    E = cfg["num_electrodes"]
    F1, k1 = cfg["n_filters_1"], cfg["filter_size_1"]
    F3, k3 = cfg["n_filters_1x3"], cfg["filter_size_1x3"]
    N, feat = cfg["num_classes"], cfg["feature_dim"]
    keys = jax.random.split(key, 6)

    def kaiming(k, shape):                    # kaiming_normal_(mode='fan_out')
        fan_out = shape[0] * shape[2] * shape[3]
        return (2.0 / fan_out) ** 0.5 * jax.random.normal(k, shape, jnp.float32)

    bound = 1.0 / (feat ** 0.5)
    return {
        "conv1_w": kaiming(keys[0], (F1, 1, k1, E)),
        "conv2_w": kaiming(keys[1], (F3, F1, k3, 1)),
        "conv3_w": kaiming(keys[2], (F3, F3, k3, 1)),
        "conv4_w": kaiming(keys[3], (F3, F3, k3, 1)),
        "fc_w": jax.random.uniform(keys[4], (N, feat), jnp.float32, -bound, bound),
        "fc_b": jax.random.uniform(keys[5], (N,), jnp.float32, -bound, bound),
    }


def prepare_kernel_params(params, cfg):
    """Fold eval-mode BN into the conv weights, permute/pad for the fused kernel."""
    E = cfg["num_electrodes"]
    k1, F1 = cfg["filter_size_1"], cfg["n_filters_1"]
    F3 = cfg["n_filters_1x3"]
    N = cfg["num_classes"]
    T3 = cfg["feature_dim"] // F3
    NP = ((N + _LANES - 1) // _LANES) * _LANES

    w1 = params["conv1_w"].reshape(F1, k1 * E).T * _bn_scale(F1)[None, :]
    conv_ws = []
    for i in range(3):
        w = params[f"conv{i + 2}_w"][..., 0]                 # (F3, Ci, k3)
        w = jnp.transpose(w, (2, 1, 0)) * _bn_scale(F3)[None, None, :]
        conv_ws.append(w)                                    # (k3, Ci, F3)

    # PyTorch flattens NCHW: feature index = c*T3 + t3.  The kernel builds its
    # feature vector with index t3*F3 + c, so pre-permute fc_w to (t3, c, n),
    # flatten to (T3*F3, N), and pad n to a lane-dense 128 width so the
    # kernel's only HBM store is unmasked.
    fcw = params["fc_w"].reshape(N, F3, T3)
    fcw = jnp.transpose(fcw, (2, 1, 0)).reshape(T3 * F3, N)  # row = t3*F3 + c
    fcw = jnp.zeros((T3 * F3, NP), jnp.float32).at[:, :N].set(fcw)
    fcb = jnp.zeros((1, NP), jnp.float32).at[0, :N].set(params["fc_b"])
    return dict(w1=w1, w2=conv_ws[0], w3=conv_ws[1], w4=conv_ws[2],
                fcw=fcw, fcb=fcb)


# --------------------------------- forward ----------------------------------

def tiny_sleepnet_forward(params, x, cfg):
    """x: (B, 1, chunk_size, num_electrodes) NCHW -> (B, num_classes) logits."""
    k1, s1 = cfg["filter_size_1"], cfg["filter_stride_1"]
    E = cfg["num_electrodes"]
    p1, p2 = cfg["pool_size_1"], cfg["pool_size_2"]
    F3 = cfg["n_filters_1x3"]
    N = cfg["num_classes"]
    B = x.shape[0]

    # conv1 im2col stays in XLA (tiny strided gather on the raw signal); the
    # rest of the network runs inside one fused Pallas kernel.
    patches, T1 = _conv1_patches(x, k1, s1, E)
    T2 = (T1 - p1) // p1 + 1
    T3 = (T2 - p2) // p2 + 1
    assert T3 * F3 == cfg["feature_dim"], "cfg must match PyTorch feature_dim"
    # conv1 rows past T2*p1 are dropped by maxpool1 anyway -> truncate exactly.
    T1u = T2 * p1
    patches = patches[:, :T1u, :].reshape(B * T1u, k1 * E)

    kp = prepare_kernel_params(params, cfg)
    out = _fused_forward_call(
        patches, kp["w1"], kp["w2"], kp["w3"], kp["w4"], kp["fcw"], kp["fcb"],
        batch=B, pool1=p1, pool2=p2,
        pad_l=_same_pad(cfg["filter_size_1x3"])[0])
    return out[:, :N]


# ------------------------- pure-XLA reference check -------------------------

def _reference_forward(params, x, cfg):
    """Independent pure-JAX reference mirroring the PyTorch module (eval mode)."""
    k1, s1 = cfg["filter_size_1"], cfg["filter_stride_1"]
    E = cfg["num_electrodes"]
    k3 = cfg["filter_size_1x3"]
    p1, p2 = cfg["pool_size_1"], cfg["pool_size_2"]

    def conv_bn_relu(h, w, kh, kw, sh, sw):
        y = jax.lax.conv_general_dilated(
            h, w, window_strides=(sh, sw),
            padding=(_same_pad(kh), _same_pad(kw)),
            dimension_numbers=("NCHW", "OIHW", "NCHW"))
        y = y / jnp.sqrt(1.0 + _BN_EPS)          # eval-mode BN (fresh stats)
        return jnp.maximum(y, 0.0)

    def maxpool(h, p):
        init = jnp.array(-jnp.inf, dtype=h.dtype)
        return jax.lax.reduce_window(h, init, jax.lax.max,
                                     (1, 1, p, 1), (1, 1, p, 1), "VALID")

    h = conv_bn_relu(x, params["conv1_w"], k1, E, s1, E)
    h = maxpool(h, p1)
    for i in range(3):
        h = conv_bn_relu(h, params[f"conv{i + 2}_w"], k3, 1, 1, 1)
    h = maxpool(h, p2)
    feat = h.reshape(h.shape[0], -1)             # NCHW flatten
    return feat @ params["fc_w"].T + params["fc_b"][None, :]


# ----------------------------------- main ------------------------------------

if __name__ == "__main__":
    cfg = dict(
        num_classes=5,
        chunk_size=384,        # small; divisible by stride*pool1*pool2 = 6*8*4
        num_electrodes=1,
        n_filters_1=32,
        filter_size_1=10,
        filter_stride_1=6,
        pool_size_1=8,
        n_filters_1x3=32,
        filter_size_1x3=8,
        pool_size_2=4,
    )
    cfg["feature_dim"] = (cfg["chunk_size"] // cfg["filter_stride_1"]
                          // cfg["pool_size_1"] // cfg["pool_size_2"]
                          ) * cfg["n_filters_1x3"]

    key = jax.random.PRNGKey(0)
    k_param, k_x = jax.random.split(key)
    params = init_params(k_param, cfg)

    batch = 4                                  # -> batch block 2, grid (2,)
    x = jax.random.normal(
        k_x, (batch, 1, cfg["chunk_size"], cfg["num_electrodes"]), jnp.float32)

    fwd = jax.jit(lambda p, xx: tiny_sleepnet_forward(p, xx, cfg))
    out = jax.block_until_ready(fwd(params, x))

    assert out.shape == (batch, cfg["num_classes"]), out.shape
    assert bool(jnp.all(jnp.isfinite(out)))

    ref = _reference_forward(params, x, cfg)
    assert bool(jnp.allclose(out, ref, rtol=2e-3, atol=2e-3)), (
        "Pallas output diverges from XLA reference")
    print("KERNEL_OK")
</pallas_src>

<mosaic_0001>
module attributes {stable_mosaic.version = 11 : i64} {
  func.func @kernel(%arg0: i32, %arg1: memref<128x10xf32, #tpu.memory_space<vmem>>, %arg2: memref<10x32xf32, #tpu.memory_space<vmem>>, %arg3: memref<8x32x32xf32, #tpu.memory_space<vmem>>, %arg4: memref<8x32x32xf32, #tpu.memory_space<vmem>>, %arg5: memref<8x32x32xf32, #tpu.memory_space<vmem>>, %arg6: memref<64x128xf32, #tpu.memory_space<vmem>>, %arg7: memref<1x128xf32, #tpu.memory_space<vmem>>, %arg8: memref<1x2x128xf32, #tpu.memory_space<vmem>>, %arg9: memref<2x15x32xf32, #tpu.memory_space<vmem>>) attributes {dimension_semantics = [#tpu.dimension_semantics<parallel>], iteration_bounds = array<i64: 2>, scalar_prefetch = 0 : i64, scratch_operands = 1 : i64, tpu.core_type = #tpu.core_type<tc>, window_params = [{transform_indices = @transform_0, window_bounds = array<i64: 128, 10>}, {pipeline_mode = #tpu.pipeline_mode<synchronous>, transform_indices = @transform_1, window_bounds = array<i64: 10, 32>}, {pipeline_mode = #tpu.pipeline_mode<synchronous>, transform_indices = @transform_2, window_bounds = array<i64: 8, 32, 32>}, {pipeline_mode = #tpu.pipeline_mode<synchronous>, transform_indices = @transform_3, window_bounds = array<i64: 8, 32, 32>}, {pipeline_mode = #tpu.pipeline_mode<synchronous>, transform_indices = @transform_4, window_bounds = array<i64: 8, 32, 32>}, {pipeline_mode = #tpu.pipeline_mode<synchronous>, transform_indices = @transform_5, window_bounds = array<i64: 64, 128>}, {pipeline_mode = #tpu.pipeline_mode<synchronous>, transform_indices = @transform_6, window_bounds = array<i64: 1, 128>}, {transform_indices = @transform_7, window_bounds = array<i64: 1, 2, 128>}]} {
    %cst = arith.constant 0.000000e+00 : f32
    %0 = vector.broadcast %cst : f32 to vector<2x15x32xf32>
    %c0 = arith.constant 0 : index
    %c0_0 = arith.constant 0 : index
    %c0_1 = arith.constant 0 : index
    %1 = vector.load %arg9[%c0, %c0_0, %c0_1] : memref<2x15x32xf32, #tpu.memory_space<vmem>>, vector<2x15x32xf32>
    tpu.vector_store %arg9[%c0, %c0_0, %c0_1], %0 {strides = array<i32>} : memref<2x15x32xf32, #tpu.memory_space<vmem>>, vector<2x15x32xf32>,
    %c0_2 = arith.constant 0 : index
    %c0_3 = arith.constant 0 : index
    %2 = vector.load %arg1[%c0_2, %c0_3] : memref<128x10xf32, #tpu.memory_space<vmem>>, vector<128x10xf32>
    %c0_4 = arith.constant 0 : index
    %c0_5 = arith.constant 0 : index
    %3 = vector.load %arg2[%c0_4, %c0_5] : memref<10x32xf32, #tpu.memory_space<vmem>>, vector<10x32xf32>
    %cst_6 = arith.constant dense<0.000000e+00> : vector<128x32xf32>
    %4 = tpu.matmul %2, %3, %cst_6 {dimension_numbers = #tpu.dot_dimension_numbers<[1], [0], [0], [1], [0, 0, 1, 1], [], []>} : vector<128x10xf32>, vector<10x32xf32>, vector<128x32xf32> -> vector<128x32xf32>
    %cst_7 = arith.constant 0.000000e+00 : f32
    %5 = vector.broadcast %cst_7 : f32 to vector<128x32xf32>
    %6 = arith.maximumf %4, %5 : vector<128x32xf32>
    %7 = vector.shape_cast %6 : vector<128x32xf32> to vector<16x8x32xf32>
    %cst_8 = arith.constant dense<0xFF800000> : vector<16x32xf32>
    %8 = vector.multi_reduction <maximumf>, %7, %cst_8 [1] : vector<16x8x32xf32> to vector<16x32xf32>
    %9 = vector.shape_cast %8 : vector<16x32xf32> to vector<2x8x32xf32>
    %c0_9 = arith.constant 0 : index
    %c3 = arith.constant 3 : index
    %c0_10 = arith.constant 0 : index
    %10 = vector.load %arg9[%c0_9, %c3, %c0_10] : memref<2x15x32xf32, #tpu.memory_space<vmem>>, vector<2x8x32xf32>
    tpu.vector_store %arg9[%c0_9, %c3, %c0_10], %9 {strides = array<i32>} : memref<2x15x32xf32, #tpu.memory_space<vmem>>, vector<2x8x32xf32>,
    %c0_11 = arith.constant 0 : index
    %c0_12 = arith.constant 0 : index
    %c0_13 = arith.constant 0 : index
    %11 = vector.load %arg9[%c0_11, %c0_12, %c0_13] : memref<2x15x32xf32, #tpu.memory_space<vmem>>, vector<2x8x32xf32>
    %12 = vector.shape_cast %11 : vector<2x8x32xf32> to vector<16x32xf32>
    %c0_14 = arith.constant 0 : index
    %c0_15 = arith.constant 0 : index
    %c0_16 = arith.constant 0 : index
    %13 = vector.load %arg3[%c0_14, %c0_15, %c0_16] : memref<8x32x32xf32, #tpu.memory_space<vmem>>, vector<1x32x32xf32>
    %14 = vector.shape_cast %13 : vector<1x32x32xf32> to vector<32x32xf32>
    %cst_17 = arith.constant dense<0.000000e+00> : vector<16x32xf32>
    %15 = tpu.matmul %12, %14, %cst_17 {dimension_numbers = #tpu.dot_dimension_numbers<[1], [0], [0], [1], [0, 0, 1, 1], [], []>} : vector<16x32xf32>, vector<32x32xf32>, vector<16x32xf32> -> vector<16x32xf32>
    %c0_18 = arith.constant 0 : index
    %c1 = arith.constant 1 : index
    %c0_19 = arith.constant 0 : index
    %16 = vector.load %arg9[%c0_18, %c1, %c0_19] : memref<2x15x32xf32, #tpu.memory_space<vmem>>, vector<2x8x32xf32>
    %17 = vector.shape_cast %16 : vector<2x8x32xf32> to vector<16x32xf32>
    %c1_20 = arith.constant 1 : index
    %c0_21 = arith.constant 0 : index
    %c0_22 = arith.constant 0 : index
    %18 = vector.load %arg3[%c1_20, %c0_21, %c0_22] : memref<8x32x32xf32, #tpu.memory_space<vmem>>, vector<1x32x32xf32>
    %19 = vector.shape_cast %18 : vector<1x32x32xf32> to vector<32x32xf32>
    %cst_23 = arith.constant dense<0.000000e+00> : vector<16x32xf32>
    %20 = tpu.matmul %17, %19, %cst_23 {dimension_numbers = #tpu.dot_dimension_numbers<[1], [0], [0], [1], [0, 0, 1, 1], [], []>} : vector<16x32xf32>, vector<32x32xf32>, vector<16x32xf32> -> vector<16x32xf32>
    %21 = arith.addf %15, %20 : vector<16x32xf32>
    %c0_24 = arith.constant 0 : index
    %c2 = arith.constant 2 : index
    %c0_25 = arith.constant 0 : index
    %22 = vector.load %arg9[%c0_24, %c2, %c0_25] : memref<2x15x32xf32, #tpu.memory_space<vmem>>, vector<2x8x32xf32>
    %23 = vector.shape_cast %22 : vector<2x8x32xf32> to vector<16x32xf32>
    %c2_26 = arith.constant 2 : index
    %c0_27 = arith.constant 0 : index
    %c0_28 = arith.constant 0 : index
    %24 = vector.load %arg3[%c2_26, %c0_27, %c0_28] : memref<8x32x32xf32, #tpu.memory_space<vmem>>, vector<1x32x32xf32>
    %25 = vector.shape_cast %24 : vector<1x32x32xf32> to vector<32x32xf32>
    %cst_29 = arith.constant dense<0.000000e+00> : vector<16x32xf32>
    %26 = tpu.matmul %23, %25, %cst_29 {dimension_numbers = #tpu.dot_dimension_numbers<[1], [0], [0], [1], [0, 0, 1, 1], [], []>} : vector<16x32xf32>, vector<32x32xf32>, vector<16x32xf32> -> vector<16x32xf32>
    %27 = arith.addf %21, %26 : vector<16x32xf32>
    %c0_30 = arith.constant 0 : index
    %c3_31 = arith.constant 3 : index
    %c0_32 = arith.constant 0 : index
    %28 = vector.load %arg9[%c0_30, %c3_31, %c0_32] : memref<2x15x32xf32, #tpu.memory_space<vmem>>, vector<2x8x32xf32>
    %29 = vector.shape_cast %28 : vector<2x8x32xf32> to vector<16x32xf32>
    %c3_33 = arith.constant 3 : index
    %c0_34 = arith.constant 0 : index
    %c0_35 = arith.constant 0 : index
    %30 = vector.load %arg3[%c3_33, %c0_34, %c0_35] : memref<8x32x32xf32, #tpu.memory_space<vmem>>, vector<1x32x32xf32>
    %31 = vector.shape_cast %30 : vector<1x32x32xf32> to vector<32x32xf32>
    %cst_36 = arith.constant dense<0.000000e+00> : vector<16x32xf32>
    %32 = tpu.matmul %29, %31, %cst_36 {dimension_numbers = #tpu.dot_dimension_numbers<[1], [0], [0], [1], [0, 0, 1, 1], [], []>} : vector<16x32xf32>, vector<32x32xf32>, vector<16x32xf32> -> vector<16x32xf32>
    %33 = arith.addf %27, %32 : vector<16x32xf32>
    %c0_37 = arith.constant 0 : index
    %c4 = arith.constant 4 : index
    %c0_38 = arith.constant 0 : index
    %34 = vector.load %arg9[%c0_37, %c4, %c0_38] : memref<2x15x32xf32, #tpu.memory_space<vmem>>, vector<2x8x32xf32>
    %35 = vector.shape_cast %34 : vector<2x8x32xf32> to vector<16x32xf32>
    %c4_39 = arith.constant 4 : index
    %c0_40 = arith.constant 0 : index
    %c0_41 = arith.constant 0 : index
    %36 = vector.load %arg3[%c4_39, %c0_40, %c0_41] : memref<8x32x32xf32, #tpu.memory_space<vmem>>, vector<1x32x32xf32>
    %37 = vector.shape_cast %36 : vector<1x32x32xf32> to vector<32x32xf32>
    %cst_42 = arith.constant dense<0.000000e+00> : vector<16x32xf32>
    %38 = tpu.matmul %35, %37, %cst_42 {dimension_numbers = #tpu.dot_dimension_numbers<[1], [0], [0], [1], [0, 0, 1, 1], [], []>} : vector<16x32xf32>, vector<32x32xf32>, vector<16x32xf32> -> vector<16x32xf32>
    %39 = arith.addf %33, %38 : vector<16x32xf32>
    %c0_43 = arith.constant 0 : index
    %c5 = arith.constant 5 : index
    %c0_44 = arith.constant 0 : index
    %40 = vector.load %arg9[%c0_43, %c5, %c0_44] : memref<2x15x32xf32, #tpu.memory_space<vmem>>, vector<2x8x32xf32>
    %41 = vector.shape_cast %40 : vector<2x8x32xf32> to vector<16x32xf32>
    %c5_45 = arith.constant 5 : index
    %c0_46 = arith.constant 0 : index
    %c0_47 = arith.constant 0 : index
    %42 = vector.load %arg3[%c5_45, %c0_46, %c0_47] : memref<8x32x32xf32, #tpu.memory_space<vmem>>, vector<1x32x32xf32>
    %43 = vector.shape_cast %42 : vector<1x32x32xf32> to vector<32x32xf32>
    %cst_48 = arith.constant dense<0.000000e+00> : vector<16x32xf32>
    %44 = tpu.matmul %41, %43, %cst_48 {dimension_numbers = #tpu.dot_dimension_numbers<[1], [0], [0], [1], [0, 0, 1, 1], [], []>} : vector<16x32xf32>, vector<32x32xf32>, vector<16x32xf32> -> vector<16x32xf32>
    %45 = arith.addf %39, %44 : vector<16x32xf32>
    %c0_49 = arith.constant 0 : index
    %c6 = arith.constant 6 : index
    %c0_50 = arith.constant 0 : index
    %46 = vector.load %arg9[%c0_49, %c6, %c0_50] : memref<2x15x32xf32, #tpu.memory_space<vmem>>, vector<2x8x32xf32>
    %47 = vector.shape_cast %46 : vector<2x8x32xf32> to vector<16x32xf32>
    %c6_51 = arith.constant 6 : index
    %c0_52 = arith.constant 0 : index
    %c0_53 = arith.constant 0 : index
    %48 = vector.load %arg3[%c6_51, %c0_52, %c0_53] : memref<8x32x32xf32, #tpu.memory_space<vmem>>, vector<1x32x32xf32>
    %49 = vector.shape_cast %48 : vector<1x32x32xf32> to vector<32x32xf32>
    %cst_54 = arith.constant dense<0.000000e+00> : vector<16x32xf32>
    %50 = tpu.matmul %47, %49, %cst_54 {dimension_numbers = #tpu.dot_dimension_numbers<[1], [0], [0], [1], [0, 0, 1, 1], [], []>} : vector<16x32xf32>, vector<32x32xf32>, vector<16x32xf32> -> vector<16x32xf32>
    %51 = arith.addf %45, %50 : vector<16x32xf32>
    %c0_55 = arith.constant 0 : index
    %c7 = arith.constant 7 : index
    %c0_56 = arith.constant 0 : index
    %52 = vector.load %arg9[%c0_55, %c7, %c0_56] : memref<2x15x32xf32, #tpu.memory_space<vmem>>, vector<2x8x32xf32>
    %53 = vector.shape_cast %52 : vector<2x8x32xf32> to vector<16x32xf32>
    %c7_57 = arith.constant 7 : index
    %c0_58 = arith.constant 0 : index
    %c0_59 = arith.constant 0 : index
    %54 = vector.load %arg3[%c7_57, %c0_58, %c0_59] : memref<8x32x32xf32, #tpu.memory_space<vmem>>, vector<1x32x32xf32>
    %55 = vector.shape_cast %54 : vector<1x32x32xf32> to vector<32x32xf32>
    %cst_60 = arith.constant dense<0.000000e+00> : vector<16x32xf32>
    %56 = tpu.matmul %53, %55, %cst_60 {dimension_numbers = #tpu.dot_dimension_numbers<[1], [0], [0], [1], [0, 0, 1, 1], [], []>} : vector<16x32xf32>, vector<32x32xf32>, vector<16x32xf32> -> vector<16x32xf32>
    %57 = arith.addf %51, %56 : vector<16x32xf32>
    %cst_61 = arith.constant 0.000000e+00 : f32
    %58 = vector.broadcast %cst_61 : f32 to vector<16x32xf32>
    %59 = arith.maximumf %57, %58 : vector<16x32xf32>
    %60 = vector.shape_cast %59 : vector<16x32xf32> to vector<2x8x32xf32>
    %c0_62 = arith.constant 0 : index
    %c3_63 = arith.constant 3 : index
    %c0_64 = arith.constant 0 : index
    %61 = vector.load %arg9[%c0_62, %c3_63, %c0_64] : memref<2x15x32xf32, #tpu.memory_space<vmem>>, vector<2x8x32xf32>
    tpu.vector_store %arg9[%c0_62, %c3_63, %c0_64], %60 {strides = array<i32>} : memref<2x15x32xf32, #tpu.memory_space<vmem>>, vector<2x8x32xf32>,
    %c0_65 = arith.constant 0 : index
    %c0_66 = arith.constant 0 : index
    %c0_67 = arith.constant 0 : index
    %62 = vector.load %arg9[%c0_65, %c0_66, %c0_67] : memref<2x15x32xf32, #tpu.memory_space<vmem>>, vector<2x8x32xf32>
    %63 = vector.shape_cast %62 : vector<2x8x32xf32> to vector<16x32xf32>
    %c0_68 = arith.constant 0 : index
    %c0_69 = arith.constant 0 : index
    %c0_70 = arith.constant 0 : index
    %64 = vector.load %arg4[%c0_68, %c0_69, %c0_70] : memref<8x32x32xf32, #tpu.memory_space<vmem>>, vector<1x32x32xf32>
    %65 = vector.shape_cast %64 : vector<1x32x32xf32> to vector<32x32xf32>
    %cst_71 = arith.constant dense<0.000000e+00> : vector<16x32xf32>
    %66 = tpu.matmul %63, %65, %cst_71 {dimension_numbers = #tpu.dot_dimension_numbers<[1], [0], [0], [1], [0, 0, 1, 1], [], []>} : vector<16x32xf32>, vector<32x32xf32>, vector<16x32xf32> -> vector<16x32xf32>
    %c0_72 = arith.constant 0 : index
    %c1_73 = arith.constant 1 : index
    %c0_74 = arith.constant 0 : index
    %67 = vector.load %arg9[%c0_72, %c1_73, %c0_74] : memref<2x15x32xf32, #tpu.memory_space<vmem>>, vector<2x8x32xf32>
    %68 = vector.shape_cast %67 : vector<2x8x32xf32> to vector<16x32xf32>
    %c1_75 = arith.constant 1 : index
    %c0_76 = arith.constant 0 : index
    %c0_77 = arith.constant 0 : index
    %69 = vector.load %arg4[%c1_75, %c0_76, %c0_77] : memref<8x32x32xf32, #tpu.memory_space<vmem>>, vector<1x32x32xf32>
    %70 = vector.shape_cast %69 : vector<1x32x32xf32> to vector<32x32xf32>
    %cst_78 = arith.constant dense<0.000000e+00> : vector<16x32xf32>
    %71 = tpu.matmul %68, %70, %cst_78 {dimension_numbers = #tpu.dot_dimension_numbers<[1], [0], [0], [1], [0, 0, 1, 1], [], []>} : vector<16x32xf32>, vector<32x32xf32>, vector<16x32xf32> -> vector<16x32xf32>
    %72 = arith.addf %66, %71 : vector<16x32xf32>
    %c0_79 = arith.constant 0 : index
    %c2_80 = arith.constant 2 : index
    %c0_81 = arith.constant 0 : index
    %73 = vector.load %arg9[%c0_79, %c2_80, %c0_81] : memref<2x15x32xf32, #tpu.memory_space<vmem>>, vector<2x8x32xf32>
    %74 = vector.shape_cast %73 : vector<2x8x32xf32> to vector<16x32xf32>
    %c2_82 = arith.constant 2 : index
    %c0_83 = arith.constant 0 : index
    %c0_84 = arith.constant 0 : index
    %75 = vector.load %arg4[%c2_82, %c0_83, %c0_84] : memref<8x32x32xf32, #tpu.memory_space<vmem>>, vector<1x32x32xf32>
    %76 = vector.shape_cast %75 : vector<1x32x32xf32> to vector<32x32xf32>
    %cst_85 = arith.constant dense<0.000000e+00> : vector<16x32xf32>
    %77 = tpu.matmul %74, %76, %cst_85 {dimension_numbers = #tpu.dot_dimension_numbers<[1], [0], [0], [1], [0, 0, 1, 1], [], []>} : vector<16x32xf32>, vector<32x32xf32>, vector<16x32xf32> -> vector<16x32xf32>
    %78 = arith.addf %72, %77 : vector<16x32xf32>
    %c0_86 = arith.constant 0 : index
    %c3_87 = arith.constant 3 : index
    %c0_88 = arith.constant 0 : index
    %79 = vector.load %arg9[%c0_86, %c3_87, %c0_88] : memref<2x15x32xf32, #tpu.memory_space<vmem>>, vector<2x8x32xf32>
    %80 = vector.shape_cast %79 : vector<2x8x32xf32> to vector<16x32xf32>
    %c3_89 = arith.constant 3 : index
    %c0_90 = arith.constant 0 : index
    %c0_91 = arith.constant 0 : index
    %81 = vector.load %arg4[%c3_89, %c0_90, %c0_91] : memref<8x32x32xf32, #tpu.memory_space<vmem>>, vector<1x32x32xf32>
    %82 = vector.shape_cast %81 : vector<1x32x32xf32> to vector<32x32xf32>
    %cst_92 = arith.constant dense<0.000000e+00> : vector<16x32xf32>
    %83 = tpu.matmul %80, %82, %cst_92 {dimension_numbers = #tpu.dot_dimension_numbers<[1], [0], [0], [1], [0, 0, 1, 1], [], []>} : vector<16x32xf32>, vector<32x32xf32>, vector<16x32xf32> -> vector<16x32xf32>
    %84 = arith.addf %78, %83 : vector<16x32xf32>
    %c0_93 = arith.constant 0 : index
    %c4_94 = arith.constant 4 : index
    %c0_95 = arith.constant 0 : index
    %85 = vector.load %arg9[%c0_93, %c4_94, %c0_95] : memref<2x15x32xf32, #tpu.memory_space<vmem>>, vector<2x8x32xf32>
    %86 = vector.shape_cast %85 : vector<2x8x32xf32> to vector<16x32xf32>
    %c4_96 = arith.constant 4 : index
    %c0_97 = arith.constant 0 : index
    %c0_98 = arith.constant 0 : index
    %87 = vector.load %arg4[%c4_96, %c0_97, %c0_98] : memref<8x32x32xf32, #tpu.memory_space<vmem>>, vector<1x32x32xf32>
    %88 = vector.shape_cast %87 : vector<1x32x32xf32> to vector<32x32xf32>
    %cst_99 = arith.constant dense<0.000000e+00> : vector<16x32xf32>
    %89 = tpu.matmul %86, %88, %cst_99 {dimension_numbers = #tpu.dot_dimension_numbers<[1], [0], [0], [1], [0, 0, 1, 1], [], []>} : vector<16x32xf32>, vector<32x32xf32>, vector<16x32xf32> -> vector<16x32xf32>
    %90 = arith.addf %84, %89 : vector<16x32xf32>
    %c0_100 = arith.constant 0 : index
    %c5_101 = arith.constant 5 : index
    %c0_102 = arith.constant 0 : index
    %91 = vector.load %arg9[%c0_100, %c5_101, %c0_102] : memref<2x15x32xf32, #tpu.memory_space<vmem>>, vector<2x8x32xf32>
    %92 = vector.shape_cast %91 : vector<2x8x32xf32> to vector<16x32xf32>
    %c5_103 = arith.constant 5 : index
    %c0_104 = arith.constant 0 : index
    %c0_105 = arith.constant 0 : index
    %93 = vector.load %arg4[%c5_103, %c0_104, %c0_105] : memref<8x32x32xf32, #tpu.memory_space<vmem>>, vector<1x32x32xf32>
    %94 = vector.shape_cast %93 : vector<1x32x32xf32> to vector<32x32xf32>
    %cst_106 = arith.constant dense<0.000000e+00> : vector<16x32xf32>
    %95 = tpu.matmul %92, %94, %cst_106 {dimension_numbers = #tpu.dot_dimension_numbers<[1], [0], [0], [1], [0, 0, 1, 1], [], []>} : vector<16x32xf32>, vector<32x32xf32>, vector<16x32xf32> -> vector<16x32xf32>
    %96 = arith.addf %90, %95 : vector<16x32xf32>
    %c0_107 = arith.constant 0 : index
    %c6_108 = arith.constant 6 : index
    %c0_109 = arith.constant 0 : index
    %97 = vector.load %arg9[%c0_107, %c6_108, %c0_109] : memref<2x15x32xf32, #tpu.memory_space<vmem>>, vector<2x8x32xf32>
    %98 = vector.shape_cast %97 : vector<2x8x32xf32> to vector<16x32xf32>
    %c6_110 = arith.constant 6 : index
    %c0_111 = arith.constant 0 : index
    %c0_112 = arith.constant 0 : index
    %99 = vector.load %arg4[%c6_110, %c0_111, %c0_112] : memref<8x32x32xf32, #tpu.memory_space<vmem>>, vector<1x32x32xf32>
    %100 = vector.shape_cast %99 : vector<1x32x32xf32> to vector<32x32xf32>
    %cst_113 = arith.constant dense<0.000000e+00> : vector<16x32xf32>
    %101 = tpu.matmul %98, %100, %cst_113 {dimension_numbers = #tpu.dot_dimension_numbers<[1], [0], [0], [1], [0, 0, 1, 1], [], []>} : vector<16x32xf32>, vector<32x32xf32>, vector<16x32xf32> -> vector<16x32xf32>
    %102 = arith.addf %96, %101 : vector<16x32xf32>
    %c0_114 = arith.constant 0 : index
    %c7_115 = arith.constant 7 : index
    %c0_116 = arith.constant 0 : index
    %103 = vector.load %arg9[%c0_114, %c7_115, %c0_116] : memref<2x15x32xf32, #tpu.memory_space<vmem>>, vector<2x8x32xf32>
    %104 = vector.shape_cast %103 : vector<2x8x32xf32> to vector<16x32xf32>
    %c7_117 = arith.constant 7 : index
    %c0_118 = arith.constant 0 : index
    %c0_119 = arith.constant 0 : index
    %105 = vector.load %arg4[%c7_117, %c0_118, %c0_119] : memref<8x32x32xf32, #tpu.memory_space<vmem>>, vector<1x32x32xf32>
    %106 = vector.shape_cast %105 : vector<1x32x32xf32> to vector<32x32xf32>
    %cst_120 = arith.constant dense<0.000000e+00> : vector<16x32xf32>
    %107 = tpu.matmul %104, %106, %cst_120 {dimension_numbers = #tpu.dot_dimension_numbers<[1], [0], [0], [1], [0, 0, 1, 1], [], []>} : vector<16x32xf32>, vector<32x32xf32>, vector<16x32xf32> -> vector<16x32xf32>
    %108 = arith.addf %102, %107 : vector<16x32xf32>
    %cst_121 = arith.constant 0.000000e+00 : f32
    %109 = vector.broadcast %cst_121 : f32 to vector<16x32xf32>
    %110 = arith.maximumf %108, %109 : vector<16x32xf32>
    %111 = vector.shape_cast %110 : vector<16x32xf32> to vector<2x8x32xf32>
    %c0_122 = arith.constant 0 : index
    %c3_123 = arith.constant 3 : index
    %c0_124 = arith.constant 0 : index
    %112 = vector.load %arg9[%c0_122, %c3_123, %c0_124] : memref<2x15x32xf32, #tpu.memory_space<vmem>>, vector<2x8x32xf32>
    tpu.vector_store %arg9[%c0_122, %c3_123, %c0_124], %111 {strides = array<i32>} : memref<2x15x32xf32, #tpu.memory_space<vmem>>, vector<2x8x32xf32>,
    %c0_125 = arith.constant 0 : index
    %c0_126 = arith.constant 0 : index
    %c0_127 = arith.constant 0 : index
    %113 = vector.load %arg9[%c0_125, %c0_126, %c0_127] : memref<2x15x32xf32, #tpu.memory_space<vmem>>, vector<2x8x32xf32>
    %114 = vector.shape_cast %113 : vector<2x8x32xf32> to vector<16x32xf32>
    %c0_128 = arith.constant 0 : index
    %c0_129 = arith.constant 0 : index
    %c0_130 = arith.constant 0 : index
    %115 = vector.load %arg5[%c0_128, %c0_129, %c0_130] : memref<8x32x32xf32, #tpu.memory_space<vmem>>, vector<1x32x32xf32>
    %116 = vector.shape_cast %115 : vector<1x32x32xf32> to vector<32x32xf32>
    %cst_131 = arith.constant dense<0.000000e+00> : vector<16x32xf32>
    %117 = tpu.matmul %114, %116, %cst_131 {dimension_numbers = #tpu.dot_dimension_numbers<[1], [0], [0], [1], [0, 0, 1, 1], [], []>} : vector<16x32xf32>, vector<32x32xf32>, vector<16x32xf32> -> vector<16x32xf32>
    %c0_132 = arith.constant 0 : index
    %c1_133 = arith.constant 1 : index
    %c0_134 = arith.constant 0 : index
    %118 = vector.load %arg9[%c0_132, %c1_133, %c0_134] : memref<2x15x32xf32, #tpu.memory_space<vmem>>, vector<2x8x32xf32>
    %119 = vector.shape_cast %118 : vector<2x8x32xf32> to vector<16x32xf32>
    %c1_135 = arith.constant 1 : index
    %c0_136 = arith.constant 0 : index
    %c0_137 = arith.constant 0 : index
    %120 = vector.load %arg5[%c1_135, %c0_136, %c0_137] : memref<8x32x32xf32, #tpu.memory_space<vmem>>, vector<1x32x32xf32>
    %121 = vector.shape_cast %120 : vector<1x32x32xf32> to vector<32x32xf32>
    %cst_138 = arith.constant dense<0.000000e+00> : vector<16x32xf32>
    %122 = tpu.matmul %119, %121, %cst_138 {dimension_numbers = #tpu.dot_dimension_numbers<[1], [0], [0], [1], [0, 0, 1, 1], [], []>} : vector<16x32xf32>, vector<32x32xf32>, vector<16x32xf32> -> vector<16x32xf32>
    %123 = arith.addf %117, %122 : vector<16x32xf32>
    %c0_139 = arith.constant 0 : index
    %c2_140 = arith.constant 2 : index
    %c0_141 = arith.constant 0 : index
    %124 = vector.load %arg9[%c0_139, %c2_140, %c0_141] : memref<2x15x32xf32, #tpu.memory_space<vmem>>, vector<2x8x32xf32>
    %125 = vector.shape_cast %124 : vector<2x8x32xf32> to vector<16x32xf32>
    %c2_142 = arith.constant 2 : index
    %c0_143 = arith.constant 0 : index
    %c0_144 = arith.constant 0 : index
    %126 = vector.load %arg5[%c2_142, %c0_143, %c0_144] : memref<8x32x32xf32, #tpu.memory_space<vmem>>, vector<1x32x32xf32>
    %127 = vector.shape_cast %126 : vector<1x32x32xf32> to vector<32x32xf32>
    %cst_145 = arith.constant dense<0.000000e+00> : vector<16x32xf32>
    %128 = tpu.matmul %125, %127, %cst_145 {dimension_numbers = #tpu.dot_dimension_numbers<[1], [0], [0], [1], [0, 0, 1, 1], [], []>} : vector<16x32xf32>, vector<32x32xf32>, vector<16x32xf32> -> vector<16x32xf32>
    %129 = arith.addf %123, %128 : vector<16x32xf32>
    %c0_146 = arith.constant 0 : index
    %c3_147 = arith.constant 3 : index
    %c0_148 = arith.constant 0 : index
    %130 = vector.load %arg9[%c0_146, %c3_147, %c0_148] : memref<2x15x32xf32, #tpu.memory_space<vmem>>, vector<2x8x32xf32>
    %131 = vector.shape_cast %130 : vector<2x8x32xf32> to vector<16x32xf32>
    %c3_149 = arith.constant 3 : index
    %c0_150 = arith.constant 0 : index
    %c0_151 = arith.constant 0 : index
    %132 = vector.load %arg5[%c3_149, %c0_150, %c0_151] : memref<8x32x32xf32, #tpu.memory_space<vmem>>, vector<1x32x32xf32>
    %133 = vector.shape_cast %132 : vector<1x32x32xf32> to vector<32x32xf32>
    %cst_152 = arith.constant dense<0.000000e+00> : vector<16x32xf32>
    %134 = tpu.matmul %131, %133, %cst_152 {dimension_numbers = #tpu.dot_dimension_numbers<[1], [0], [0], [1], [0, 0, 1, 1], [], []>} : vector<16x32xf32>, vector<32x32xf32>, vector<16x32xf32> -> vector<16x32xf32>
    %135 = arith.addf %129, %134 : vector<16x32xf32>
    %c0_153 = arith.constant 0 : index
    %c4_154 = arith.constant 4 : index
    %c0_155 = arith.constant 0 : index
    %136 = vector.load %arg9[%c0_153, %c4_154, %c0_155] : memref<2x15x32xf32, #tpu.memory_space<vmem>>, vector<2x8x32xf32>
    %137 = vector.shape_cast %136 : vector<2x8x32xf32> to vector<16x32xf32>
    %c4_156 = arith.constant 4 : index
    %c0_157 = arith.constant 0 : index
    %c0_158 = arith.constant 0 : index
    %138 = vector.load %arg5[%c4_156, %c0_157, %c0_158] : memref<8x32x32xf32, #tpu.memory_space<vmem>>, vector<1x32x32xf32>
    %139 = vector.shape_cast %138 : vector<1x32x32xf32> to vector<32x32xf32>
    %cst_159 = arith.constant dense<0.000000e+00> : vector<16x32xf32>
    %140 = tpu.matmul %137, %139, %cst_159 {dimension_numbers = #tpu.dot_dimension_numbers<[1], [0], [0], [1], [0, 0, 1, 1], [], []>} : vector<16x32xf32>, vector<32x32xf32>, vector<16x32xf32> -> vector<16x32xf32>
    %141 = arith.addf %135, %140 : vector<16x32xf32>
    %c0_160 = arith.constant 0 : index
    %c5_161 = arith.constant 5 : index
    %c0_162 = arith.constant 0 : index
    %142 = vector.load %arg9[%c0_160, %c5_161, %c0_162] : memref<2x15x32xf32, #tpu.memory_space<vmem>>, vector<2x8x32xf32>
    %143 = vector.shape_cast %142 : vector<2x8x32xf32> to vector<16x32xf32>
    %c5_163 = arith.constant 5 : index
    %c0_164 = arith.constant 0 : index
    %c0_165 = arith.constant 0 : index
    %144 = vector.load %arg5[%c5_163, %c0_164, %c0_165] : memref<8x32x32xf32, #tpu.memory_space<vmem>>, vector<1x32x32xf32>
    %145 = vector.shape_cast %144 : vector<1x32x32xf32> to vector<32x32xf32>
    %cst_166 = arith.constant dense<0.000000e+00> : vector<16x32xf32>
    %146 = tpu.matmul %143, %145, %cst_166 {dimension_numbers = #tpu.dot_dimension_numbers<[1], [0], [0], [1], [0, 0, 1, 1], [], []>} : vector<16x32xf32>, vector<32x32xf32>, vector<16x32xf32> -> vector<16x32xf32>
    %147 = arith.addf %141, %146 : vector<16x32xf32>
    %c0_167 = arith.constant 0 : index
    %c6_168 = arith.constant 6 : index
    %c0_169 = arith.constant 0 : index
    %148 = vector.load %arg9[%c0_167, %c6_168, %c0_169] : memref<2x15x32xf32, #tpu.memory_space<vmem>>, vector<2x8x32xf32>
    %149 = vector.shape_cast %148 : vector<2x8x32xf32> to vector<16x32xf32>
    %c6_170 = arith.constant 6 : index
    %c0_171 = arith.constant 0 : index
    %c0_172 = arith.constant 0 : index
    %150 = vector.load %arg5[%c6_170, %c0_171, %c0_172] : memref<8x32x32xf32, #tpu.memory_space<vmem>>, vector<1x32x32xf32>
    %151 = vector.shape_cast %150 : vector<1x32x32xf32> to vector<32x32xf32>
    %cst_173 = arith.constant dense<0.000000e+00> : vector<16x32xf32>
    %152 = tpu.matmul %149, %151, %cst_173 {dimension_numbers = #tpu.dot_dimension_numbers<[1], [0], [0], [1], [0, 0, 1, 1], [], []>} : vector<16x32xf32>, vector<32x32xf32>, vector<16x32xf32> -> vector<16x32xf32>
    %153 = arith.addf %147, %152 : vector<16x32xf32>
    %c0_174 = arith.constant 0 : index
    %c7_175 = arith.constant 7 : index
    %c0_176 = arith.constant 0 : index
    %154 = vector.load %arg9[%c0_174, %c7_175, %c0_176] : memref<2x15x32xf32, #tpu.memory_space<vmem>>, vector<2x8x32xf32>
    %155 = vector.shape_cast %154 : vector<2x8x32xf32> to vector<16x32xf32>
    %c7_177 = arith.constant 7 : index
    %c0_178 = arith.constant 0 : index
    %c0_179 = arith.constant 0 : index
    %156 = vector.load %arg5[%c7_177, %c0_178, %c0_179] : memref<8x32x32xf32, #tpu.memory_space<vmem>>, vector<1x32x32xf32>
    %157 = vector.shape_cast %156 : vector<1x32x32xf32> to vector<32x32xf32>
    %cst_180 = arith.constant dense<0.000000e+00> : vector<16x32xf32>
    %158 = tpu.matmul %155, %157, %cst_180 {dimension_numbers = #tpu.dot_dimension_numbers<[1], [0], [0], [1], [0, 0, 1, 1], [], []>} : vector<16x32xf32>, vector<32x32xf32>, vector<16x32xf32> -> vector<16x32xf32>
    %159 = arith.addf %153, %158 : vector<16x32xf32>
    %cst_181 = arith.constant 0.000000e+00 : f32
    %160 = vector.broadcast %cst_181 : f32 to vector<16x32xf32>
    %161 = arith.maximumf %159, %160 : vector<16x32xf32>
    %162 = vector.shape_cast %161 : vector<16x32xf32> to vector<2x8x32xf32>
    %163 = vector.extract_strided_slice %162 {offsets = [0, 0, 0], sizes = [2, 4, 32], strides = [1, 1, 1]} : vector<2x8x32xf32> to vector<2x4x32xf32>
    %cst_182 = arith.constant dense<0xFF800000> : vector<2x32xf32>
    %164 = vector.multi_reduction <maximumf>, %163, %cst_182 [1] : vector<2x4x32xf32> to vector<2x32xf32>
    %165 = vector.extract_strided_slice %162 {offsets = [0, 4, 0], sizes = [2, 4, 32], strides = [1, 1, 1]} : vector<2x8x32xf32> to vector<2x4x32xf32>
    %cst_183 = arith.constant dense<0xFF800000> : vector<2x32xf32>
    %166 = vector.multi_reduction <maximumf>, %165, %cst_183 [1] : vector<2x4x32xf32> to vector<2x32xf32>
    %167 = tpu.concatenate %164, %166 in 1 : vector<2x32xf32>, vector<2x32xf32> -> vector<2x64xf32>
    %c0_184 = arith.constant 0 : index
    %c0_185 = arith.constant 0 : index
    %168 = vector.load %arg6[%c0_184, %c0_185] : memref<64x128xf32, #tpu.memory_space<vmem>>, vector<64x128xf32>
    %cst_186 = arith.constant dense<0.000000e+00> : vector<2x128xf32>
    %169 = tpu.matmul %167, %168, %cst_186 {dimension_numbers = #tpu.dot_dimension_numbers<[1], [0], [0], [1], [0, 0, 1, 1], [], []>} : vector<2x64xf32>, vector<64x128xf32>, vector<2x128xf32> -> vector<2x128xf32>
    %c0_187 = arith.constant 0 : index
    %c0_188 = arith.constant 0 : index
    %170 = vector.load %arg7[%c0_187, %c0_188] : memref<1x128xf32, #tpu.memory_space<vmem>>, vector<1x128xf32>
    %171 = vector.broadcast %170 : vector<1x128xf32> to vector<2x128xf32>
    %172 = arith.addf %169, %171 : vector<2x128xf32>
    %c0_189 = arith.constant 0 : index
    %c0_190 = arith.constant 0 : index
    %c0_191 = arith.constant 0 : index
    %173 = vector.load %arg8[%c0_189, %c0_190, %c0_191] : memref<1x2x128xf32, #tpu.memory_space<vmem>>, vector<1x2x128xf32>
    %174 = vector.shape_cast %173 : vector<1x2x128xf32> to vector<2x128xf32>
    %175 = vector.shape_cast %172 : vector<2x128xf32> to vector<1x2x128xf32>
    tpu.vector_store %arg8[%c0_189, %c0_190, %c0_191], %175 {strides = array<i32>} : memref<1x2x128xf32, #tpu.memory_space<vmem>>, vector<1x2x128xf32>,
    return
  }
  func.func @transform_0(%arg0: i32) -> (i32, i32) {
    %c0_i32 = arith.constant 0 : i32
    %c0_i32_0 = arith.constant 0 : i32
    return %arg0, %c0_i32 : i32, i32
  }
  func.func @transform_1(%arg0: i32) -> (i32, i32) {
    %c0_i32 = arith.constant 0 : i32
    %c0_i32_0 = arith.constant 0 : i32
    %c0_i32_1 = arith.constant 0 : i32
    return %c0_i32, %c0_i32_0 : i32, i32
  }
  func.func @transform_2(%arg0: i32) -> (i32, i32, i32) {
    %c0_i32 = arith.constant 0 : i32
    %c0_i32_0 = arith.constant 0 : i32
    %c0_i32_1 = arith.constant 0 : i32
    %c0_i32_2 = arith.constant 0 : i32
    return %c0_i32, %c0_i32_0, %c0_i32_1 : i32, i32, i32
  }
  func.func @transform_3(%arg0: i32) -> (i32, i32, i32) {
    %c0_i32 = arith.constant 0 : i32
    %c0_i32_0 = arith.constant 0 : i32
    %c0_i32_1 = arith.constant 0 : i32
    %c0_i32_2 = arith.constant 0 : i32
    return %c0_i32, %c0_i32_0, %c0_i32_1 : i32, i32, i32
  }
  func.func @transform_4(%arg0: i32) -> (i32, i32, i32) {
    %c0_i32 = arith.constant 0 : i32
    %c0_i32_0 = arith.constant 0 : i32
    %c0_i32_1 = arith.constant 0 : i32
    %c0_i32_2 = arith.constant 0 : i32
    return %c0_i32, %c0_i32_0, %c0_i32_1 : i32, i32, i32
  }
  func.func @transform_5(%arg0: i32) -> (i32, i32) {
    %c0_i32 = arith.constant 0 : i32
    %c0_i32_0 = arith.constant 0 : i32
    %c0_i32_1 = arith.constant 0 : i32
    return %c0_i32, %c0_i32_0 : i32, i32
  }
  func.func @transform_6(%arg0: i32) -> (i32, i32) {
    %c0_i32 = arith.constant 0 : i32
    %c0_i32_0 = arith.constant 0 : i32
    %c0_i32_1 = arith.constant 0 : i32
    return %c0_i32, %c0_i32_0 : i32, i32
  }
  func.func @transform_7(%arg0: i32) -> (i32, i32, i32) {
    %c0_i32 = arith.constant 0 : i32
    %c0_i32_0 = arith.constant 0 : i32
    %c0_i32_1 = arith.constant 0 : i32
    return %arg0, %c0_i32, %c0_i32_0 : i32, i32, i32
  }
}

</mosaic_0001>

<llo_original>
// kernel: _lambda_.1
$region0: #{_lambda_.1}
  #allocation0 [shape = 'u32[]', space=smem, size = 0x4, offset = 0x4, fixed_abs, tag = 'smem constant byte address 0x4 - core index']
  #allocation1 [shape = 'u32[144,128]{1,0:T(1,128)}', space=vmem, size = 0x12000, scoped, tag = 'internal scratch']
  #allocation2 [shape = 'f32[2,15,32]{2,1,0:T(8,128)}', space=vmem, size = 0x4000, scoped, tag = 'scratch operand']
  %s0 = inlined_call_operand.vmem [shape: f32[256,10], index: 0, kind: input, shape index: {}]
  %s1 = inlined_call_operand.vmem [shape: f32[10,32], index: 1, kind: input, shape index: {}]
  %s2 = inlined_call_operand.vmem [shape: f32[8,32,32], index: 2, kind: input, shape index: {}]
  %s3 = inlined_call_operand.vmem [shape: f32[8,32,32], index: 3, kind: input, shape index: {}]
  %s4 = inlined_call_operand.vmem [shape: f32[8,32,32], index: 4, kind: input, shape index: {}]
  %s5 = inlined_call_operand.vmem [shape: f32[64,128], index: 5, kind: input, shape index: {}]
  %s6 = inlined_call_operand.vmem [shape: f32[1,128], index: 6, kind: input, shape index: {}]
  %s7 = inlined_call_operand.hbm [shape: f32[2,2,128], index: 7, kind: output, shape index: {}]
  %s8 = sld [smem:[#allocation0]]
  $region61: #{_lambda_.1} parent=0
    _
  %s10 = ssub.s32 1, %s8
  %s11 = scalar_select 0, %s10, %s8
  $region1: #{_lambda_.1} parent=0
    #allocation3 [shape = 'u8[2048]{0}', space=vmem, size = 0x800, scoped, tag = 'output window, operand 0']
    #allocation4 [shape = 's32[2]{0}', space=sflag, size = 0x8, scoped, tag = 'scoped memory for _lambda_.1']
    %12 = vsyncpa [#allocation4], 0
    %s13 = scalar_lea.sflag [#allocation4], 1
    %14 = vsyncpa %s13, 0
    loop: start=0, step=1, limit=4
    $region2: #{_lambda_.1} parent=1 // loop_pre_header
      _
    $region3: #{_lambda_.1} parent=1 // loop_header
      %s16 = sphi 0, %s20
      %p17 = scmp.ge.s32.totalorder %s16, 4
      %s26 = sphi 0, %s28
      %s29 = sphi 0, %s26
      %s30 = sphi 0, %s29
      %s46 = sphi 0, %s30
      %s50 = sphi 0, %s50
      %s52 = sphi 0, %s50
      %s53 = sphi 0, %s52
      %s67 = sphi 0, %s53
      %s71 = sphi 0, %s71
      %s73 = sphi 0, %s71
      %s74 = sphi 0, %s73
      %s88 = sphi 0, %s74
      %s92 = sphi 0, %s92
      %s94 = sphi 0, %s92
      %s95 = sphi 0, %s94
      %s109 = sphi 0, %s95
      %s113 = sphi 0, %s113
      %s115 = sphi 0, %s113
      %s116 = sphi 0, %s115
      %s130 = sphi 0, %s116
      %s134 = sphi 0, %s134
      %s136 = sphi 0, %s134
      %s137 = sphi 0, %s136
      %s151 = sphi 0, %s137
      %s155 = sphi 0, %s155
      %s157 = sphi 0, %s155
      %s158 = sphi 0, %s157
      %s172 = sphi 0, %s158
      %s178 = sphi 0, %s180
      %s181 = sphi 0, %s178
      %s182 = sphi 0, %s181
      %s198 = sphi 0, %s182
    $region4: #{_lambda_.1} parent=1 // loop_header_branch
      %19 = sbr.rel (%p17) target = $region8
    $region5: #{_lambda_.1} parent=1 // loop_body
      %s21 = ssub.s32 %s16, 1
      %s22 = ssub.s32 %s16, 2
      %s23 = sadd.s32 %s16, 1
      %s24 = ssub.s32 %s16, %s23
      %p25 = scmp.eq.s32.totalorder %s24, 0
      %s27 = sadd.s32 %s26, 1
      %s28 = scalar_select %p25, %s26, %s27
      %p31 = pneg %p25
      %p32 = scmp.eq.s32.totalorder %s16, 1
      %p33 = por %p31, %p32
      %p34 = scmp.ne.s32.totalorder %s26, %s29
      %p35 = scmp.eq.s32.totalorder %s16, 0
      %p36 = por %p34, %p35
      %p37 = scmp.ne.s32.totalorder %s26, %s29
      %p38 = scmp.eq.s32.totalorder %s21, 1
      %p39 = por %p37, %p38
      %p40 = scmp.ne.s32.totalorder %s29, %s30
      %p41 = scmp.eq.s32.totalorder %s21, 0
      %p42 = por %p40, %p41
      %p43 = scmp.ne.s32.totalorder %s29, %s30
      %p44 = scmp.eq.s32.totalorder %s22, 1
      %p45 = por %p43, %p44
      %p47 = scmp.ne.s32.totalorder %s30, %s46
      %p48 = scmp.eq.s32.totalorder %s22, 0
      %p49 = por %p47, %p48
      %s51 = sadd.s32 %s50, 1
      %p54 = scmp.eq.s32.totalorder %s16, 1
      %p55 = scmp.ne.s32.totalorder %s50, %s52
      %p56 = scmp.eq.s32.totalorder %s16, 0
      %p57 = por %p55, %p56
      %p58 = scmp.ne.s32.totalorder %s50, %s52
      %p59 = scmp.eq.s32.totalorder %s21, 1
      %p60 = por %p58, %p59
      %p61 = scmp.ne.s32.totalorder %s52, %s53
      %p62 = scmp.eq.s32.totalorder %s21, 0
      %p63 = por %p61, %p62
      %p64 = scmp.ne.s32.totalorder %s52, %s53
      %p65 = scmp.eq.s32.totalorder %s22, 1
      %p66 = por %p64, %p65
      %p68 = scmp.ne.s32.totalorder %s53, %s67
      %p69 = scmp.eq.s32.totalorder %s22, 0
      %p70 = por %p68, %p69
      %s72 = sadd.s32 %s71, 1
      %p75 = scmp.eq.s32.totalorder %s16, 1
      %p76 = scmp.ne.s32.totalorder %s71, %s73
      %p77 = scmp.eq.s32.totalorder %s16, 0
      %p78 = por %p76, %p77
      %p79 = scmp.ne.s32.totalorder %s71, %s73
      %p80 = scmp.eq.s32.totalorder %s21, 1
      %p81 = por %p79, %p80
      %p82 = scmp.ne.s32.totalorder %s73, %s74
      %p83 = scmp.eq.s32.totalorder %s21, 0
      %p84 = por %p82, %p83
      %p85 = scmp.ne.s32.totalorder %s73, %s74
      %p86 = scmp.eq.s32.totalorder %s22, 1
      %p87 = por %p85, %p86
      %p89 = scmp.ne.s32.totalorder %s74, %s88
      %p90 = scmp.eq.s32.totalorder %s22, 0
      %p91 = por %p89, %p90
      %s93 = sadd.s32 %s92, 1
      %p96 = scmp.eq.s32.totalorder %s16, 1
      %p97 = scmp.ne.s32.totalorder %s92, %s94
      %p98 = scmp.eq.s32.totalorder %s16, 0
      %p99 = por %p97, %p98
      %p100 = scmp.ne.s32.totalorder %s92, %s94
      %p101 = scmp.eq.s32.totalorder %s21, 1
      %p102 = por %p100, %p101
      %p103 = scmp.ne.s32.totalorder %s94, %s95
      %p104 = scmp.eq.s32.totalorder %s21, 0
      %p105 = por %p103, %p104
      %p106 = scmp.ne.s32.totalorder %s94, %s95
      %p107 = scmp.eq.s32.totalorder %s22, 1
      %p108 = por %p106, %p107
      %p110 = scmp.ne.s32.totalorder %s95, %s109
      %p111 = scmp.eq.s32.totalorder %s22, 0
      %p112 = por %p110, %p111
      %s114 = sadd.s32 %s113, 1
      %p117 = scmp.eq.s32.totalorder %s16, 1
      %p118 = scmp.ne.s32.totalorder %s113, %s115
      %p119 = scmp.eq.s32.totalorder %s16, 0
      %p120 = por %p118, %p119
      %p121 = scmp.ne.s32.totalorder %s113, %s115
      %p122 = scmp.eq.s32.totalorder %s21, 1
      %p123 = por %p121, %p122
      %p124 = scmp.ne.s32.totalorder %s115, %s116
      %p125 = scmp.eq.s32.totalorder %s21, 0
      %p126 = por %p124, %p125
      %p127 = scmp.ne.s32.totalorder %s115, %s116
      %p128 = scmp.eq.s32.totalorder %s22, 1
      %p129 = por %p127, %p128
      %p131 = scmp.ne.s32.totalorder %s116, %s130
      %p132 = scmp.eq.s32.totalorder %s22, 0
      %p133 = por %p131, %p132
      %s135 = sadd.s32 %s134, 1
      %p138 = scmp.eq.s32.totalorder %s16, 1
      %p139 = scmp.ne.s32.totalorder %s134, %s136
      %p140 = scmp.eq.s32.totalorder %s16, 0
      %p141 = por %p139, %p140
      %p142 = scmp.ne.s32.totalorder %s134, %s136
      %p143 = scmp.eq.s32.totalorder %s21, 1
      %p144 = por %p142, %p143
      %p145 = scmp.ne.s32.totalorder %s136, %s137
      %p146 = scmp.eq.s32.totalorder %s21, 0
      %p147 = por %p145, %p146
      %p148 = scmp.ne.s32.totalorder %s136, %s137
      %p149 = scmp.eq.s32.totalorder %s22, 1
      %p150 = por %p148, %p149
      %p152 = scmp.ne.s32.totalorder %s137, %s151
      %p153 = scmp.eq.s32.totalorder %s22, 0
      %p154 = por %p152, %p153
      %s156 = sadd.s32 %s155, 1
      %p159 = scmp.eq.s32.totalorder %s16, 1
      %p160 = scmp.ne.s32.totalorder %s155, %s157
      %p161 = scmp.eq.s32.totalorder %s16, 0
      %p162 = por %p160, %p161
      %p163 = scmp.ne.s32.totalorder %s155, %s157
      %p164 = scmp.eq.s32.totalorder %s21, 1
      %p165 = por %p163, %p164
      %p166 = scmp.ne.s32.totalorder %s157, %s158
      %p167 = scmp.eq.s32.totalorder %s21, 0
      %p168 = por %p166, %p167
      %p169 = scmp.ne.s32.totalorder %s157, %s158
      %p170 = scmp.eq.s32.totalorder %s22, 1
      %p171 = por %p169, %p170
      %p173 = scmp.ne.s32.totalorder %s158, %s172
      %p174 = scmp.eq.s32.totalorder %s22, 0
      %p175 = por %p173, %p174
      %s176 = ssub.s32 %s16, %s23
      %p177 = scmp.eq.s32.totalorder %s176, 0
      %s179 = sadd.s32 %s178, 1
      %s180 = scalar_select %p177, %s178, %s179
      %p183 = pneg %p177
      %p184 = scmp.eq.s32.totalorder %s16, 1
      %p185 = por %p183, %p184
      %p186 = scmp.ne.s32.totalorder %s178, %s181
      %p187 = scmp.eq.s32.totalorder %s16, 0
      %p188 = por %p186, %p187
      %p189 = scmp.ne.s32.totalorder %s178, %s181
      %p190 = scmp.eq.s32.totalorder %s21, 1
      %p191 = por %p189, %p190
      %p192 = scmp.ne.s32.totalorder %s181, %s182
      %p193 = scmp.eq.s32.totalorder %s21, 0
      %p194 = por %p192, %p193
      %p195 = scmp.ne.s32.totalorder %s181, %s182
      %p196 = scmp.eq.s32.totalorder %s22, 1
      %p197 = por %p195, %p196
      %p199 = scmp.ne.s32.totalorder %s182, %s198
      %p200 = scmp.eq.s32.totalorder %s22, 0
      %p201 = por %p199, %p200
      %p202 = scmp.le.s32.totalorder 1, %s16
      %p203 = scmp.lt.s32.totalorder %s16, 3
      %p204 = pnand %p202, %p203
      %p205 = pneg %p204
      // Predicated region
      $region9: #{_lambda_.1} parent=5 // pred_check
        _
      $region10: #{_lambda_.1} parent=5 // pred_check_branch
        %207 = sbr.rel (%p204) target = $region12
      $region11: #{_lambda_.1} parent=5 // pred_region
        %s208 = ssub.s32 %s16, 1
        // Predicated region
        $region13: #{_lambda_.1} parent=11 // pred_check
          %p209 = pneg %p63
        $region14: #{_lambda_.1} parent=11 // pred_check_branch
          %211 = sbr.rel (%p209) target = $region16
        $region15: #{_lambda_.1} parent=11 // pred_region
          _
        $region16: #{_lambda_.1} parent=11 // pred_fallthru
          _
        // Predicated region
        $region17: #{_lambda_.1} parent=11 // pred_check
          %p212 = pneg %p84
        $region18: #{_lambda_.1} parent=11 // pred_check_branch
          %214 = sbr.rel (%p212) target = $region20
        $region19: #{_lambda_.1} parent=11 // pred_region
          _
        $region20: #{_lambda_.1} parent=11 // pred_fallthru
          _
        // Predicated region
        $region21: #{_lambda_.1} parent=11 // pred_check
          %p215 = pneg %p105
        $region22: #{_lambda_.1} parent=11 // pred_check_branch
          %217 = sbr.rel (%p215) target = $region24
        $region23: #{_lambda_.1} parent=11 // pred_region
          _
        $region24: #{_lambda_.1} parent=11 // pred_fallthru
          _
        // Predicated region
        $region25: #{_lambda_.1} parent=11 // pred_check
          %p218 = pneg %p126
        $region26: #{_lambda_.1} parent=11 // pred_check_branch
          %220 = sbr.rel (%p218) target = $region28
        $region27: #{_lambda_.1} parent=11 // pred_region
          _
        $region28: #{_lambda_.1} parent=11 // pred_fallthru
          _
        // Predicated region
        $region29: #{_lambda_.1} parent=11 // pred_check
          %p221 = pneg %p147
        $region30: #{_lambda_.1} parent=11 // pred_check_branch
          %223 = sbr.rel (%p221) target = $region32
        $region31: #{_lambda_.1} parent=11 // pred_region
          _
        $region32: #{_lambda_.1} parent=11 // pred_fallthru
          _
        // Predicated region
        $region33: #{_lambda_.1} parent=11 // pred_check
          %p224 = pneg %p168
        $region34: #{_lambda_.1} parent=11 // pred_check_branch
          %226 = sbr.rel (%p224) target = $region36
        $region35: #{_lambda_.1} parent=11 // pred_region
          _
        $region36: #{_lambda_.1} parent=11 // pred_fallthru
          _
      $region12: #{_lambda_.1} parent=5 // pred_fallthru
        _
      %p227 = scmp.lt.s32.totalorder %s16, 2
      // Predicated region
      $region37: #{_lambda_.1} parent=5 // pred_check
        %p228 = pneg %p227
      $region38: #{_lambda_.1} parent=5 // pred_check_branch
        %230 = sbr.rel (%p228) target = $region40
      $region39: #{_lambda_.1} parent=5 // pred_region
        // Predicated region
        $region41: #{_lambda_.1} parent=39 // pred_check
          %p231 = pneg %p36
        $region42: #{_lambda_.1} parent=39 // pred_check_branch
          %233 = sbr.rel (%p231) target = $region44
        $region43: #{_lambda_.1} parent=39 // pred_region
          %s234 = smul.u32 16, %s16
          %p235 = scmp.lt.s32.totalorder %s234, 31
          %s236 = scalar_select %p235, %s234, 31
          %s237 = smul.addr %s236, 8
          %s238 = scalar_lea.vmem %s0, %s237
          %s239 = smul.u32 16, %s16
        $region44: #{_lambda_.1} parent=39 // pred_fallthru
          _
      $region40: #{_lambda_.1} parent=5 // pred_fallthru
        _
      %p240 = scmp.le.s32.totalorder 1, %s16
      %p241 = scmp.lt.s32.totalorder %s16, 3
      %p242 = pnand %p240, %p241
      %p243 = pneg %p242
      // Predicated region
      $region45: #{_lambda_.1} parent=5 // pred_check
        _
      $region46: #{_lambda_.1} parent=5 // pred_check_branch
        %245 = sbr.rel (%p242) target = $region48
      $region47: #{_lambda_.1} parent=5 // pred_region
        %s246 = ssub.s32 %s16, 1
        %s247 = smul.u32 16, %s21
        %p248 = scmp.lt.s32.totalorder %s247, 31
        %s249 = scalar_select %p248, %s247, 31
        %s250 = smul.addr %s249, 8
        %s251 = scalar_lea.vmem %s0, %s250
        %p252 = pneg %p42
        %p253 = pneg %p39
        %p254 = pneg %p63
        %p255 = pneg %p60
        %p256 = pneg %p84
        %p257 = pneg %p81
        %p258 = pneg %p105
        %p259 = pneg %p102
        %p260 = pneg %p126
        %p261 = pneg %p123
        %p262 = pneg %p147
        %p263 = pneg %p144
        %p264 = pneg %p168
        %p265 = pneg %p165
        %p266 = pneg %p194
        %p267 = pneg %p191
        %s268 = sand.u32 %s181, 1
        %s269 = scalar_lea.sflag [#allocation4], %s268
        %s270 = sand.u32 %s181, 1
        %s271 = smul.addr %s270, 2
        %s272 = scalar_lea.vmem [#allocation3], %s271
        %s273 = smul.u32 16, %s21
        %p274 = scmp.lt.s32.totalorder %s273, 31
        %s275 = scalar_select %p274, %s273, 31
        %s276 = smul.addr %s275, 8
        %s277 = scalar_lea.vmem %s0, %s276
        %s278 = smul.u32 16, %s21
        %vm279 = vcmask 261120
        %280 = vst.msk [vmem:[#allocation2] sm:$0xff] %vm279, 0.0
        %vm281 = vcmask 260096
        %282 = vst.msk [vmem:[#allocation2 + $0x8] sm:$0x7f] %vm281, 0.0
        %283 = vst.msk [vmem:[#allocation2 + $0x10] sm:$0xff] %vm279, 0.0
        %284 = vst.msk [vmem:[#allocation2 + $0x18] sm:$0x7f] %vm281, 0.0
        %v285 = vld [vmem:[%s277] sm:$0xff]
        %v286 = vld [vmem:[%s277 + $0x8] sm:$0xff]
        %v287 = vld [vmem:[%s277 + $0x10] sm:$0xff]
        %v288 = vld [vmem:[%s277 + $0x18] sm:$0xff]
        %v289 = vld [vmem:[%s277 + $0x20] sm:$0xff]
        %v290 = vld [vmem:[%s277 + $0x28] sm:$0xff]
        %v291 = vld [vmem:[%s277 + $0x30] sm:$0xff]
        %v292 = vld [vmem:[%s277 + $0x38] sm:$0xff]
        %v293 = vld [vmem:[%s277 + $0x40] sm:$0xff]
        %v294 = vld [vmem:[%s277 + $0x48] sm:$0xff]
        %v295 = vld [vmem:[%s277 + $0x50] sm:$0xff]
        %v296 = vld [vmem:[%s277 + $0x58] sm:$0xff]
        %v297 = vld [vmem:[%s277 + $0x60] sm:$0xff]
        %v298 = vld [vmem:[%s277 + $0x68] sm:$0xff]
        %v299 = vld [vmem:[%s277 + $0x70] sm:$0xff]
        %v300 = vld [vmem:[%s277 + $0x78] sm:$0xff]
        %v301 = vld [vmem:[%s1] sm:$0xff]
        %v302 = vld [vmem:[%s1 + $0x8] sm:$0x3]
        %vm303 = vcmask 80896
        %v305 = vsel %vm303, %v285, 0
        %v308 = vsel %vm303, %v286, 0
        %v311 = vsel %vm303, %v287, 0
        %v314 = vsel %vm303, %v288, 0
        %v317 = vsel %vm303, %v289, 0
        %v320 = vsel %vm303, %v290, 0
        %v323 = vsel %vm303, %v291, 0
        %v326 = vsel %vm303, %v292, 0
        %v329 = vsel %vm303, %v293, 0
        %v332 = vsel %vm303, %v294, 0
        %v335 = vsel %vm303, %v295, 0
        %v338 = vsel %vm303, %v296, 0
        %v341 = vsel %vm303, %v297, 0
        %v344 = vsel %vm303, %v298, 0
        %v347 = vsel %vm303, %v299, 0
        %v350 = vsel %vm303, %v300, 0
        %vm352 = vcmask 1041408
        %v354 = vsel %vm352, %v302, 0
        %356 = vmatprep.subr.mxu0 0.0
        %357 = vmatpush1.msra.mxu0 %v301
        %358 = vmatprep.subr.mxu0 0.0
        %359 = vmatpush1.msra.mxu0 %v354
        %360 = vmatprep.subr.mxu0 0.0
        %361 = vmatpush1.msra.mxu0 0.0
        %362 = vmatprep.subr.mxu0 0.0
        %363 = vmatpush1.msra.mxu0 0.0
        %364 = vmatprep.subr.mxu0 0.0
        %365 = vmatpush1.msra.mxu0 0.0
        %366 = vmatprep.subr.mxu0 0.0
        %367 = vmatpush1.msra.mxu0 0.0
        %368 = vmatprep.subr.mxu0 0.0
        %369 = vmatpush1.msra.mxu0 0.0
        %370 = vmatprep.subr.mxu0 0.0
        %371 = vmatpush1.msra.mxu0 0.0
        %372 = vmatprep.subr.mxu0 0.0
        %373 = vmatpush1.msra.mxu0 0.0
        %374 = vmatprep.subr.mxu0 0.0
        %375 = vmatpush1.msra.mxu0 0.0
        %376 = vmatprep.subr.mxu0 0.0
        %377 = vmatpush1.msra.mxu0 0.0
        %378 = vmatprep.subr.mxu0 0.0
        %379 = vmatpush1.msra.mxu0 0.0
        %380 = vmatprep.subr.mxu0 0.0
        %381 = vmatpush1.msra.mxu0 0.0
        %382 = vmatprep.subr.mxu0 0.0
        %383 = vmatpush1.msra.mxu0 0.0
        %384 = vmatprep.subr.mxu0 0.0
        %385 = vmatpush1.msra.mxu0 0.0
        %386 = vmatprep.subr.mxu0 0.0
        %387 = vmatpush1.msra.mxu0 0.0
        %388 = vmatprep.subr.mxu0 0.0
        %389 = vmatpush1.msra.mxu0 0.0
        %390 = vmatprep.subr.mxu0 0.0
        %391 = vmatpush1.msra.mxu0 0.0
        %392 = vmatprep.subr.mxu0 0.0
        %393 = vmatpush1.msra.mxu0 0.0
        %394 = vmatprep.subr.mxu0 0.0
        %395 = vmatpush1.msra.mxu0 0.0
        %396 = vmatprep.subr.mxu0 0.0
        %397 = vmatpush1.msra.mxu0 0.0
        %398 = vmatprep.subr.mxu0 0.0
        %399 = vmatpush1.msra.mxu0 0.0
        %400 = vmatprep.subr.mxu0 0.0
        %401 = vmatpush1.msra.mxu0 0.0
        %402 = vmatprep.subr.mxu0 0.0
        %403 = vmatpush1.msra.mxu0 0.0
        %404 = vmatprep.subr.mxu0 0.0
        %405 = vmatpush1.msra.mxu0 0.0
        %406 = vmatprep.subr.mxu0 0.0
        %407 = vmatpush1.msra.mxu0 0.0
        %408 = vmatprep.subr.mxu0 0.0
        %409 = vmatpush1.msra.mxu0 0.0
        %410 = vmatprep.subr.mxu0 0.0
        %411 = vmatpush1.msra.mxu0 0.0
        %412 = vmatprep.subr.mxu0 0.0
        %413 = vmatpush1.msra.mxu0 0.0
        %414 = vmatprep.subr.mxu0 0.0
        %415 = vmatpush1.msra.mxu0 0.0
        %416 = vmatprep.subr.mxu0 0.0
        %417 = vmatpush1.msra.mxu0 0.0
        %418 = vmatprep.subr.mxu0 0.0
        %419 = vmatpush1.msra.mxu0 0.0
        %420 = vmatprep.mubr.f32.mxu0 0.0
        %421 = vmatmul.mubr.f32.gmra.mrb[0].mxu0 %v305
        %v422 = vpop.f32.mrb[0].mxu0
        %v423 = vadd.f32 0.0, %v422
        %v424 = vpop.f32.mrb[0].mxu0
        %425 = vmatprep.mubr.f32.mxu0 0.0
        %426 = vmatmul.mubr.f32.gmra.mrb[0].mxu0 %v308
        %v427 = vpop.f32.mrb[0].mxu0
        %v428 = vadd.f32 0.0, %v427
        %v429 = vpop.f32.mrb[0].mxu0
        %430 = vmatprep.mubr.f32.mxu0 0.0
        %431 = vmatmul.mubr.f32.gmra.mrb[0].mxu0 %v311
        %v432 = vpop.f32.mrb[0].mxu0
        %v433 = vadd.f32 0.0, %v432
        %v434 = vpop.f32.mrb[0].mxu0
        %435 = vmatprep.mubr.f32.mxu0 0.0
        %436 = vmatmul.mubr.f32.gmra.mrb[0].mxu0 %v314
        %v437 = vpop.f32.mrb[0].mxu0
        %v438 = vadd.f32 0.0, %v437
        %v439 = vpop.f32.mrb[0].mxu0
        %440 = vmatprep.mubr.f32.mxu0 0.0
        %441 = vmatmul.mubr.f32.gmra.mrb[0].mxu0 %v317
        %v442 = vpop.f32.mrb[0].mxu0
        %v443 = vadd.f32 0.0, %v442
        %v444 = vpop.f32.mrb[0].mxu0
        %445 = vmatprep.mubr.f32.mxu0 0.0
        %446 = vmatmul.mubr.f32.gmra.mrb[0].mxu0 %v320
        %v447 = vpop.f32.mrb[0].mxu0
        %v448 = vadd.f32 0.0, %v447
        %v449 = vpop.f32.mrb[0].mxu0
        %450 = vmatprep.mubr.f32.mxu0 0.0
        %451 = vmatmul.mubr.f32.gmra.mrb[0].mxu0 %v323
        %v452 = vpop.f32.mrb[0].mxu0
        %v453 = vadd.f32 0.0, %v452
        %v454 = vpop.f32.mrb[0].mxu0
        %455 = vmatprep.mubr.f32.mxu0 0.0
        %456 = vmatmul.mubr.f32.gmra.mrb[0].mxu0 %v326
        %v457 = vpop.f32.mrb[0].mxu0
        %v458 = vadd.f32 0.0, %v457
        %v459 = vpop.f32.mrb[0].mxu0
        %460 = vmatprep.mubr.f32.mxu0 0.0
        %461 = vmatmul.mubr.f32.gmra.mrb[0].mxu0 %v329
        %v462 = vpop.f32.mrb[0].mxu0
        %v463 = vadd.f32 0.0, %v462
        %v464 = vpop.f32.mrb[0].mxu0
        %465 = vmatprep.mubr.f32.mxu0 0.0
        %466 = vmatmul.mubr.f32.gmra.mrb[0].mxu0 %v332
        %v467 = vpop.f32.mrb[0].mxu0
        %v468 = vadd.f32 0.0, %v467
        %v469 = vpop.f32.mrb[0].mxu0
        %470 = vmatprep.mubr.f32.mxu0 0.0
        %471 = vmatmul.mubr.f32.gmra.mrb[0].mxu0 %v335
        %v472 = vpop.f32.mrb[0].mxu0
        %v473 = vadd.f32 0.0, %v472
        %v474 = vpop.f32.mrb[0].mxu0
        %475 = vmatprep.mubr.f32.mxu0 0.0
        %476 = vmatmul.mubr.f32.gmra.mrb[0].mxu0 %v338
        %v477 = vpop.f32.mrb[0].mxu0
        %v478 = vadd.f32 0.0, %v477
        %v479 = vpop.f32.mrb[0].mxu0
        %480 = vmatprep.mubr.f32.mxu0 0.0
        %481 = vmatmul.mubr.f32.gmra.mrb[0].mxu0 %v341
        %v482 = vpop.f32.mrb[0].mxu0
        %v483 = vadd.f32 0.0, %v482
        %v484 = vpop.f32.mrb[0].mxu0
        %485 = vmatprep.mubr.f32.mxu0 0.0
        %486 = vmatmul.mubr.f32.gmra.mrb[0].mxu0 %v344
        %v487 = vpop.f32.mrb[0].mxu0
        %v488 = vadd.f32 0.0, %v487
        %v489 = vpop.f32.mrb[0].mxu0
        %490 = vmatprep.mubr.f32.mxu0 0.0
        %491 = vmatmul.mubr.f32.gmra.mrb[0].mxu0 %v347
        %v492 = vpop.f32.mrb[0].mxu0
        %v493 = vadd.f32 0.0, %v492
        %v494 = vpop.f32.mrb[0].mxu0
        %495 = vmatprep.mubr.f32.mxu0 0.0
        %496 = vmatmul.mubr.f32.gmra.mrb[0].mxu0 %v350
        %v497 = vpop.f32.mrb[0].mxu0
        %v498 = vadd.f32 0.0, %v497
        %v499 = vpop.f32.mrb[0].mxu0
        %500 = vdwg.mxu0
        %v501 = vmax.f32 %v423, 0.0
        %v502 = vmax.f32 %v428, 0.0
        %v503 = vmax.f32 %v433, 0.0
        %v504 = vmax.f32 %v438, 0.0
        %v505 = vmax.f32 %v443, 0.0
        %v506 = vmax.f32 %v448, 0.0
        %v507 = vmax.f32 %v453, 0.0
        %v508 = vmax.f32 %v458, 0.0
        %v509 = vmax.f32 %v463, 0.0
        %v510 = vmax.f32 %v468, 0.0
        %v511 = vmax.f32 %v473, 0.0
        %v512 = vmax.f32 %v478, 0.0
        %v513 = vmax.f32 %v483, 0.0
        %v514 = vmax.f32 %v488, 0.0
        %v515 = vmax.f32 %v493, 0.0
        %v516 = vmax.f32 %v498, 0.0
        %v517 = vsel %vm279, %v501, -inf
        %v518 = vrot.slane %v517, 4
        %v519 = vmax.f32 %v517, %v518
        %v520 = vrot.slane %v519, 2
        %v521 = vmax.f32 %v519, %v520
        %v522 = vrot.slane %v521, 1
        %v523 = vmax.f32 %v521, %v522
        %v524 = vsel %vm279, %v502, -inf
        %v525 = vrot.slane %v524, 4
        %v526 = vmax.f32 %v524, %v525
        %v527 = vrot.slane %v526, 2
        %v528 = vmax.f32 %v526, %v527
        %v529 = vrot.slane %v528, 1
        %v530 = vmax.f32 %v528, %v529
        %v531 = vsel %vm279, %v503, -inf
        %v532 = vrot.slane %v531, 4
        %v533 = vmax.f32 %v531, %v532
        %v534 = vrot.slane %v533, 2
        %v535 = vmax.f32 %v533, %v534
        %v536 = vrot.slane %v535, 1
        %v537 = vmax.f32 %v535, %v536
        %v538 = vsel %vm279, %v504, -inf
        %v539 = vrot.slane %v538, 4
        %v540 = vmax.f32 %v538, %v539
        %v541 = vrot.slane %v540, 2
        %v542 = vmax.f32 %v540, %v541
        %v543 = vrot.slane %v542, 1
        %v544 = vmax.f32 %v542, %v543
        %v545 = vsel %vm279, %v505, -inf
        %v546 = vrot.slane %v545, 4
        %v547 = vmax.f32 %v545, %v546
        %v548 = vrot.slane %v547, 2
        %v549 = vmax.f32 %v547, %v548
        %v550 = vrot.slane %v549, 1
        %v551 = vmax.f32 %v549, %v550
        %v552 = vsel %vm279, %v506, -inf
        %v553 = vrot.slane %v552, 4
        %v554 = vmax.f32 %v552, %v553
        %v555 = vrot.slane %v554, 2
        %v556 = vmax.f32 %v554, %v555
        %v557 = vrot.slane %v556, 1
        %v558 = vmax.f32 %v556, %v557
        %v559 = vsel %vm279, %v507, -inf
        %v560 = vrot.slane %v559, 4
        %v561 = vmax.f32 %v559, %v560
        %v562 = vrot.slane %v561, 2
        %v563 = vmax.f32 %v561, %v562
        %v564 = vrot.slane %v563, 1
        %v565 = vmax.f32 %v563, %v564
        %v566 = vsel %vm279, %v508, -inf
        %v567 = vrot.slane %v566, 4
        %v568 = vmax.f32 %v566, %v567
        %v569 = vrot.slane %v568, 2
        %v570 = vmax.f32 %v568, %v569
        %v571 = vrot.slane %v570, 1
        %v572 = vmax.f32 %v570, %v571
        %v573 = vsel %vm279, %v509, -inf
        %v574 = vrot.slane %v573, 4
        %v575 = vmax.f32 %v573, %v574
        %v576 = vrot.slane %v575, 2
        %v577 = vmax.f32 %v575, %v576
        %v578 = vrot.slane %v577, 1
        %v579 = vmax.f32 %v577, %v578
        %v580 = vsel %vm279, %v510, -inf
        %v581 = vrot.slane %v580, 4
        %v582 = vmax.f32 %v580, %v581
        %v583 = vrot.slane %v582, 2
        %v584 = vmax.f32 %v582, %v583
        %v585 = vrot.slane %v584, 1
        %v586 = vmax.f32 %v584, %v585
        %v587 = vsel %vm279, %v511, -inf
        %v588 = vrot.slane %v587, 4
        %v589 = vmax.f32 %v587, %v588
        %v590 = vrot.slane %v589, 2
        %v591 = vmax.f32 %v589, %v590
        %v592 = vrot.slane %v591, 1
        %v593 = vmax.f32 %v591, %v592
        %v594 = vsel %vm279, %v512, -inf
        %v595 = vrot.slane %v594, 4
        %v596 = vmax.f32 %v594, %v595
        %v597 = vrot.slane %v596, 2
        %v598 = vmax.f32 %v596, %v597
        %v599 = vrot.slane %v598, 1
        %v600 = vmax.f32 %v598, %v599
        %v601 = vsel %vm279, %v513, -inf
        %v602 = vrot.slane %v601, 4
        %v603 = vmax.f32 %v601, %v602
        %v604 = vrot.slane %v603, 2
        %v605 = vmax.f32 %v603, %v604
        %v606 = vrot.slane %v605, 1
        %v607 = vmax.f32 %v605, %v606
        %v608 = vsel %vm279, %v514, -inf
        %v609 = vrot.slane %v608, 4
        %v610 = vmax.f32 %v608, %v609
        %v611 = vrot.slane %v610, 2
        %v612 = vmax.f32 %v610, %v611
        %v613 = vrot.slane %v612, 1
        %v614 = vmax.f32 %v612, %v613
        %v615 = vsel %vm279, %v515, -inf
        %v616 = vrot.slane %v615, 4
        %v617 = vmax.f32 %v615, %v616
        %v618 = vrot.slane %v617, 2
        %v619 = vmax.f32 %v617, %v618
        %v620 = vrot.slane %v619, 1
        %v621 = vmax.f32 %v619, %v620
        %v622 = vsel %vm279, %v516, -inf
        %v623 = vrot.slane %v622, 4
        %v624 = vmax.f32 %v622, %v623
        %v625 = vrot.slane %v624, 2
        %v626 = vmax.f32 %v624, %v625
        %v627 = vrot.slane %v626, 1
        %v628 = vmax.f32 %v626, %v627
        %vm645 = vcmask 1041409
        %v646 = vsel %vm645, %v530, %v523
        %vm647 = vcmask 1042434
        %v648 = vsel %vm647, %v537, %v646
        %vm649 = vcmask 1043459
        %v650 = vsel %vm649, %v544, %v648
        %vm651 = vcmask 1044484
        %v652 = vsel %vm651, %v551, %v650
        %vm653 = vcmask 1045509
        %v654 = vsel %vm653, %v558, %v652
        %vm655 = vcmask 1046534
        %v656 = vsel %vm655, %v565, %v654
        %vm657 = vcmask 1047559
        %v658 = vsel %vm657, %v572, %v656
        %v659 = vsel %vm645, %v586, %v579
        %v660 = vsel %vm647, %v593, %v659
        %v661 = vsel %vm649, %v600, %v660
        %v662 = vsel %vm651, %v607, %v661
        %v663 = vsel %vm653, %v614, %v662
        %v664 = vsel %vm655, %v621, %v663
        %v665 = vsel %vm657, %v628, %v664
        %668 = vst.msk [vmem:[#allocation2 + $0x3] sm:$0xff] %vm279, %v658
        %669 = vst.msk [vmem:[#allocation2 + $0x13] sm:$0xff] %vm279, %v665
        %v670 = vld [vmem:[#allocation2] sm:$0xff]
        %v671 = vld [vmem:[#allocation2 + $0x10] sm:$0xff]
        %v672 = vld [vmem:[%s2] sm:$0xff]
        %v673 = vld [vmem:[%s2 + $0x8] sm:$0xff]
        %v674 = vld [vmem:[%s2 + $0x10] sm:$0xff]
        %v675 = vld [vmem:[%s2 + $0x18] sm:$0xff]
        %v676 = vld [vmem:[#allocation2 + $0x1] sm:$0xff]
        %v677 = vld [vmem:[#allocation2 + $0x11] sm:$0xff]
        %s678 = scalar_lea.vmem %s2, 32
        %v679 = vld [vmem:[%s678] sm:$0xff]
        %v680 = vld [vmem:[%s678 + $0x8] sm:$0xff]
        %v681 = vld [vmem:[%s678 + $0x10] sm:$0xff]
        %v682 = vld [vmem:[%s678 + $0x18] sm:$0xff]
        %v684 = vsel %vm279, %v676, 0
        %v687 = vsel %vm279, %v677, 0
        %689 = vmatprep.subr.mxu0 0.0
        %690 = vmatpush1.msra.mxu0 %v679
        %691 = vmatprep.subr.mxu0 0.0
        %692 = vmatpush1.msra.mxu0 %v680
        %693 = vmatprep.subr.mxu0 0.0
        %694 = vmatpush1.msra.mxu0 %v681
        %695 = vmatprep.subr.mxu0 0.0
        %696 = vmatpush1.msra.mxu0 %v682
        %697 = vmatprep.subr.mxu0 0.0
        %698 = vmatpush1.msra.mxu0 0.0
        %699 = vmatprep.subr.mxu0 0.0
        %700 = vmatpush1.msra.mxu0 0.0
        %701 = vmatprep.subr.mxu0 0.0
        %702 = vmatpush1.msra.mxu0 0.0
        %703 = vmatprep.subr.mxu0 0.0
        %704 = vmatpush1.msra.mxu0 0.0
        %705 = vmatprep.subr.mxu0 0.0
        %706 = vmatpush1.msra.mxu0 0.0
        %707 = vmatprep.subr.mxu0 0.0
        %708 = vmatpush1.msra.mxu0 0.0
        %709 = vmatprep.subr.mxu0 0.0
        %710 = vmatpush1.msra.mxu0 0.0
        %711 = vmatprep.subr.mxu0 0.0
        %712 = vmatpush1.msra.mxu0 0.0
        %713 = vmatprep.subr.mxu0 0.0
        %714 = vmatpush1.msra.mxu0 0.0
        %715 = vmatprep.subr.mxu0 0.0
        %716 = vmatpush1.msra.mxu0 0.0
        %717 = vmatprep.subr.mxu0 0.0
        %718 = vmatpush1.msra.mxu0 0.0
        %719 = vmatprep.subr.mxu0 0.0
        %720 = vmatpush1.msra.mxu0 0.0
        %721 = vmatprep.subr.mxu0 0.0
        %722 = vmatpush1.msra.mxu0 0.0
        %723 = vmatprep.subr.mxu0 0.0
        %724 = vmatpush1.msra.mxu0 0.0
        %725 = vmatprep.subr.mxu0 0.0
        %726 = vmatpush1.msra.mxu0 0.0
        %727 = vmatprep.subr.mxu0 0.0
        %728 = vmatpush1.msra.mxu0 0.0
        %729 = vmatprep.subr.mxu0 0.0
        %730 = vmatpush1.msra.mxu0 0.0
        %731 = vmatprep.subr.mxu0 0.0
        %732 = vmatpush1.msra.mxu0 0.0
        %733 = vmatprep.subr.mxu0 0.0
        %734 = vmatpush1.msra.mxu0 0.0
        %735 = vmatprep.subr.mxu0 0.0
        %736 = vmatpush1.msra.mxu0 0.0
        %737 = vmatprep.subr.mxu0 0.0
        %738 = vmatpush1.msra.mxu0 0.0
        %739 = vmatprep.subr.mxu0 0.0
        %740 = vmatpush1.msra.mxu0 0.0
        %741 = vmatprep.subr.mxu0 0.0
        %742 = vmatpush1.msra.mxu0 0.0
        %743 = vmatprep.subr.mxu0 0.0
        %744 = vmatpush1.msra.mxu0 0.0
        %745 = vmatprep.subr.mxu0 0.0
        %746 = vmatpush1.msra.mxu0 0.0
        %747 = vmatprep.subr.mxu0 0.0
        %748 = vmatpush1.msra.mxu0 0.0
        %749 = vmatprep.subr.mxu0 0.0
        %750 = vmatpush1.msra.mxu0 0.0
        %751 = vmatprep.subr.mxu0 0.0
        %752 = vmatpush1.msra.mxu0 0.0
        %753 = vmatprep.mubr.f32.mxu0 0.0
        %754 = vmatmul.mubr.f32.gmra.mrb[0].mxu0 %v684
        %v755 = vpop.f32.mrb[0].mxu0
        %v756 = vadd.f32 0.0, %v755
        %v757 = vpop.f32.mrb[0].mxu0
        %758 = vmatprep.mubr.f32.mxu0 0.0
        %759 = vmatmul.mubr.f32.gmra.mrb[0].mxu0 %v687
        %v760 = vpop.f32.mrb[0].mxu0
        %v761 = vadd.f32 0.0, %v760
        %v762 = vpop.f32.mrb[0].mxu0
        %763 = vdwg.mxu0
        %v765 = vsel %vm279, %v670, 0
        %v768 = vsel %vm279, %v671, 0
        %770 = vmatprep.subr.mxu0 0.0
        %771 = vmatpush1.msra.mxu0 %v672
        %772 = vmatprep.subr.mxu0 0.0
        %773 = vmatpush1.msra.mxu0 %v673
        %774 = vmatprep.subr.mxu0 0.0
        %775 = vmatpush1.msra.mxu0 %v674
        %776 = vmatprep.subr.mxu0 0.0
        %777 = vmatpush1.msra.mxu0 %v675
        %778 = vmatprep.subr.mxu0 0.0
        %779 = vmatpush1.msra.mxu0 0.0
        %780 = vmatprep.subr.mxu0 0.0
        %781 = vmatpush1.msra.mxu0 0.0
        %782 = vmatprep.subr.mxu0 0.0
        %783 = vmatpush1.msra.mxu0 0.0
        %784 = vmatprep.subr.mxu0 0.0
        %785 = vmatpush1.msra.mxu0 0.0
        %786 = vmatprep.subr.mxu0 0.0
        %787 = vmatpush1.msra.mxu0 0.0
        %788 = vmatprep.subr.mxu0 0.0
        %789 = vmatpush1.msra.mxu0 0.0
        %790 = vmatprep.subr.mxu0 0.0
        %791 = vmatpush1.msra.mxu0 0.0
        %792 = vmatprep.subr.mxu0 0.0
        %793 = vmatpush1.msra.mxu0 0.0
        %794 = vmatprep.subr.mxu0 0.0
        %795 = vmatpush1.msra.mxu0 0.0
        %796 = vmatprep.subr.mxu0 0.0
        %797 = vmatpush1.msra.mxu0 0.0
        %798 = vmatprep.subr.mxu0 0.0
        %799 = vmatpush1.msra.mxu0 0.0
        %800 = vmatprep.subr.mxu0 0.0
        %801 = vmatpush1.msra.mxu0 0.0
        %802 = vmatprep.subr.mxu0 0.0
        %803 = vmatpush1.msra.mxu0 0.0
        %804 = vmatprep.subr.mxu0 0.0
        %805 = vmatpush1.msra.mxu0 0.0
        %806 = vmatprep.subr.mxu0 0.0
        %807 = vmatpush1.msra.mxu0 0.0
        %808 = vmatprep.subr.mxu0 0.0
        %809 = vmatpush1.msra.mxu0 0.0
        %810 = vmatprep.subr.mxu0 0.0
        %811 = vmatpush1.msra.mxu0 0.0
        %812 = vmatprep.subr.mxu0 0.0
        %813 = vmatpush1.msra.mxu0 0.0
        %814 = vmatprep.subr.mxu0 0.0
        %815 = vmatpush1.msra.mxu0 0.0
        %816 = vmatprep.subr.mxu0 0.0
        %817 = vmatpush1.msra.mxu0 0.0
        %818 = vmatprep.subr.mxu0 0.0
        %819 = vmatpush1.msra.mxu0 0.0
        %820 = vmatprep.subr.mxu0 0.0
        %821 = vmatpush1.msra.mxu0 0.0
        %822 = vmatprep.subr.mxu0 0.0
        %823 = vmatpush1.msra.mxu0 0.0
        %824 = vmatprep.subr.mxu0 0.0
        %825 = vmatpush1.msra.mxu0 0.0
        %826 = vmatprep.subr.mxu0 0.0
        %827 = vmatpush1.msra.mxu0 0.0
        %828 = vmatprep.subr.mxu0 0.0
        %829 = vmatpush1.msra.mxu0 0.0
        %830 = vmatprep.subr.mxu0 0.0
        %831 = vmatpush1.msra.mxu0 0.0
        %832 = vmatprep.subr.mxu0 0.0
        %833 = vmatpush1.msra.mxu0 0.0
        %834 = vmatprep.mubr.f32.mxu0 0.0
        %835 = vmatmul.mubr.f32.gmra.mrb[0].mxu0 %v765
        %v836 = vpop.f32.mrb[0].mxu0
        %v837 = vadd.f32 %v756, %v836
        %v838 = vpop.f32.mrb[0].mxu0
        %839 = vmatprep.mubr.f32.mxu0 0.0
        %840 = vmatmul.mubr.f32.gmra.mrb[0].mxu0 %v768
        %v841 = vpop.f32.mrb[0].mxu0
        %v842 = vadd.f32 %v761, %v841
        %v843 = vpop.f32.mrb[0].mxu0
        %844 = vdwg.mxu0
        %v845 = vld [vmem:[#allocation2 + $0x2] sm:$0xff]
        %v846 = vld [vmem:[#allocation2 + $0x12] sm:$0xff]
        %s847 = scalar_lea.vmem %s2, 64
        %v848 = vld [vmem:[%s847] sm:$0xff]
        %v849 = vld [vmem:[%s847 + $0x8] sm:$0xff]
        %v850 = vld [vmem:[%s847 + $0x10] sm:$0xff]
        %v851 = vld [vmem:[%s847 + $0x18] sm:$0xff]
        %v853 = vsel %vm279, %v845, 0
        %v856 = vsel %vm279, %v846, 0
        %858 = vmatprep.subr.mxu0 0.0
        %859 = vmatpush1.msra.mxu0 %v848
        %860 = vmatprep.subr.mxu0 0.0
        %861 = vmatpush1.msra.mxu0 %v849
        %862 = vmatprep.subr.mxu0 0.0
        %863 = vmatpush1.msra.mxu0 %v850
        %864 = vmatprep.subr.mxu0 0.0
        %865 = vmatpush1.msra.mxu0 %v851
        %866 = vmatprep.subr.mxu0 0.0
        %867 = vmatpush1.msra.mxu0 0.0
        %868 = vmatprep.subr.mxu0 0.0
        %869 = vmatpush1.msra.mxu0 0.0
        %870 = vmatprep.subr.mxu0 0.0
        %871 = vmatpush1.msra.mxu0 0.0
        %872 = vmatprep.subr.mxu0 0.0
        %873 = vmatpush1.msra.mxu0 0.0
        %874 = vmatprep.subr.mxu0 0.0
        %875 = vmatpush1.msra.mxu0 0.0
        %876 = vmatprep.subr.mxu0 0.0
        %877 = vmatpush1.msra.mxu0 0.0
        %878 = vmatprep.subr.mxu0 0.0
        %879 = vmatpush1.msra.mxu0 0.0
        %880 = vmatprep.subr.mxu0 0.0
        %881 = vmatpush1.msra.mxu0 0.0
        %882 = vmatprep.subr.mxu0 0.0
        %883 = vmatpush1.msra.mxu0 0.0
        %884 = vmatprep.subr.mxu0 0.0
        %885 = vmatpush1.msra.mxu0 0.0
        %886 = vmatprep.subr.mxu0 0.0
        %887 = vmatpush1.msra.mxu0 0.0
        %888 = vmatprep.subr.mxu0 0.0
        %889 = vmatpush1.msra.mxu0 0.0
        %890 = vmatprep.subr.mxu0 0.0
        %891 = vmatpush1.msra.mxu0 0.0
        %892 = vmatprep.subr.mxu0 0.0
        %893 = vmatpush1.msra.mxu0 0.0
        %894 = vmatprep.subr.mxu0 0.0
        %895 = vmatpush1.msra.mxu0 0.0
        %896 = vmatprep.subr.mxu0 0.0
        %897 = vmatpush1.msra.mxu0 0.0
        %898 = vmatprep.subr.mxu0 0.0
        %899 = vmatpush1.msra.mxu0 0.0
        %900 = vmatprep.subr.mxu0 0.0
        %901 = vmatpush1.msra.mxu0 0.0
        %902 = vmatprep.subr.mxu0 0.0
        %903 = vmatpush1.msra.mxu0 0.0
        %904 = vmatprep.subr.mxu0 0.0
        %905 = vmatpush1.msra.mxu0 0.0
        %906 = vmatprep.subr.mxu0 0.0
        %907 = vmatpush1.msra.mxu0 0.0
        %908 = vmatprep.subr.mxu0 0.0
        %909 = vmatpush1.msra.mxu0 0.0
        %910 = vmatprep.subr.mxu0 0.0
        %911 = vmatpush1.msra.mxu0 0.0
        %912 = vmatprep.subr.mxu0 0.0
        %913 = vmatpush1.msra.mxu0 0.0
        %914 = vmatprep.subr.mxu0 0.0
        %915 = vmatpush1.msra.mxu0 0.0
        %916 = vmatprep.subr.mxu0 0.0
        %917 = vmatpush1.msra.mxu0 0.0
        %918 = vmatprep.subr.mxu0 0.0
        %919 = vmatpush1.msra.mxu0 0.0
        %920 = vmatprep.subr.mxu0 0.0
        %921 = vmatpush1.msra.mxu0 0.0
        %922 = vmatprep.mubr.f32.mxu0 0.0
        %923 = vmatmul.mubr.f32.gmra.mrb[0].mxu0 %v853
        %v924 = vpop.f32.mrb[0].mxu0
        %v925 = vadd.f32 0.0, %v924
        %v926 = vpop.f32.mrb[0].mxu0
        %927 = vmatprep.mubr.f32.mxu0 0.0
        %928 = vmatmul.mubr.f32.gmra.mrb[0].mxu0 %v856
        %v929 = vpop.f32.mrb[0].mxu0
        %v930 = vadd.f32 0.0, %v929
        %v931 = vpop.f32.mrb[0].mxu0
        %932 = vdwg.mxu0
        %v933 = vadd.f32 %v837, %v925
        %v934 = vadd.f32 %v842, %v930
        %v935 = vld [vmem:[#allocation2 + $0x3] sm:$0xff]
        %v936 = vld [vmem:[#allocation2 + $0x13] sm:$0xff]
        %s937 = scalar_lea.vmem %s2, 96
        %v938 = vld [vmem:[%s937] sm:$0xff]
        %v939 = vld [vmem:[%s937 + $0x8] sm:$0xff]
        %v940 = vld [vmem:[%s937 + $0x10] sm:$0xff]
        %v941 = vld [vmem:[%s937 + $0x18] sm:$0xff]
        %v943 = vsel %vm279, %v935, 0
        %v946 = vsel %vm279, %v936, 0
        %948 = vmatprep.subr.mxu0 0.0
        %949 = vmatpush1.msra.mxu0 %v938
        %950 = vmatprep.subr.mxu0 0.0
        %951 = vmatpush1.msra.mxu0 %v939
        %952 = vmatprep.subr.mxu0 0.0
        %953 = vmatpush1.msra.mxu0 %v940
        %954 = vmatprep.subr.mxu0 0.0
        %955 = vmatpush1.msra.mxu0 %v941
        %956 = vmatprep.subr.mxu0 0.0
        %957 = vmatpush1.msra.mxu0 0.0
        %958 = vmatprep.subr.mxu0 0.0
        %959 = vmatpush1.msra.mxu0 0.0
        %960 = vmatprep.subr.mxu0 0.0
        %961 = vmatpush1.msra.mxu0 0.0
        %962 = vmatprep.subr.mxu0 0.0
        %963 = vmatpush1.msra.mxu0 0.0
        %964 = vmatprep.subr.mxu0 0.0
        %965 = vmatpush1.msra.mxu0 0.0
        %966 = vmatprep.subr.mxu0 0.0
        %967 = vmatpush1.msra.mxu0 0.0
        %968 = vmatprep.subr.mxu0 0.0
        %969 = vmatpush1.msra.mxu0 0.0
        %970 = vmatprep.subr.mxu0 0.0
        %971 = vmatpush1.msra.mxu0 0.0
        %972 = vmatprep.subr.mxu0 0.0
        %973 = vmatpush1.msra.mxu0 0.0
        %974 = vmatprep.subr.mxu0 0.0
        %975 = vmatpush1.msra.mxu0 0.0
        %976 = vmatprep.subr.mxu0 0.0
        %977 = vmatpush1.msra.mxu0 0.0
        %978 = vmatprep.subr.mxu0 0.0
        %979 = vmatpush1.msra.mxu0 0.0
        %980 = vmatprep.subr.mxu0 0.0
        %981 = vmatpush1.msra.mxu0 0.0
        %982 = vmatprep.subr.mxu0 0.0
        %983 = vmatpush1.msra.mxu0 0.0
        %984 = vmatprep.subr.mxu0 0.0
        %985 = vmatpush1.msra.mxu0 0.0
        %986 = vmatprep.subr.mxu0 0.0
        %987 = vmatpush1.msra.mxu0 0.0
        %988 = vmatprep.subr.mxu0 0.0
        %989 = vmatpush1.msra.mxu0 0.0
        %990 = vmatprep.subr.mxu0 0.0
        %991 = vmatpush1.msra.mxu0 0.0
        %992 = vmatprep.subr.mxu0 0.0
        %993 = vmatpush1.msra.mxu0 0.0
        %994 = vmatprep.subr.mxu0 0.0
        %995 = vmatpush1.msra.mxu0 0.0
        %996 = vmatprep.subr.mxu0 0.0
        %997 = vmatpush1.msra.mxu0 0.0
        %998 = vmatprep.subr.mxu0 0.0
        %999 = vmatpush1.msra.mxu0 0.0
        %1000 = vmatprep.subr.mxu0 0.0
        %1001 = vmatpush1.msra.mxu0 0.0
        %1002 = vmatprep.subr.mxu0 0.0
        %1003 = vmatpush1.msra.mxu0 0.0
        %1004 = vmatprep.subr.mxu0 0.0
        %1005 = vmatpush1.msra.mxu0 0.0
        %1006 = vmatprep.subr.mxu0 0.0
        %1007 = vmatpush1.msra.mxu0 0.0
        %1008 = vmatprep.subr.mxu0 0.0
        %1009 = vmatpush1.msra.mxu0 0.0
        %1010 = vmatprep.subr.mxu0 0.0
        %1011 = vmatpush1.msra.mxu0 0.0
        %1012 = vmatprep.mubr.f32.mxu0 0.0
        %1013 = vmatmul.mubr.f32.gmra.mrb[0].mxu0 %v943
        %v1014 = vpop.f32.mrb[0].mxu0
        %v1015 = vadd.f32 0.0, %v1014
        %v1016 = vpop.f32.mrb[0].mxu0
        %1017 = vmatprep.mubr.f32.mxu0 0.0
        %1018 = vmatmul.mubr.f32.gmra.mrb[0].mxu0 %v946
        %v1019 = vpop.f32.mrb[0].mxu0
        %v1020 = vadd.f32 0.0, %v1019
        %v1021 = vpop.f32.mrb[0].mxu0
        %1022 = vdwg.mxu0
        %v1023 = vadd.f32 %v933, %v1015
        %v1024 = vadd.f32 %v934, %v1020
        %v1025 = vld [vmem:[#allocation2 + $0x4] sm:$0xff]
        %v1026 = vld [vmem:[#allocation2 + $0x14] sm:$0xff]
        %s1027 = scalar_lea.vmem %s2, 128
        %v1028 = vld [vmem:[%s1027] sm:$0xff]
        %v1029 = vld [vmem:[%s1027 + $0x8] sm:$0xff]
        %v1030 = vld [vmem:[%s1027 + $0x10] sm:$0xff]
        %v1031 = vld [vmem:[%s1027 + $0x18] sm:$0xff]
        %v1033 = vsel %vm279, %v1025, 0
        %v1036 = vsel %vm279, %v1026, 0
        %1038 = vmatprep.subr.mxu0 0.0
        %1039 = vmatpush1.msra.mxu0 %v1028
        %1040 = vmatprep.subr.mxu0 0.0
        %1041 = vmatpush1.msra.mxu0 %v1029
        %1042 = vmatprep.subr.mxu0 0.0
        %1043 = vmatpush1.msra.mxu0 %v1030
        %1044 = vmatprep.subr.mxu0 0.0
        %1045 = vmatpush1.msra.mxu0 %v1031
        %1046 = vmatprep.subr.mxu0 0.0
        %1047 = vmatpush1.msra.mxu0 0.0
        %1048 = vmatprep.subr.mxu0 0.0
        %1049 = vmatpush1.msra.mxu0 0.0
        %1050 = vmatprep.subr.mxu0 0.0
        %1051 = vmatpush1.msra.mxu0 0.0
        %1052 = vmatprep.subr.mxu0 0.0
        %1053 = vmatpush1.msra.mxu0 0.0
        %1054 = vmatprep.subr.mxu0 0.0
        %1055 = vmatpush1.msra.mxu0 0.0
        %1056 = vmatprep.subr.mxu0 0.0
        %1057 = vmatpush1.msra.mxu0 0.0
        %1058 = vmatprep.subr.mxu0 0.0
        %1059 = vmatpush1.msra.mxu0 0.0
        %1060 = vmatprep.subr.mxu0 0.0
        %1061 = vmatpush1.msra.mxu0 0.0
        %1062 = vmatprep.subr.mxu0 0.0
        %1063 = vmatpush1.msra.mxu0 0.0
        %1064 = vmatprep.subr.mxu0 0.0
        %1065 = vmatpush1.msra.mxu0 0.0
        %1066 = vmatprep.subr.mxu0 0.0
        %1067 = vmatpush1.msra.mxu0 0.0
        %1068 = vmatprep.subr.mxu0 0.0
        %1069 = vmatpush1.msra.mxu0 0.0
        %1070 = vmatprep.subr.mxu0 0.0
        %1071 = vmatpush1.msra.mxu0 0.0
        %1072 = vmatprep.subr.mxu0 0.0
        %1073 = vmatpush1.msra.mxu0 0.0
        %1074 = vmatprep.subr.mxu0 0.0
        %1075 = vmatpush1.msra.mxu0 0.0
        %1076 = vmatprep.subr.mxu0 0.0
        %1077 = vmatpush1.msra.mxu0 0.0
        %1078 = vmatprep.subr.mxu0 0.0
        %1079 = vmatpush1.msra.mxu0 0.0
        %1080 = vmatprep.subr.mxu0 0.0
        %1081 = vmatpush1.msra.mxu0 0.0
        %1082 = vmatprep.subr.mxu0 0.0
        %1083 = vmatpush1.msra.mxu0 0.0
        %1084 = vmatprep.subr.mxu0 0.0
        %1085 = vmatpush1.msra.mxu0 0.0
        %1086 = vmatprep.subr.mxu0 0.0
        %1087 = vmatpush1.msra.mxu0 0.0
        %1088 = vmatprep.subr.mxu0 0.0
        %1089 = vmatpush1.msra.mxu0 0.0
        %1090 = vmatprep.subr.mxu0 0.0
        %1091 = vmatpush1.msra.mxu0 0.0
        %1092 = vmatprep.subr.mxu0 0.0
        %1093 = vmatpush1.msra.mxu0 0.0
        %1094 = vmatprep.subr.mxu0 0.0
        %1095 = vmatpush1.msra.mxu0 0.0
        %1096 = vmatprep.subr.mxu0 0.0
        %1097 = vmatpush1.msra.mxu0 0.0
        %1098 = vmatprep.subr.mxu0 0.0
        %1099 = vmatpush1.msra.mxu0 0.0
        %1100 = vmatprep.subr.mxu0 0.0
        %1101 = vmatpush1.msra.mxu0 0.0
        %1102 = vmatprep.mubr.f32.mxu0 0.0
        %1103 = vmatmul.mubr.f32.gmra.mrb[0].mxu0 %v1033
        %v1104 = vpop.f32.mrb[0].mxu0
        %v1105 = vadd.f32 0.0, %v1104
        %v1106 = vpop.f32.mrb[0].mxu0
        %1107 = vmatprep.mubr.f32.mxu0 0.0
        %1108 = vmatmul.mubr.f32.gmra.mrb[0].mxu0 %v1036
        %v1109 = vpop.f32.mrb[0].mxu0
        %v1110 = vadd.f32 0.0, %v1109
        %v1111 = vpop.f32.mrb[0].mxu0
        %1112 = vdwg.mxu0
        %v1113 = vadd.f32 %v1023, %v1105
        %v1114 = vadd.f32 %v1024, %v1110
        %v1115 = vld [vmem:[#allocation2 + $0x5] sm:$0xff]
        %v1116 = vld [vmem:[#allocation2 + $0x15] sm:$0xff]
        %s1117 = scalar_lea.vmem %s2, 160
        %v1118 = vld [vmem:[%s1117] sm:$0xff]
        %v1119 = vld [vmem:[%s1117 + $0x8] sm:$0xff]
        %v1120 = vld [vmem:[%s1117 + $0x10] sm:$0xff]
        %v1121 = vld [vmem:[%s1117 + $0x18] sm:$0xff]
        %v1123 = vsel %vm279, %v1115, 0
        %v1126 = vsel %vm279, %v1116, 0
        %1128 = vmatprep.subr.mxu0 0.0
        %1129 = vmatpush1.msra.mxu0 %v1118
        %1130 = vmatprep.subr.mxu0 0.0
        %1131 = vmatpush1.msra.mxu0 %v1119
        %1132 = vmatprep.subr.mxu0 0.0
        %1133 = vmatpush1.msra.mxu0 %v1120
        %1134 = vmatprep.subr.mxu0 0.0
        %1135 = vmatpush1.msra.mxu0 %v1121
        %1136 = vmatprep.subr.mxu0 0.0
        %1137 = vmatpush1.msra.mxu0 0.0
        %1138 = vmatprep.subr.mxu0 0.0
        %1139 = vmatpush1.msra.mxu0 0.0
        %1140 = vmatprep.subr.mxu0 0.0
        %1141 = vmatpush1.msra.mxu0 0.0
        %1142 = vmatprep.subr.mxu0 0.0
        %1143 = vmatpush1.msra.mxu0 0.0
        %1144 = vmatprep.subr.mxu0 0.0
        %1145 = vmatpush1.msra.mxu0 0.0
        %1146 = vmatprep.subr.mxu0 0.0
        %1147 = vmatpush1.msra.mxu0 0.0
        %1148 = vmatprep.subr.mxu0 0.0
        %1149 = vmatpush1.msra.mxu0 0.0
        %1150 = vmatprep.subr.mxu0 0.0
        %1151 = vmatpush1.msra.mxu0 0.0
        %1152 = vmatprep.subr.mxu0 0.0
        %1153 = vmatpush1.msra.mxu0 0.0
        %1154 = vmatprep.subr.mxu0 0.0
        %1155 = vmatpush1.msra.mxu0 0.0
        %1156 = vmatprep.subr.mxu0 0.0
        %1157 = vmatpush1.msra.mxu0 0.0
        %1158 = vmatprep.subr.mxu0 0.0
        %1159 = vmatpush1.msra.mxu0 0.0
        %1160 = vmatprep.subr.mxu0 0.0
        %1161 = vmatpush1.msra.mxu0 0.0
        %1162 = vmatprep.subr.mxu0 0.0
        %1163 = vmatpush1.msra.mxu0 0.0
        %1164 = vmatprep.subr.mxu0 0.0
        %1165 = vmatpush1.msra.mxu0 0.0
        %1166 = vmatprep.subr.mxu0 0.0
        %1167 = vmatpush1.msra.mxu0 0.0
        %1168 = vmatprep.subr.mxu0 0.0
        %1169 = vmatpush1.msra.mxu0 0.0
        %1170 = vmatprep.subr.mxu0 0.0
        %1171 = vmatpush1.msra.mxu0 0.0
        %1172 = vmatprep.subr.mxu0 0.0
        %1173 = vmatpush1.msra.mxu0 0.0
        %1174 = vmatprep.subr.mxu0 0.0
        %1175 = vmatpush1.msra.mxu0 0.0
        %1176 = vmatprep.subr.mxu0 0.0
        %1177 = vmatpush1.msra.mxu0 0.0
        %1178 = vmatprep.subr.mxu0 0.0
        %1179 = vmatpush1.msra.mxu0 0.0
        %1180 = vmatprep.subr.mxu0 0.0
        %1181 = vmatpush1.msra.mxu0 0.0
        %1182 = vmatprep.subr.mxu0 0.0
        %1183 = vmatpush1.msra.mxu0 0.0
        %1184 = vmatprep.subr.mxu0 0.0
        %1185 = vmatpush1.msra.mxu0 0.0
        %1186 = vmatprep.subr.mxu0 0.0
        %1187 = vmatpush1.msra.mxu0 0.0
        %1188 = vmatprep.subr.mxu0 0.0
        %1189 = vmatpush1.msra.mxu0 0.0
        %1190 = vmatprep.subr.mxu0 0.0
        %1191 = vmatpush1.msra.mxu0 0.0
        %1192 = vmatprep.mubr.f32.mxu0 0.0
        %1193 = vmatmul.mubr.f32.gmra.mrb[0].mxu0 %v1123
        %v1194 = vpop.f32.mrb[0].mxu0
        %v1195 = vadd.f32 0.0, %v1194
        %v1196 = vpop.f32.mrb[0].mxu0
        %1197 = vmatprep.mubr.f32.mxu0 0.0
        %1198 = vmatmul.mubr.f32.gmra.mrb[0].mxu0 %v1126
        %v1199 = vpop.f32.mrb[0].mxu0
        %v1200 = vadd.f32 0.0, %v1199
        %v1201 = vpop.f32.mrb[0].mxu0
        %1202 = vdwg.mxu0
        %v1203 = vadd.f32 %v1113, %v1195
        %v1204 = vadd.f32 %v1114, %v1200
        %v1205 = vld [vmem:[#allocation2 + $0x6] sm:$0xff]
        %v1206 = vld [vmem:[#allocation2 + $0x16] sm:$0xff]
        %s1207 = scalar_lea.vmem %s2, 192
        %v1208 = vld [vmem:[%s1207] sm:$0xff]
        %v1209 = vld [vmem:[%s1207 + $0x8] sm:$0xff]
        %v1210 = vld [vmem:[%s1207 + $0x10] sm:$0xff]
        %v1211 = vld [vmem:[%s1207 + $0x18] sm:$0xff]
        %v1213 = vsel %vm279, %v1205, 0
        %v1216 = vsel %vm279, %v1206, 0
        %1218 = vmatprep.subr.mxu0 0.0
        %1219 = vmatpush1.msra.mxu0 %v1208
        %1220 = vmatprep.subr.mxu0 0.0
        %1221 = vmatpush1.msra.mxu0 %v1209
        %1222 = vmatprep.subr.mxu0 0.0
        %1223 = vmatpush1.msra.mxu0 %v1210
        %1224 = vmatprep.subr.mxu0 0.0
        %1225 = vmatpush1.msra.mxu0 %v1211
        %1226 = vmatprep.subr.mxu0 0.0
        %1227 = vmatpush1.msra.mxu0 0.0
        %1228 = vmatprep.subr.mxu0 0.0
        %1229 = vmatpush1.msra.mxu0 0.0
        %1230 = vmatprep.subr.mxu0 0.0
        %1231 = vmatpush1.msra.mxu0 0.0
        %1232 = vmatprep.subr.mxu0 0.0
        %1233 = vmatpush1.msra.mxu0 0.0
        %1234 = vmatprep.subr.mxu0 0.0
        %1235 = vmatpush1.msra.mxu0 0.0
        %1236 = vmatprep.subr.mxu0 0.0
        %1237 = vmatpush1.msra.mxu0 0.0
        %1238 = vmatprep.subr.mxu0 0.0
        %1239 = vmatpush1.msra.mxu0 0.0
        %1240 = vmatprep.subr.mxu0 0.0
        %1241 = vmatpush1.msra.mxu0 0.0
        %1242 = vmatprep.subr.mxu0 0.0
        %1243 = vmatpush1.msra.mxu0 0.0
        %1244 = vmatprep.subr.mxu0 0.0
        %1245 = vmatpush1.msra.mxu0 0.0
        %1246 = vmatprep.subr.mxu0 0.0
        %1247 = vmatpush1.msra.mxu0 0.0
        %1248 = vmatprep.subr.mxu0 0.0
        %1249 = vmatpush1.msra.mxu0 0.0
        %1250 = vmatprep.subr.mxu0 0.0
        %1251 = vmatpush1.msra.mxu0 0.0
        %1252 = vmatprep.subr.mxu0 0.0
        %1253 = vmatpush1.msra.mxu0 0.0
        %1254 = vmatprep.subr.mxu0 0.0
        %1255 = vmatpush1.msra.mxu0 0.0
        %1256 = vmatprep.subr.mxu0 0.0
        %1257 = vmatpush1.msra.mxu0 0.0
        %1258 = vmatprep.subr.mxu0 0.0
        %1259 = vmatpush1.msra.mxu0 0.0
        %1260 = vmatprep.subr.mxu0 0.0
        %1261 = vmatpush1.msra.mxu0 0.0
        %1262 = vmatprep.subr.mxu0 0.0
        %1263 = vmatpush1.msra.mxu0 0.0
        %1264 = vmatprep.subr.mxu0 0.0
        %1265 = vmatpush1.msra.mxu0 0.0
        %1266 = vmatprep.subr.mxu0 0.0
        %1267 = vmatpush1.msra.mxu0 0.0
        %1268 = vmatprep.subr.mxu0 0.0
        %1269 = vmatpush1.msra.mxu0 0.0
        %1270 = vmatprep.subr.mxu0 0.0
        %1271 = vmatpush1.msra.mxu0 0.0
        %1272 = vmatprep.subr.mxu0 0.0
        %1273 = vmatpush1.msra.mxu0 0.0
        %1274 = vmatprep.subr.mxu0 0.0
        %1275 = vmatpush1.msra.mxu0 0.0
        %1276 = vmatprep.subr.mxu0 0.0
        %1277 = vmatpush1.msra.mxu0 0.0
        %1278 = vmatprep.subr.mxu0 0.0
        %1279 = vmatpush1.msra.mxu0 0.0
        %1280 = vmatprep.subr.mxu0 0.0
        %1281 = vmatpush1.msra.mxu0 0.0
        %1282 = vmatprep.mubr.f32.mxu0 0.0
        %1283 = vmatmul.mubr.f32.gmra.mrb[0].mxu0 %v1213
        %v1284 = vpop.f32.mrb[0].mxu0
        %v1285 = vadd.f32 0.0, %v1284
        %v1286 = vpop.f32.mrb[0].mxu0
        %1287 = vmatprep.mubr.f32.mxu0 0.0
        %1288 = vmatmul.mubr.f32.gmra.mrb[0].mxu0 %v1216
        %v1289 = vpop.f32.mrb[0].mxu0
        %v1290 = vadd.f32 0.0, %v1289
        %v1291 = vpop.f32.mrb[0].mxu0
        %1292 = vdwg.mxu0
        %v1293 = vadd.f32 %v1203, %v1285
        %v1294 = vadd.f32 %v1204, %v1290
        %v1295 = vld [vmem:[#allocation2 + $0x7] sm:$0xff]
        %v1296 = vld [vmem:[#allocation2 + $0x17] sm:$0xff]
        %s1297 = scalar_lea.vmem %s2, 224
        %v1298 = vld [vmem:[%s1297] sm:$0xff]
        %v1299 = vld [vmem:[%s1297 + $0x8] sm:$0xff]
        %v1300 = vld [vmem:[%s1297 + $0x10] sm:$0xff]
        %v1301 = vld [vmem:[%s1297 + $0x18] sm:$0xff]
        %v1303 = vsel %vm279, %v1295, 0
        %v1306 = vsel %vm279, %v1296, 0
        %1308 = vmatprep.subr.mxu0 0.0
        %1309 = vmatpush1.msra.mxu0 %v1298
        %1310 = vmatprep.subr.mxu0 0.0
        %1311 = vmatpush1.msra.mxu0 %v1299
        %1312 = vmatprep.subr.mxu0 0.0
        %1313 = vmatpush1.msra.mxu0 %v1300
        %1314 = vmatprep.subr.mxu0 0.0
        %1315 = vmatpush1.msra.mxu0 %v1301
        %1316 = vmatprep.subr.mxu0 0.0
        %1317 = vmatpush1.msra.mxu0 0.0
        %1318 = vmatprep.subr.mxu0 0.0
        %1319 = vmatpush1.msra.mxu0 0.0
        %1320 = vmatprep.subr.mxu0 0.0
        %1321 = vmatpush1.msra.mxu0 0.0
        %1322 = vmatprep.subr.mxu0 0.0
        %1323 = vmatpush1.msra.mxu0 0.0
        %1324 = vmatprep.subr.mxu0 0.0
        %1325 = vmatpush1.msra.mxu0 0.0
        %1326 = vmatprep.subr.mxu0 0.0
        %1327 = vmatpush1.msra.mxu0 0.0
        %1328 = vmatprep.subr.mxu0 0.0
        %1329 = vmatpush1.msra.mxu0 0.0
        %1330 = vmatprep.subr.mxu0 0.0
        %1331 = vmatpush1.msra.mxu0 0.0
        %1332 = vmatprep.subr.mxu0 0.0
        %1333 = vmatpush1.msra.mxu0 0.0
        %1334 = vmatprep.subr.mxu0 0.0
        %1335 = vmatpush1.msra.mxu0 0.0
        %1336 = vmatprep.subr.mxu0 0.0
        %1337 = vmatpush1.msra.mxu0 0.0
        %1338 = vmatprep.subr.mxu0 0.0
        %1339 = vmatpush1.msra.mxu0 0.0
        %1340 = vmatprep.subr.mxu0 0.0
        %1341 = vmatpush1.msra.mxu0 0.0
        %1342 = vmatprep.subr.mxu0 0.0
        %1343 = vmatpush1.msra.mxu0 0.0
        %1344 = vmatprep.subr.mxu0 0.0
        %1345 = vmatpush1.msra.mxu0 0.0
        %1346 = vmatprep.subr.mxu0 0.0
        %1347 = vmatpush1.msra.mxu0 0.0
        %1348 = vmatprep.subr.mxu0 0.0
        %1349 = vmatpush1.msra.mxu0 0.0
        %1350 = vmatprep.subr.mxu0 0.0
        %1351 = vmatpush1.msra.mxu0 0.0
        %1352 = vmatprep.subr.mxu0 0.0
        %1353 = vmatpush1.msra.mxu0 0.0
        %1354 = vmatprep.subr.mxu0 0.0
        %1355 = vmatpush1.msra.mxu0 0.0
        %1356 = vmatprep.subr.mxu0 0.0
        %1357 = vmatpush1.msra.mxu0 0.0
        %1358 = vmatprep.subr.mxu0 0.0
        %1359 = vmatpush1.msra.mxu0 0.0
        %1360 = vmatprep.subr.mxu0 0.0
        %1361 = vmatpush1.msra.mxu0 0.0
        %1362 = vmatprep.subr.mxu0 0.0
        %1363 = vmatpush1.msra.mxu0 0.0
        %1364 = vmatprep.subr.mxu0 0.0
        %1365 = vmatpush1.msra.mxu0 0.0
        %1366 = vmatprep.subr.mxu0 0.0
        %1367 = vmatpush1.msra.mxu0 0.0
        %1368 = vmatprep.subr.mxu0 0.0
        %1369 = vmatpush1.msra.mxu0 0.0
        %1370 = vmatprep.subr.mxu0 0.0
        %1371 = vmatpush1.msra.mxu0 0.0
        %1372 = vmatprep.mubr.f32.mxu0 0.0
        %1373 = vmatmul.mubr.f32.gmra.mrb[0].mxu0 %v1303
        %v1374 = vpop.f32.mrb[0].mxu0
        %v1375 = vadd.f32 0.0, %v1374
        %v1376 = vpop.f32.mrb[0].mxu0
        %1377 = vmatprep.mubr.f32.mxu0 0.0
        %1378 = vmatmul.mubr.f32.gmra.mrb[0].mxu0 %v1306
        %v1379 = vpop.f32.mrb[0].mxu0
        %v1380 = vadd.f32 0.0, %v1379
        %v1381 = vpop.f32.mrb[0].mxu0
        %1382 = vdwg.mxu0
        %v1383 = vadd.f32 %v1293, %v1375
        %v1384 = vadd.f32 %v1294, %v1380
        %v1385 = vmax.f32 %v1383, 0.0
        %v1386 = vmax.f32 %v1384, 0.0
        %1387 = vst.msk [vmem:[#allocation2 + $0x3] sm:$0xff] %vm279, %v1385
        %1388 = vst.msk [vmem:[#allocation2 + $0x13] sm:$0xff] %vm279, %v1386
        %v1389 = vld [vmem:[#allocation2] sm:$0xff]
        %v1390 = vld [vmem:[#allocation2 + $0x10] sm:$0xff]
        %v1391 = vld [vmem:[%s3] sm:$0xff]
        %v1392 = vld [vmem:[%s3 + $0x8] sm:$0xff]
        %v1393 = vld [vmem:[%s3 + $0x10] sm:$0xff]
        %v1394 = vld [vmem:[%s3 + $0x18] sm:$0xff]
        %v1395 = vld [vmem:[#allocation2 + $0x1] sm:$0xff]
        %v1396 = vld [vmem:[#allocation2 + $0x11] sm:$0xff]
        %s1397 = scalar_lea.vmem %s3, 32
        %v1398 = vld [vmem:[%s1397] sm:$0xff]
        %v1399 = vld [vmem:[%s1397 + $0x8] sm:$0xff]
        %v1400 = vld [vmem:[%s1397 + $0x10] sm:$0xff]
        %v1401 = vld [vmem:[%s1397 + $0x18] sm:$0xff]
        %v1403 = vsel %vm279, %v1395, 0
        %v1406 = vsel %vm279, %v1396, 0
        %1408 = vmatprep.subr.mxu0 0.0
        %1409 = vmatpush1.msra.mxu0 %v1398
        %1410 = vmatprep.subr.mxu0 0.0
        %1411 = vmatpush1.msra.mxu0 %v1399
        %1412 = vmatprep.subr.mxu0 0.0
        %1413 = vmatpush1.msra.mxu0 %v1400
        %1414 = vmatprep.subr.mxu0 0.0
        %1415 = vmatpush1.msra.mxu0 %v1401
        %1416 = vmatprep.subr.mxu0 0.0
        %1417 = vmatpush1.msra.mxu0 0.0
        %1418 = vmatprep.subr.mxu0 0.0
        %1419 = vmatpush1.msra.mxu0 0.0
        %1420 = vmatprep.subr.mxu0 0.0
        %1421 = vmatpush1.msra.mxu0 0.0
        %1422 = vmatprep.subr.mxu0 0.0
        %1423 = vmatpush1.msra.mxu0 0.0
        %1424 = vmatprep.subr.mxu0 0.0
        %1425 = vmatpush1.msra.mxu0 0.0
        %1426 = vmatprep.subr.mxu0 0.0
        %1427 = vmatpush1.msra.mxu0 0.0
        %1428 = vmatprep.subr.mxu0 0.0
        %1429 = vmatpush1.msra.mxu0 0.0
        %1430 = vmatprep.subr.mxu0 0.0
        %1431 = vmatpush1.msra.mxu0 0.0
        %1432 = vmatprep.subr.mxu0 0.0
        %1433 = vmatpush1.msra.mxu0 0.0
        %1434 = vmatprep.subr.mxu0 0.0
        %1435 = vmatpush1.msra.mxu0 0.0
        %1436 = vmatprep.subr.mxu0 0.0
        %1437 = vmatpush1.msra.mxu0 0.0
        %1438 = vmatprep.subr.mxu0 0.0
        %1439 = vmatpush1.msra.mxu0 0.0
        %1440 = vmatprep.subr.mxu0 0.0
        %1441 = vmatpush1.msra.mxu0 0.0
        %1442 = vmatprep.subr.mxu0 0.0
        %1443 = vmatpush1.msra.mxu0 0.0
        %1444 = vmatprep.subr.mxu0 0.0
        %1445 = vmatpush1.msra.mxu0 0.0
        %1446 = vmatprep.subr.mxu0 0.0
        %1447 = vmatpush1.msra.mxu0 0.0
        %1448 = vmatprep.subr.mxu0 0.0
        %1449 = vmatpush1.msra.mxu0 0.0
        %1450 = vmatprep.subr.mxu0 0.0
        %1451 = vmatpush1.msra.mxu0 0.0
        %1452 = vmatprep.subr.mxu0 0.0
        %1453 = vmatpush1.msra.mxu0 0.0
        %1454 = vmatprep.subr.mxu0 0.0
        %1455 = vmatpush1.msra.mxu0 0.0
        %1456 = vmatprep.subr.mxu0 0.0
        %1457 = vmatpush1.msra.mxu0 0.0
        %1458 = vmatprep.subr.mxu0 0.0
        %1459 = vmatpush1.msra.mxu0 0.0
        %1460 = vmatprep.subr.mxu0 0.0
        %1461 = vmatpush1.msra.mxu0 0.0
        %1462 = vmatprep.subr.mxu0 0.0
        %1463 = vmatpush1.msra.mxu0 0.0
        %1464 = vmatprep.subr.mxu0 0.0
        %1465 = vmatpush1.msra.mxu0 0.0
        %1466 = vmatprep.subr.mxu0 0.0
        %1467 = vmatpush1.msra.mxu0 0.0
        %1468 = vmatprep.subr.mxu0 0.0
        %1469 = vmatpush1.msra.mxu0 0.0
        %1470 = vmatprep.subr.mxu0 0.0
        %1471 = vmatpush1.msra.mxu0 0.0
        %1472 = vmatprep.mubr.f32.mxu0 0.0
        %1473 = vmatmul.mubr.f32.gmra.mrb[0].mxu0 %v1403
        %v1474 = vpop.f32.mrb[0].mxu0
        %v1475 = vadd.f32 0.0, %v1474
        %v1476 = vpop.f32.mrb[0].mxu0
        %1477 = vmatprep.mubr.f32.mxu0 0.0
        %1478 = vmatmul.mubr.f32.gmra.mrb[0].mxu0 %v1406
        %v1479 = vpop.f32.mrb[0].mxu0
        %v1480 = vadd.f32 0.0, %v1479
        %v1481 = vpop.f32.mrb[0].mxu0
        %1482 = vdwg.mxu0
        %v1484 = vsel %vm279, %v1389, 0
        %v1487 = vsel %vm279, %v1390, 0
        %1489 = vmatprep.subr.mxu0 0.0
        %1490 = vmatpush1.msra.mxu0 %v1391
        %1491 = vmatprep.subr.mxu0 0.0
        %1492 = vmatpush1.msra.mxu0 %v1392
        %1493 = vmatprep.subr.mxu0 0.0
        %1494 = vmatpush1.msra.mxu0 %v1393
        %1495 = vmatprep.subr.mxu0 0.0
        %1496 = vmatpush1.msra.mxu0 %v1394
        %1497 = vmatprep.subr.mxu0 0.0
        %1498 = vmatpush1.msra.mxu0 0.0
        %1499 = vmatprep.subr.mxu0 0.0
        %1500 = vmatpush1.msra.mxu0 0.0
        %1501 = vmatprep.subr.mxu0 0.0
        %1502 = vmatpush1.msra.mxu0 0.0
        %1503 = vmatprep.subr.mxu0 0.0
        %1504 = vmatpush1.msra.mxu0 0.0
        %1505 = vmatprep.subr.mxu0 0.0
        %1506 = vmatpush1.msra.mxu0 0.0
        %1507 = vmatprep.subr.mxu0 0.0
        %1508 = vmatpush1.msra.mxu0 0.0
        %1509 = vmatprep.subr.mxu0 0.0
        %1510 = vmatpush1.msra.mxu0 0.0
        %1511 = vmatprep.subr.mxu0 0.0
        %1512 = vmatpush1.msra.mxu0 0.0
        %1513 = vmatprep.subr.mxu0 0.0
        %1514 = vmatpush1.msra.mxu0 0.0
        %1515 = vmatprep.subr.mxu0 0.0
        %1516 = vmatpush1.msra.mxu0 0.0
        %1517 = vmatprep.subr.mxu0 0.0
        %1518 = vmatpush1.msra.mxu0 0.0
        %1519 = vmatprep.subr.mxu0 0.0
        %1520 = vmatpush1.msra.mxu0 0.0
        %1521 = vmatprep.subr.mxu0 0.0
        %1522 = vmatpush1.msra.mxu0 0.0
        %1523 = vmatprep.subr.mxu0 0.0
        %1524 = vmatpush1.msra.mxu0 0.0
        %1525 = vmatprep.subr.mxu0 0.0
        %1526 = vmatpush1.msra.mxu0 0.0
        %1527 = vmatprep.subr.mxu0 0.0
        %1528 = vmatpush1.msra.mxu0 0.0
        %1529 = vmatprep.subr.mxu0 0.0
        %1530 = vmatpush1.msra.mxu0 0.0
        %1531 = vmatprep.subr.mxu0 0.0
        %1532 = vmatpush1.msra.mxu0 0.0
        %1533 = vmatprep.subr.mxu0 0.0
        %1534 = vmatpush1.msra.mxu0 0.0
        %1535 = vmatprep.subr.mxu0 0.0
        %1536 = vmatpush1.msra.mxu0 0.0
        %1537 = vmatprep.subr.mxu0 0.0
        %1538 = vmatpush1.msra.mxu0 0.0
        %1539 = vmatprep.subr.mxu0 0.0
        %1540 = vmatpush1.msra.mxu0 0.0
        %1541 = vmatprep.subr.mxu0 0.0
        %1542 = vmatpush1.msra.mxu0 0.0
        %1543 = vmatprep.subr.mxu0 0.0
        %1544 = vmatpush1.msra.mxu0 0.0
        %1545 = vmatprep.subr.mxu0 0.0
        %1546 = vmatpush1.msra.mxu0 0.0
        %1547 = vmatprep.subr.mxu0 0.0
        %1548 = vmatpush1.msra.mxu0 0.0
        %1549 = vmatprep.subr.mxu0 0.0
        %1550 = vmatpush1.msra.mxu0 0.0
        %1551 = vmatprep.subr.mxu0 0.0
        %1552 = vmatpush1.msra.mxu0 0.0
        %1553 = vmatprep.mubr.f32.mxu0 0.0
        %1554 = vmatmul.mubr.f32.gmra.mrb[0].mxu0 %v1484
        %v1555 = vpop.f32.mrb[0].mxu0
        %v1556 = vadd.f32 %v1475, %v1555
        %v1557 = vpop.f32.mrb[0].mxu0
        %1558 = vmatprep.mubr.f32.mxu0 0.0
        %1559 = vmatmul.mubr.f32.gmra.mrb[0].mxu0 %v1487
        %v1560 = vpop.f32.mrb[0].mxu0
        %v1561 = vadd.f32 %v1480, %v1560
        %v1562 = vpop.f32.mrb[0].mxu0
        %1563 = vdwg.mxu0
        %v1564 = vld [vmem:[#allocation2 + $0x2] sm:$0xff]
        %v1565 = vld [vmem:[#allocation2 + $0x12] sm:$0xff]
        %s1566 = scalar_lea.vmem %s3, 64
        %v1567 = vld [vmem:[%s1566] sm:$0xff]
        %v1568 = vld [vmem:[%s1566 + $0x8] sm:$0xff]
        %v1569 = vld [vmem:[%s1566 + $0x10] sm:$0xff]
        %v1570 = vld [vmem:[%s1566 + $0x18] sm:$0xff]
        %v1572 = vsel %vm279, %v1564, 0
        %v1575 = vsel %vm279, %v1565, 0
        %1577 = vmatprep.subr.mxu0 0.0
        %1578 = vmatpush1.msra.mxu0 %v1567
        %1579 = vmatprep.subr.mxu0 0.0
        %1580 = vmatpush1.msra.mxu0 %v1568
        %1581 = vmatprep.subr.mxu0 0.0
        %1582 = vmatpush1.msra.mxu0 %v1569
        %1583 = vmatprep.subr.mxu0 0.0
        %1584 = vmatpush1.msra.mxu0 %v1570
        %1585 = vmatprep.subr.mxu0 0.0
        %1586 = vmatpush1.msra.mxu0 0.0
        %1587 = vmatprep.subr.mxu0 0.0
        %1588 = vmatpush1.msra.mxu0 0.0
        %1589 = vmatprep.subr.mxu0 0.0
        %1590 = vmatpush1.msra.mxu0 0.0
        %1591 = vmatprep.subr.mxu0 0.0
        %1592 = vmatpush1.msra.mxu0 0.0
        %1593 = vmatprep.subr.mxu0 0.0
        %1594 = vmatpush1.msra.mxu0 0.0
        %1595 = vmatprep.subr.mxu0 0.0
        %1596 = vmatpush1.msra.mxu0 0.0
        %1597 = vmatprep.subr.mxu0 0.0
        %1598 = vmatpush1.msra.mxu0 0.0
        %1599 = vmatprep.subr.mxu0 0.0
        %1600 = vmatpush1.msra.mxu0 0.0
        %1601 = vmatprep.subr.mxu0 0.0
        %1602 = vmatpush1.msra.mxu0 0.0
        %1603 = vmatprep.subr.mxu0 0.0
        %1604 = vmatpush1.msra.mxu0 0.0
        %1605 = vmatprep.subr.mxu0 0.0
        %1606 = vmatpush1.msra.mxu0 0.0
        %1607 = vmatprep.subr.mxu0 0.0
        %1608 = vmatpush1.msra.mxu0 0.0
        %1609 = vmatprep.subr.mxu0 0.0
        %1610 = vmatpush1.msra.mxu0 0.0
        %1611 = vmatprep.subr.mxu0 0.0
        %1612 = vmatpush1.msra.mxu0 0.0
        %1613 = vmatprep.subr.mxu0 0.0
        %1614 = vmatpush1.msra.mxu0 0.0
        %1615 = vmatprep.subr.mxu0 0.0
        %1616 = vmatpush1.msra.mxu0 0.0
        %1617 = vmatprep.subr.mxu0 0.0
        %1618 = vmatpush1.msra.mxu0 0.0
        %1619 = vmatprep.subr.mxu0 0.0
        %1620 = vmatpush1.msra.mxu0 0.0
        %1621 = vmatprep.subr.mxu0 0.0
        %1622 = vmatpush1.msra.mxu0 0.0
        %1623 = vmatprep.subr.mxu0 0.0
        %1624 = vmatpush1.msra.mxu0 0.0
        %1625 = vmatprep.subr.mxu0 0.0
        %1626 = vmatpush1.msra.mxu0 0.0
        %1627 = vmatprep.subr.mxu0 0.0
        %1628 = vmatpush1.msra.mxu0 0.0
        %1629 = vmatprep.subr.mxu0 0.0
        %1630 = vmatpush1.msra.mxu0 0.0
        %1631 = vmatprep.subr.mxu0 0.0
        %1632 = vmatpush1.msra.mxu0 0.0
        %1633 = vmatprep.subr.mxu0 0.0
        %1634 = vmatpush1.msra.mxu0 0.0
        %1635 = vmatprep.subr.mxu0 0.0
        %1636 = vmatpush1.msra.mxu0 0.0
        %1637 = vmatprep.subr.mxu0 0.0
        %1638 = vmatpush1.msra.mxu0 0.0
        %1639 = vmatprep.subr.mxu0 0.0
        %1640 = vmatpush1.msra.mxu0 0.0
        %1641 = vmatprep.mubr.f32.mxu0 0.0
        %1642 = vmatmul.mubr.f32.gmra.mrb[0].mxu0 %v1572
        %v1643 = vpop.f32.mrb[0].mxu0
        %v1644 = vadd.f32 0.0, %v1643
        %v1645 = vpop.f32.mrb[0].mxu0
        %1646 = vmatprep.mubr.f32.mxu0 0.0
        %1647 = vmatmul.mubr.f32.gmra.mrb[0].mxu0 %v1575
        %v1648 = vpop.f32.mrb[0].mxu0
        %v1649 = vadd.f32 0.0, %v1648
        %v1650 = vpop.f32.mrb[0].mxu0
        %1651 = vdwg.mxu0
        %v1652 = vadd.f32 %v1556, %v1644
        %v1653 = vadd.f32 %v1561, %v1649
        %v1654 = vld [vmem:[#allocation2 + $0x3] sm:$0xff]
        %v1655 = vld [vmem:[#allocation2 + $0x13] sm:$0xff]
        %s1656 = scalar_lea.vmem %s3, 96
        %v1657 = vld [vmem:[%s1656] sm:$0xff]
        %v1658 = vld [vmem:[%s1656 + $0x8] sm:$0xff]
        %v1659 = vld [vmem:[%s1656 + $0x10] sm:$0xff]
        %v1660 = vld [vmem:[%s1656 + $0x18] sm:$0xff]
        %v1662 = vsel %vm279, %v1654, 0
        %v1665 = vsel %vm279, %v1655, 0
        %1667 = vmatprep.subr.mxu0 0.0
        %1668 = vmatpush1.msra.mxu0 %v1657
        %1669 = vmatprep.subr.mxu0 0.0
        %1670 = vmatpush1.msra.mxu0 %v1658
        %1671 = vmatprep.subr.mxu0 0.0
        %1672 = vmatpush1.msra.mxu0 %v1659
        %1673 = vmatprep.subr.mxu0 0.0
        %1674 = vmatpush1.msra.mxu0 %v1660
        %1675 = vmatprep.subr.mxu0 0.0
        %1676 = vmatpush1.msra.mxu0 0.0
        %1677 = vmatprep.subr.mxu0 0.0
        %1678 = vmatpush1.msra.mxu0 0.0
        %1679 = vmatprep.subr.mxu0 0.0
        %1680 = vmatpush1.msra.mxu0 0.0
        %1681 = vmatprep.subr.mxu0 0.0
        %1682 = vmatpush1.msra.mxu0 0.0
        %1683 = vmatprep.subr.mxu0 0.0
        %1684 = vmatpush1.msra.mxu0 0.0
        %1685 = vmatprep.subr.mxu0 0.0
        %1686 = vmatpush1.msra.mxu0 0.0
        %1687 = vmatprep.subr.mxu0 0.0
        %1688 = vmatpush1.msra.mxu0 0.0
        %1689 = vmatprep.subr.mxu0 0.0
        %1690 = vmatpush1.msra.mxu0 0.0
        %1691 = vmatprep.subr.mxu0 0.0
        %1692 = vmatpush1.msra.mxu0 0.0
        %1693 = vmatprep.subr.mxu0 0.0
        %1694 = vmatpush1.msra.mxu0 0.0
        %1695 = vmatprep.subr.mxu0 0.0
        %1696 = vmatpush1.msra.mxu0 0.0
        %1697 = vmatprep.subr.mxu0 0.0
        %1698 = vmatpush1.msra.mxu0 0.0
        %1699 = vmatprep.subr.mxu0 0.0
        %1700 = vmatpush1.msra.mxu0 0.0
        %1701 = vmatprep.subr.mxu0 0.0
        %1702 = vmatpush1.msra.mxu0 0.0
        %1703 = vmatprep.subr.mxu0 0.0
        %1704 = vmatpush1.msra.mxu0 0.0
        %1705 = vmatprep.subr.mxu0 0.0
        %1706 = vmatpush1.msra.mxu0 0.0
        %1707 = vmatprep.subr.mxu0 0.0
        %1708 = vmatpush1.msra.mxu0 0.0
        %1709 = vmatprep.subr.mxu0 0.0
        %1710 = vmatpush1.msra.mxu0 0.0
        %1711 = vmatprep.subr.mxu0 0.0
        %1712 = vmatpush1.msra.mxu0 0.0
        %1713 = vmatprep.subr.mxu0 0.0
        %1714 = vmatpush1.msra.mxu0 0.0
        %1715 = vmatprep.subr.mxu0 0.0
        %1716 = vmatpush1.msra.mxu0 0.0
        %1717 = vmatprep.subr.mxu0 0.0
        %1718 = vmatpush1.msra.mxu0 0.0
        %1719 = vmatprep.subr.mxu0 0.0
        %1720 = vmatpush1.msra.mxu0 0.0
        %1721 = vmatprep.subr.mxu0 0.0
        %1722 = vmatpush1.msra.mxu0 0.0
        %1723 = vmatprep.subr.mxu0 0.0
        %1724 = vmatpush1.msra.mxu0 0.0
        %1725 = vmatprep.subr.mxu0 0.0
        %1726 = vmatpush1.msra.mxu0 0.0
        %1727 = vmatprep.subr.mxu0 0.0
        %1728 = vmatpush1.msra.mxu0 0.0
        %1729 = vmatprep.subr.mxu0 0.0
        %1730 = vmatpush1.msra.mxu0 0.0
        %1731 = vmatprep.mubr.f32.mxu0 0.0
        %1732 = vmatmul.mubr.f32.gmra.mrb[0].mxu0 %v1662
        %v1733 = vpop.f32.mrb[0].mxu0
        %v1734 = vadd.f32 0.0, %v1733
        %v1735 = vpop.f32.mrb[0].mxu0
        %1736 = vmatprep.mubr.f32.mxu0 0.0
        %1737 = vmatmul.mubr.f32.gmra.mrb[0].mxu0 %v1665
        %v1738 = vpop.f32.mrb[0].mxu0
        %v1739 = vadd.f32 0.0, %v1738
        %v1740 = vpop.f32.mrb[0].mxu0
        %1741 = vdwg.mxu0
        %v1742 = vadd.f32 %v1652, %v1734
        %v1743 = vadd.f32 %v1653, %v1739
        %v1744 = vld [vmem:[#allocation2 + $0x4] sm:$0xff]
        %v1745 = vld [vmem:[#allocation2 + $0x14] sm:$0xff]
        %s1746 = scalar_lea.vmem %s3, 128
        %v1747 = vld [vmem:[%s1746] sm:$0xff]
        %v1748 = vld [vmem:[%s1746 + $0x8] sm:$0xff]
        %v1749 = vld [vmem:[%s1746 + $0x10] sm:$0xff]
        %v1750 = vld [vmem:[%s1746 + $0x18] sm:$0xff]
        %v1752 = vsel %vm279, %v1744, 0
        %v1755 = vsel %vm279, %v1745, 0
        %1757 = vmatprep.subr.mxu0 0.0
        %1758 = vmatpush1.msra.mxu0 %v1747
        %1759 = vmatprep.subr.mxu0 0.0
        %1760 = vmatpush1.msra.mxu0 %v1748
        %1761 = vmatprep.subr.mxu0 0.0
        %1762 = vmatpush1.msra.mxu0 %v1749
        %1763 = vmatprep.subr.mxu0 0.0
        %1764 = vmatpush1.msra.mxu0 %v1750
        %1765 = vmatprep.subr.mxu0 0.0
        %1766 = vmatpush1.msra.mxu0 0.0
        %1767 = vmatprep.subr.mxu0 0.0
        %1768 = vmatpush1.msra.mxu0 0.0
        %1769 = vmatprep.subr.mxu0 0.0
        %1770 = vmatpush1.msra.mxu0 0.0
        %1771 = vmatprep.subr.mxu0 0.0
        %1772 = vmatpush1.msra.mxu0 0.0
        %1773 = vmatprep.subr.mxu0 0.0
        %1774 = vmatpush1.msra.mxu0 0.0
        %1775 = vmatprep.subr.mxu0 0.0
        %1776 = vmatpush1.msra.mxu0 0.0
        %1777 = vmatprep.subr.mxu0 0.0
        %1778 = vmatpush1.msra.mxu0 0.0
        %1779 = vmatprep.subr.mxu0 0.0
        %1780 = vmatpush1.msra.mxu0 0.0
        %1781 = vmatprep.subr.mxu0 0.0
        %1782 = vmatpush1.msra.mxu0 0.0
        %1783 = vmatprep.subr.mxu0 0.0
        %1784 = vmatpush1.msra.mxu0 0.0
        %1785 = vmatprep.subr.mxu0 0.0
        %1786 = vmatpush1.msra.mxu0 0.0
        %1787 = vmatprep.subr.mxu0 0.0
        %1788 = vmatpush1.msra.mxu0 0.0
        %1789 = vmatprep.subr.mxu0 0.0
        %1790 = vmatpush1.msra.mxu0 0.0
        %1791 = vmatprep.subr.mxu0 0.0
        %1792 = vmatpush1.msra.mxu0 0.0
        %1793 = vmatprep.subr.mxu0 0.0
        %1794 = vmatpush1.msra.mxu0 0.0
        %1795 = vmatprep.subr.mxu0 0.0
        %1796 = vmatpush1.msra.mxu0 0.0
        %1797 = vmatprep.subr.mxu0 0.0
        %1798 = vmatpush1.msra.mxu0 0.0
        %1799 = vmatprep.subr.mxu0 0.0
        %1800 = vmatpush1.msra.mxu0 0.0
        %1801 = vmatprep.subr.mxu0 0.0
        %1802 = vmatpush1.msra.mxu0 0.0
        %1803 = vmatprep.subr.mxu0 0.0
        %1804 = vmatpush1.msra.mxu0 0.0
        %1805 = vmatprep.subr.mxu0 0.0
        %1806 = vmatpush1.msra.mxu0 0.0
        %1807 = vmatprep.subr.mxu0 0.0
        %1808 = vmatpush1.msra.mxu0 0.0
        %1809 = vmatprep.subr.mxu0 0.0
        %1810 = vmatpush1.msra.mxu0 0.0
        %1811 = vmatprep.subr.mxu0 0.0
        %1812 = vmatpush1.msra.mxu0 0.0
        %1813 = vmatprep.subr.mxu0 0.0
        %1814 = vmatpush1.msra.mxu0 0.0
        %1815 = vmatprep.subr.mxu0 0.0
        %1816 = vmatpush1.msra.mxu0 0.0
        %1817 = vmatprep.subr.mxu0 0.0
        %1818 = vmatpush1.msra.mxu0 0.0
        %1819 = vmatprep.subr.mxu0 0.0
        %1820 = vmatpush1.msra.mxu0 0.0
        %1821 = vmatprep.mubr.f32.mxu0 0.0
        %1822 = vmatmul.mubr.f32.gmra.mrb[0].mxu0 %v1752
        %v1823 = vpop.f32.mrb[0].mxu0
        %v1824 = vadd.f32 0.0, %v1823
        %v1825 = vpop.f32.mrb[0].mxu0
        %1826 = vmatprep.mubr.f32.mxu0 0.0
        %1827 = vmatmul.mubr.f32.gmra.mrb[0].mxu0 %v1755
        %v1828 = vpop.f32.mrb[0].mxu0
        %v1829 = vadd.f32 0.0, %v1828
        %v1830 = vpop.f32.mrb[0].mxu0
        %1831 = vdwg.mxu0
        %v1832 = vadd.f32 %v1742, %v1824
        %v1833 = vadd.f32 %v1743, %v1829
        %v1834 = vld [vmem:[#allocation2 + $0x5] sm:$0xff]
        %v1835 = vld [vmem:[#allocation2 + $0x15] sm:$0xff]
        %s1836 = scalar_lea.vmem %s3, 160
        %v1837 = vld [vmem:[%s1836] sm:$0xff]
        %v1838 = vld [vmem:[%s1836 + $0x8] sm:$0xff]
        %v1839 = vld [vmem:[%s1836 + $0x10] sm:$0xff]
        %v1840 = vld [vmem:[%s1836 + $0x18] sm:$0xff]
        %v1842 = vsel %vm279, %v1834, 0
        %v1845 = vsel %vm279, %v1835, 0
        %1847 = vmatprep.subr.mxu0 0.0
        %1848 = vmatpush1.msra.mxu0 %v1837
        %1849 = vmatprep.subr.mxu0 0.0
        %1850 = vmatpush1.msra.mxu0 %v1838
        %1851 = vmatprep.subr.mxu0 0.0
        %1852 = vmatpush1.msra.mxu0 %v1839
        %1853 = vmatprep.subr.mxu0 0.0
        %1854 = vmatpush1.msra.mxu0 %v1840
        %1855 = vmatprep.subr.mxu0 0.0
        %1856 = vmatpush1.msra.mxu0 0.0
        %1857 = vmatprep.subr.mxu0 0.0
        %1858 = vmatpush1.msra.mxu0 0.0
        %1859 = vmatprep.subr.mxu0 0.0
        %1860 = vmatpush1.msra.mxu0 0.0
        %1861 = vmatprep.subr.mxu0 0.0
        %1862 = vmatpush1.msra.mxu0 0.0
        %1863 = vmatprep.subr.mxu0 0.0
        %1864 = vmatpush1.msra.mxu0 0.0
        %1865 = vmatprep.subr.mxu0 0.0
        %1866 = vmatpush1.msra.mxu0 0.0
        %1867 = vmatprep.subr.mxu0 0.0
        %1868 = vmatpush1.msra.mxu0 0.0
        %1869 = vmatprep.subr.mxu0 0.0
        %1870 = vmatpush1.msra.mxu0 0.0
        %1871 = vmatprep.subr.mxu0 0.0
        %1872 = vmatpush1.msra.mxu0 0.0
        %1873 = vmatprep.subr.mxu0 0.0
        %1874 = vmatpush1.msra.mxu0 0.0
        %1875 = vmatprep.subr.mxu0 0.0
        %1876 = vmatpush1.msra.mxu0 0.0
        %1877 = vmatprep.subr.mxu0 0.0
        %1878 = vmatpush1.msra.mxu0 0.0
        %1879 = vmatprep.subr.mxu0 0.0
        %1880 = vmatpush1.msra.mxu0 0.0
        %1881 = vmatprep.subr.mxu0 0.0
        %1882 = vmatpush1.msra.mxu0 0.0
        %1883 = vmatprep.subr.mxu0 0.0
        %1884 = vmatpush1.msra.mxu0 0.0
        %1885 = vmatprep.subr.mxu0 0.0
        %1886 = vmatpush1.msra.mxu0 0.0
        %1887 = vmatprep.subr.mxu0 0.0
        %1888 = vmatpush1.msra.mxu0 0.0
        %1889 = vmatprep.subr.mxu0 0.0
        %1890 = vmatpush1.msra.mxu0 0.0
        %1891 = vmatprep.subr.mxu0 0.0
        %1892 = vmatpush1.msra.mxu0 0.0
        %1893 = vmatprep.subr.mxu0 0.0
        %1894 = vmatpush1.msra.mxu0 0.0
        %1895 = vmatprep.subr.mxu0 0.0
        %1896 = vmatpush1.msra.mxu0 0.0
        %1897 = vmatprep.subr.mxu0 0.0
        %1898 = vmatpush1.msra.mxu0 0.0
        %1899 = vmatprep.subr.mxu0 0.0
        %1900 = vmatpush1.msra.mxu0 0.0
        %1901 = vmatprep.subr.mxu0 0.0
        %1902 = vmatpush1.msra.mxu0 0.0
        %1903 = vmatprep.subr.mxu0 0.0
        %1904 = vmatpush1.msra.mxu0 0.0
        %1905 = vmatprep.subr.mxu0 0.0
        %1906 = vmatpush1.msra.mxu0 0.0
        %1907 = vmatprep.subr.mxu0 0.0
        %1908 = vmatpush1.msra.mxu0 0.0
        %1909 = vmatprep.subr.mxu0 0.0
        %1910 = vmatpush1.msra.mxu0 0.0
        %1911 = vmatprep.mubr.f32.mxu0 0.0
        %1912 = vmatmul.mubr.f32.gmra.mrb[0].mxu0 %v1842
        %v1913 = vpop.f32.mrb[0].mxu0
        %v1914 = vadd.f32 0.0, %v1913
        %v1915 = vpop.f32.mrb[0].mxu0
        %1916 = vmatprep.mubr.f32.mxu0 0.0
        %1917 = vmatmul.mubr.f32.gmra.mrb[0].mxu0 %v1845
        %v1918 = vpop.f32.mrb[0].mxu0
        %v1919 = vadd.f32 0.0, %v1918
        %v1920 = vpop.f32.mrb[0].mxu0
        %1921 = vdwg.mxu0
        %v1922 = vadd.f32 %v1832, %v1914
        %v1923 = vadd.f32 %v1833, %v1919
        %v1924 = vld [vmem:[#allocation2 + $0x6] sm:$0xff]
        %v1925 = vld [vmem:[#allocation2 + $0x16] sm:$0xff]
        %s1926 = scalar_lea.vmem %s3, 192
        %v1927 = vld [vmem:[%s1926] sm:$0xff]
        %v1928 = vld [vmem:[%s1926 + $0x8] sm:$0xff]
        %v1929 = vld [vmem:[%s1926 + $0x10] sm:$0xff]
        %v1930 = vld [vmem:[%s1926 + $0x18] sm:$0xff]
        %v1932 = vsel %vm279, %v1924, 0
        %v1935 = vsel %vm279, %v1925, 0
        %1937 = vmatprep.subr.mxu0 0.0
        %1938 = vmatpush1.msra.mxu0 %v1927
        %1939 = vmatprep.subr.mxu0 0.0
        %1940 = vmatpush1.msra.mxu0 %v1928
        %1941 = vmatprep.subr.mxu0 0.0
        %1942 = vmatpush1.msra.mxu0 %v1929
        %1943 = vmatprep.subr.mxu0 0.0
        %1944 = vmatpush1.msra.mxu0 %v1930
        %1945 = vmatprep.subr.mxu0 0.0
        %1946 = vmatpush1.msra.mxu0 0.0
        %1947 = vmatprep.subr.mxu0 0.0
        %1948 = vmatpush1.msra.mxu0 0.0
        %1949 = vmatprep.subr.mxu0 0.0
        %1950 = vmatpush1.msra.mxu0 0.0
        %1951 = vmatprep.subr.mxu0 0.0
        %1952 = vmatpush1.msra.mxu0 0.0
        %1953 = vmatprep.subr.mxu0 0.0
        %1954 = vmatpush1.msra.mxu0 0.0
        %1955 = vmatprep.subr.mxu0 0.0
        %1956 = vmatpush1.msra.mxu0 0.0
        %1957 = vmatprep.subr.mxu0 0.0
        %1958 = vmatpush1.msra.mxu0 0.0
        %1959 = vmatprep.subr.mxu0 0.0
        %1960 = vmatpush1.msra.mxu0 0.0
        %1961 = vmatprep.subr.mxu0 0.0
        %1962 = vmatpush1.msra.mxu0 0.0
        %1963 = vmatprep.subr.mxu0 0.0
        %1964 = vmatpush1.msra.mxu0 0.0
        %1965 = vmatprep.subr.mxu0 0.0
        %1966 = vmatpush1.msra.mxu0 0.0
        %1967 = vmatprep.subr.mxu0 0.0
        %1968 = vmatpush1.msra.mxu0 0.0
        %1969 = vmatprep.subr.mxu0 0.0
        %1970 = vmatpush1.msra.mxu0 0.0
        %1971 = vmatprep.subr.mxu0 0.0
        %1972 = vmatpush1.msra.mxu0 0.0
        %1973 = vmatprep.subr.mxu0 0.0
        %1974 = vmatpush1.msra.mxu0 0.0
        %1975 = vmatprep.subr.mxu0 0.0
        %1976 = vmatpush1.msra.mxu0 0.0
        %1977 = vmatprep.subr.mxu0 0.0
        %1978 = vmatpush1.msra.mxu0 0.0
        %1979 = vmatprep.subr.mxu0 0.0
        %1980 = vmatpush1.msra.mxu0 0.0
        %1981 = vmatprep.subr.mxu0 0.0
        %1982 = vmatpush1.msra.mxu0 0.0
        %1983 = vmatprep.subr.mxu0 0.0
        %1984 = vmatpush1.msra.mxu0 0.0
        %1985 = vmatprep.subr.mxu0 0.0
        %1986 = vmatpush1.msra.mxu0 0.0
        %1987 = vmatprep.subr.mxu0 0.0
        %1988 = vmatpush1.msra.mxu0 0.0
        %1989 = vmatprep.subr.mxu0 0.0
        %1990 = vmatpush1.msra.mxu0 0.0
        %1991 = vmatprep.subr.mxu0 0.0
        %1992 = vmatpush1.msra.mxu0 0.0
        %1993 = vmatprep.subr.mxu0 0.0
        %1994 = vmatpush1.msra.mxu0 0.0
        %1995 = vmatprep.subr.mxu0 0.0
        %1996 = vmatpush1.msra.mxu0 0.0
        %1997 = vmatprep.subr.mxu0 0.0
        %1998 = vmatpush1.msra.mxu0 0.0
        %1999 = vmatprep.subr.mxu0 0.0
        %2000 = vmatpush1.msra.mxu0 0.0
        %2001 = vmatprep.mubr.f32.mxu0 0.0
        %2002 = vmatmul.mubr.f32.gmra.mrb[0].mxu0 %v1932
        %v2003 = vpop.f32.mrb[0].mxu0
        %v2004 = vadd.f32 0.0, %v2003
        %v2005 = vpop.f32.mrb[0].mxu0
        %2006 = vmatprep.mubr.f32.mxu0 0.0
        %2007 = vmatmul.mubr.f32.gmra.mrb[0].mxu0 %v1935
        %v2008 = vpop.f32.mrb[0].mxu0
        %v2009 = vadd.f32 0.0, %v2008
        %v2010 = vpop.f32.mrb[0].mxu0
        %2011 = vdwg.mxu0
        %v2012 = vadd.f32 %v1922, %v2004
        %v2013 = vadd.f32 %v1923, %v2009
        %v2014 = vld [vmem:[#allocation2 + $0x7] sm:$0xff]
        %v2015 = vld [vmem:[#allocation2 + $0x17] sm:$0xff]
        %s2016 = scalar_lea.vmem %s3, 224
        %v2017 = vld [vmem:[%s2016] sm:$0xff]
        %v2018 = vld [vmem:[%s2016 + $0x8] sm:$0xff]
        %v2019 = vld [vmem:[%s2016 + $0x10] sm:$0xff]
        %v2020 = vld [vmem:[%s2016 + $0x18] sm:$0xff]
        %v2022 = vsel %vm279, %v2014, 0
        %v2025 = vsel %vm279, %v2015, 0
        %2027 = vmatprep.subr.mxu0 0.0
        %2028 = vmatpush1.msra.mxu0 %v2017
        %2029 = vmatprep.subr.mxu0 0.0
        %2030 = vmatpush1.msra.mxu0 %v2018
        %2031 = vmatprep.subr.mxu0 0.0
        %2032 = vmatpush1.msra.mxu0 %v2019
        %2033 = vmatprep.subr.mxu0 0.0
        %2034 = vmatpush1.msra.mxu0 %v2020
        %2035 = vmatprep.subr.mxu0 0.0
        %2036 = vmatpush1.msra.mxu0 0.0
        %2037 = vmatprep.subr.mxu0 0.0
        %2038 = vmatpush1.msra.mxu0 0.0
        %2039 = vmatprep.subr.mxu0 0.0
        %2040 = vmatpush1.msra.mxu0 0.0
        %2041 = vmatprep.subr.mxu0 0.0
        %2042 = vmatpush1.msra.mxu0 0.0
        %2043 = vmatprep.subr.mxu0 0.0
        %2044 = vmatpush1.msra.mxu0 0.0
        %2045 = vmatprep.subr.mxu0 0.0
        %2046 = vmatpush1.msra.mxu0 0.0
        %2047 = vmatprep.subr.mxu0 0.0
        %2048 = vmatpush1.msra.mxu0 0.0
        %2049 = vmatprep.subr.mxu0 0.0
        %2050 = vmatpush1.msra.mxu0 0.0
        %2051 = vmatprep.subr.mxu0 0.0
        %2052 = vmatpush1.msra.mxu0 0.0
        %2053 = vmatprep.subr.mxu0 0.0
        %2054 = vmatpush1.msra.mxu0 0.0
        %2055 = vmatprep.subr.mxu0 0.0
        %2056 = vmatpush1.msra.mxu0 0.0
        %2057 = vmatprep.subr.mxu0 0.0
        %2058 = vmatpush1.msra.mxu0 0.0
        %2059 = vmatprep.subr.mxu0 0.0
        %2060 = vmatpush1.msra.mxu0 0.0
        %2061 = vmatprep.subr.mxu0 0.0
        %2062 = vmatpush1.msra.mxu0 0.0
        %2063 = vmatprep.subr.mxu0 0.0
        %2064 = vmatpush1.msra.mxu0 0.0
        %2065 = vmatprep.subr.mxu0 0.0
        %2066 = vmatpush1.msra.mxu0 0.0
        %2067 = vmatprep.subr.mxu0 0.0
        %2068 = vmatpush1.msra.mxu0 0.0
        %2069 = vmatprep.subr.mxu0 0.0
        %2070 = vmatpush1.msra.mxu0 0.0
        %2071 = vmatprep.subr.mxu0 0.0
        %2072 = vmatpush1.msra.mxu0 0.0
        %2073 = vmatprep.subr.mxu0 0.0
        %2074 = vmatpush1.msra.mxu0 0.0
        %2075 = vmatprep.subr.mxu0 0.0
        %2076 = vmatpush1.msra.mxu0 0.0
        %2077 = vmatprep.subr.mxu0 0.0
        %2078 = vmatpush1.msra.mxu0 0.0
        %2079 = vmatprep.subr.mxu0 0.0
        %2080 = vmatpush1.msra.mxu0 0.0
        %2081 = vmatprep.subr.mxu0 0.0
        %2082 = vmatpush1.msra.mxu0 0.0
        %2083 = vmatprep.subr.mxu0 0.0
        %2084 = vmatpush1.msra.mxu0 0.0
        %2085 = vmatprep.subr.mxu0 0.0
        %2086 = vmatpush1.msra.mxu0 0.0
        %2087 = vmatprep.subr.mxu0 0.0
        %2088 = vmatpush1.msra.mxu0 0.0
        %2089 = vmatprep.subr.mxu0 0.0
        %2090 = vmatpush1.msra.mxu0 0.0
        %2091 = vmatprep.mubr.f32.mxu0 0.0
        %2092 = vmatmul.mubr.f32.gmra.mrb[0].mxu0 %v2022
        %v2093 = vpop.f32.mrb[0].mxu0
        %v2094 = vadd.f32 0.0, %v2093
        %v2095 = vpop.f32.mrb[0].mxu0
        %2096 = vmatprep.mubr.f32.mxu0 0.0
        %2097 = vmatmul.mubr.f32.gmra.mrb[0].mxu0 %v2025
        %v2098 = vpop.f32.mrb[0].mxu0
        %v2099 = vadd.f32 0.0, %v2098
        %v2100 = vpop.f32.mrb[0].mxu0
        %2101 = vdwg.mxu0
        %v2102 = vadd.f32 %v2012, %v2094
        %v2103 = vadd.f32 %v2013, %v2099
        %v2104 = vmax.f32 %v2102, 0.0
        %v2105 = vmax.f32 %v2103, 0.0
        %2106 = vst.msk [vmem:[#allocation2 + $0x3] sm:$0xff] %vm279, %v2104
        %2107 = vst.msk [vmem:[#allocation2 + $0x13] sm:$0xff] %vm279, %v2105
        %v2108 = vld [vmem:[#allocation2] sm:$0xff]
        %v2109 = vld [vmem:[#allocation2 + $0x10] sm:$0xff]
        %v2110 = vld [vmem:[%s4] sm:$0xff]
        %v2111 = vld [vmem:[%s4 + $0x8] sm:$0xff]
        %v2112 = vld [vmem:[%s4 + $0x10] sm:$0xff]
        %v2113 = vld [vmem:[%s4 + $0x18] sm:$0xff]
        %v2114 = vld [vmem:[#allocation2 + $0x1] sm:$0xff]
        %v2115 = vld [vmem:[#allocation2 + $0x11] sm:$0xff]
        %s2116 = scalar_lea.vmem %s4, 32
        %v2117 = vld [vmem:[%s2116] sm:$0xff]
        %v2118 = vld [vmem:[%s2116 + $0x8] sm:$0xff]
        %v2119 = vld [vmem:[%s2116 + $0x10] sm:$0xff]
        %v2120 = vld [vmem:[%s2116 + $0x18] sm:$0xff]
        %v2122 = vsel %vm279, %v2114, 0
        %v2125 = vsel %vm279, %v2115, 0
        %2127 = vmatprep.subr.mxu0 0.0
        %2128 = vmatpush1.msra.mxu0 %v2117
        %2129 = vmatprep.subr.mxu0 0.0
        %2130 = vmatpush1.msra.mxu0 %v2118
        %2131 = vmatprep.subr.mxu0 0.0
        %2132 = vmatpush1.msra.mxu0 %v2119
        %2133 = vmatprep.subr.mxu0 0.0
        %2134 = vmatpush1.msra.mxu0 %v2120
        %2135 = vmatprep.subr.mxu0 0.0
        %2136 = vmatpush1.msra.mxu0 0.0
        %2137 = vmatprep.subr.mxu0 0.0
        %2138 = vmatpush1.msra.mxu0 0.0
        %2139 = vmatprep.subr.mxu0 0.0
        %2140 = vmatpush1.msra.mxu0 0.0
        %2141 = vmatprep.subr.mxu0 0.0
        %2142 = vmatpush1.msra.mxu0 0.0
        %2143 = vmatprep.subr.mxu0 0.0
        %2144 = vmatpush1.msra.mxu0 0.0
        %2145 = vmatprep.subr.mxu0 0.0
        %2146 = vmatpush1.msra.mxu0 0.0
        %2147 = vmatprep.subr.mxu0 0.0
        %2148 = vmatpush1.msra.mxu0 0.0
        %2149 = vmatprep.subr.mxu0 0.0
        %2150 = vmatpush1.msra.mxu0 0.0
        %2151 = vmatprep.subr.mxu0 0.0
        %2152 = vmatpush1.msra.mxu0 0.0
        %2153 = vmatprep.subr.mxu0 0.0
        %2154 = vmatpush1.msra.mxu0 0.0
        %2155 = vmatprep.subr.mxu0 0.0
        %2156 = vmatpush1.msra.mxu0 0.0
        %2157 = vmatprep.subr.mxu0 0.0
        %2158 = vmatpush1.msra.mxu0 0.0
        %2159 = vmatprep.subr.mxu0 0.0
        %2160 = vmatpush1.msra.mxu0 0.0
        %2161 = vmatprep.subr.mxu0 0.0
        %2162 = vmatpush1.msra.mxu0 0.0
        %2163 = vmatprep.subr.mxu0 0.0
        %2164 = vmatpush1.msra.mxu0 0.0
        %2165 = vmatprep.subr.mxu0 0.0
        %2166 = vmatpush1.msra.mxu0 0.0
        %2167 = vmatprep.subr.mxu0 0.0
        %2168 = vmatpush1.msra.mxu0 0.0
        %2169 = vmatprep.subr.mxu0 0.0
        %2170 = vmatpush1.msra.mxu0 0.0
        %2171 = vmatprep.subr.mxu0 0.0
        %2172 = vmatpush1.msra.mxu0 0.0
        %2173 = vmatprep.subr.mxu0 0.0
        %2174 = vmatpush1.msra.mxu0 0.0
        %2175 = vmatprep.subr.mxu0 0.0
        %2176 = vmatpush1.msra.mxu0 0.0
        %2177 = vmatprep.subr.mxu0 0.0
        %2178 = vmatpush1.msra.mxu0 0.0
        %2179 = vmatprep.subr.mxu0 0.0
        %2180 = vmatpush1.msra.mxu0 0.0
        %2181 = vmatprep.subr.mxu0 0.0
        %2182 = vmatpush1.msra.mxu0 0.0
        %2183 = vmatprep.subr.mxu0 0.0
        %2184 = vmatpush1.msra.mxu0 0.0
        %2185 = vmatprep.subr.mxu0 0.0
        %2186 = vmatpush1.msra.mxu0 0.0
        %2187 = vmatprep.subr.mxu0 0.0
        %2188 = vmatpush1.msra.mxu0 0.0
        %2189 = vmatprep.subr.mxu0 0.0
        %2190 = vmatpush1.msra.mxu0 0.0
        %2191 = vmatprep.mubr.f32.mxu0 0.0
        %2192 = vmatmul.mubr.f32.gmra.mrb[0].mxu0 %v2122
        %v2193 = vpop.f32.mrb[0].mxu0
        %v2194 = vadd.f32 0.0, %v2193
        %v2195 = vpop.f32.mrb[0].mxu0
        %2196 = vmatprep.mubr.f32.mxu0 0.0
        %2197 = vmatmul.mubr.f32.gmra.mrb[0].mxu0 %v2125
        %v2198 = vpop.f32.mrb[0].mxu0
        %v2199 = vadd.f32 0.0, %v2198
        %v2200 = vpop.f32.mrb[0].mxu0
        %2201 = vdwg.mxu0
        %v2203 = vsel %vm279, %v2108, 0
        %v2206 = vsel %vm279, %v2109, 0
        %2208 = vmatprep.subr.mxu0 0.0
        %2209 = vmatpush1.msra.mxu0 %v2110
        %2210 = vmatprep.subr.mxu0 0.0
        %2211 = vmatpush1.msra.mxu0 %v2111
        %2212 = vmatprep.subr.mxu0 0.0
        %2213 = vmatpush1.msra.mxu0 %v2112
        %2214 = vmatprep.subr.mxu0 0.0
        %2215 = vmatpush1.msra.mxu0 %v2113
        %2216 = vmatprep.subr.mxu0 0.0
        %2217 = vmatpush1.msra.mxu0 0.0
        %2218 = vmatprep.subr.mxu0 0.0
        %2219 = vmatpush1.msra.mxu0 0.0
        %2220 = vmatprep.subr.mxu0 0.0
        %2221 = vmatpush1.msra.mxu0 0.0
        %2222 = vmatprep.subr.mxu0 0.0
        %2223 = vmatpush1.msra.mxu0 0.0
        %2224 = vmatprep.subr.mxu0 0.0
        %2225 = vmatpush1.msra.mxu0 0.0
        %2226 = vmatprep.subr.mxu0 0.0
        %2227 = vmatpush1.msra.mxu0 0.0
        %2228 = vmatprep.subr.mxu0 0.0
        %2229 = vmatpush1.msra.mxu0 0.0
        %2230 = vmatprep.subr.mxu0 0.0
        %2231 = vmatpush1.msra.mxu0 0.0
        %2232 = vmatprep.subr.mxu0 0.0
        %2233 = vmatpush1.msra.mxu0 0.0
        %2234 = vmatprep.subr.mxu0 0.0
        %2235 = vmatpush1.msra.mxu0 0.0
        %2236 = vmatprep.subr.mxu0 0.0
        %2237 = vmatpush1.msra.mxu0 0.0
        %2238 = vmatprep.subr.mxu0 0.0
        %2239 = vmatpush1.msra.mxu0 0.0
        %2240 = vmatprep.subr.mxu0 0.0
        %2241 = vmatpush1.msra.mxu0 0.0
        %2242 = vmatprep.subr.mxu0 0.0
        %2243 = vmatpush1.msra.mxu0 0.0
        %2244 = vmatprep.subr.mxu0 0.0
        %2245 = vmatpush1.msra.mxu0 0.0
        %2246 = vmatprep.subr.mxu0 0.0
        %2247 = vmatpush1.msra.mxu0 0.0
        %2248 = vmatprep.subr.mxu0 0.0
        %2249 = vmatpush1.msra.mxu0 0.0
        %2250 = vmatprep.subr.mxu0 0.0
        %2251 = vmatpush1.msra.mxu0 0.0
        %2252 = vmatprep.subr.mxu0 0.0
        %2253 = vmatpush1.msra.mxu0 0.0
        %2254 = vmatprep.subr.mxu0 0.0
        %2255 = vmatpush1.msra.mxu0 0.0
        %2256 = vmatprep.subr.mxu0 0.0
        %2257 = vmatpush1.msra.mxu0 0.0
        %2258 = vmatprep.subr.mxu0 0.0
        %2259 = vmatpush1.msra.mxu0 0.0
        %2260 = vmatprep.subr.mxu0 0.0
        %2261 = vmatpush1.msra.mxu0 0.0
        %2262 = vmatprep.subr.mxu0 0.0
        %2263 = vmatpush1.msra.mxu0 0.0
        %2264 = vmatprep.subr.mxu0 0.0
        %2265 = vmatpush1.msra.mxu0 0.0
        %2266 = vmatprep.subr.mxu0 0.0
        %2267 = vmatpush1.msra.mxu0 0.0
        %2268 = vmatprep.subr.mxu0 0.0
        %2269 = vmatpush1.msra.mxu0 0.0
        %2270 = vmatprep.subr.mxu0 0.0
        %2271 = vmatpush1.msra.mxu0 0.0
        %2272 = vmatprep.mubr.f32.mxu0 0.0
        %2273 = vmatmul.mubr.f32.gmra.mrb[0].mxu0 %v2203
        %v2274 = vpop.f32.mrb[0].mxu0
        %v2275 = vadd.f32 %v2194, %v2274
        %v2276 = vpop.f32.mrb[0].mxu0
        %2277 = vmatprep.mubr.f32.mxu0 0.0
        %2278 = vmatmul.mubr.f32.gmra.mrb[0].mxu0 %v2206
        %v2279 = vpop.f32.mrb[0].mxu0
        %v2280 = vadd.f32 %v2199, %v2279
        %v2281 = vpop.f32.mrb[0].mxu0
        %2282 = vdwg.mxu0
        %v2283 = vld [vmem:[#allocation2 + $0x2] sm:$0xff]
        %v2284 = vld [vmem:[#allocation2 + $0x12] sm:$0xff]
        %s2285 = scalar_lea.vmem %s4, 64
        %v2286 = vld [vmem:[%s2285] sm:$0xff]
        %v2287 = vld [vmem:[%s2285 + $0x8] sm:$0xff]
        %v2288 = vld [vmem:[%s2285 + $0x10] sm:$0xff]
        %v2289 = vld [vmem:[%s2285 + $0x18] sm:$0xff]
        %v2291 = vsel %vm279, %v2283, 0
        %v2294 = vsel %vm279, %v2284, 0
        %2296 = vmatprep.subr.mxu0 0.0
        %2297 = vmatpush1.msra.mxu0 %v2286
        %2298 = vmatprep.subr.mxu0 0.0
        %2299 = vmatpush1.msra.mxu0 %v2287
        %2300 = vmatprep.subr.mxu0 0.0
        %2301 = vmatpush1.msra.mxu0 %v2288
        %2302 = vmatprep.subr.mxu0 0.0
        %2303 = vmatpush1.msra.mxu0 %v2289
        %2304 = vmatprep.subr.mxu0 0.0
        %2305 = vmatpush1.msra.mxu0 0.0
        %2306 = vmatprep.subr.mxu0 0.0
        %2307 = vmatpush1.msra.mxu0 0.0
        %2308 = vmatprep.subr.mxu0 0.0
        %2309 = vmatpush1.msra.mxu0 0.0
        %2310 = vmatprep.subr.mxu0 0.0
        %2311 = vmatpush1.msra.mxu0 0.0
        %2312 = vmatprep.subr.mxu0 0.0
        %2313 = vmatpush1.msra.mxu0 0.0
        %2314 = vmatprep.subr.mxu0 0.0
        %2315 = vmatpush1.msra.mxu0 0.0
        %2316 = vmatprep.subr.mxu0 0.0
        %2317 = vmatpush1.msra.mxu0 0.0
        %2318 = vmatprep.subr.mxu0 0.0
        %2319 = vmatpush1.msra.mxu0 0.0
        %2320 = vmatprep.subr.mxu0 0.0
        %2321 = vmatpush1.msra.mxu0 0.0
        %2322 = vmatprep.subr.mxu0 0.0
        %2323 = vmatpush1.msra.mxu0 0.0
        %2324 = vmatprep.subr.mxu0 0.0
        %2325 = vmatpush1.msra.mxu0 0.0
        %2326 = vmatprep.subr.mxu0 0.0
        %2327 = vmatpush1.msra.mxu0 0.0
        %2328 = vmatprep.subr.mxu0 0.0
        %2329 = vmatpush1.msra.mxu0 0.0
        %2330 = vmatprep.subr.mxu0 0.0
        %2331 = vmatpush1.msra.mxu0 0.0
        %2332 = vmatprep.subr.mxu0 0.0
        %2333 = vmatpush1.msra.mxu0 0.0
        %2334 = vmatprep.subr.mxu0 0.0
        %2335 = vmatpush1.msra.mxu0 0.0
        %2336 = vmatprep.subr.mxu0 0.0
        %2337 = vmatpush1.msra.mxu0 0.0
        %2338 = vmatprep.subr.mxu0 0.0
        %2339 = vmatpush1.msra.mxu0 0.0
        %2340 = vmatprep.subr.mxu0 0.0
        %2341 = vmatpush1.msra.mxu0 0.0
        %2342 = vmatprep.subr.mxu0 0.0
        %2343 = vmatpush1.msra.mxu0 0.0
        %2344 = vmatprep.subr.mxu0 0.0
        %2345 = vmatpush1.msra.mxu0 0.0
        %2346 = vmatprep.subr.mxu0 0.0
        %2347 = vmatpush1.msra.mxu0 0.0
        %2348 = vmatprep.subr.mxu0 0.0
        %2349 = vmatpush1.msra.mxu0 0.0
        %2350 = vmatprep.subr.mxu0 0.0
        %2351 = vmatpush1.msra.mxu0 0.0
        %2352 = vmatprep.subr.mxu0 0.0
        %2353 = vmatpush1.msra.mxu0 0.0
        %2354 = vmatprep.subr.mxu0 0.0
        %2355 = vmatpush1.msra.mxu0 0.0
        %2356 = vmatprep.subr.mxu0 0.0
        %2357 = vmatpush1.msra.mxu0 0.0
        %2358 = vmatprep.subr.mxu0 0.0
        %2359 = vmatpush1.msra.mxu0 0.0
        %2360 = vmatprep.mubr.f32.mxu0 0.0
        %2361 = vmatmul.mubr.f32.gmra.mrb[0].mxu0 %v2291
        %v2362 = vpop.f32.mrb[0].mxu0
        %v2363 = vadd.f32 0.0, %v2362
        %v2364 = vpop.f32.mrb[0].mxu0
        %2365 = vmatprep.mubr.f32.mxu0 0.0
        %2366 = vmatmul.mubr.f32.gmra.mrb[0].mxu0 %v2294
        %v2367 = vpop.f32.mrb[0].mxu0
        %v2368 = vadd.f32 0.0, %v2367
        %v2369 = vpop.f32.mrb[0].mxu0
        %2370 = vdwg.mxu0
        %v2371 = vadd.f32 %v2275, %v2363
        %v2372 = vadd.f32 %v2280, %v2368
        %v2373 = vld [vmem:[#allocation2 + $0x3] sm:$0xff]
        %v2374 = vld [vmem:[#allocation2 + $0x13] sm:$0xff]
        %s2375 = scalar_lea.vmem %s4, 96
        %v2376 = vld [vmem:[%s2375] sm:$0xff]
        %v2377 = vld [vmem:[%s2375 + $0x8] sm:$0xff]
        %v2378 = vld [vmem:[%s2375 + $0x10] sm:$0xff]
        %v2379 = vld [vmem:[%s2375 + $0x18] sm:$0xff]
        %v2381 = vsel %vm279, %v2373, 0
        %v2384 = vsel %vm279, %v2374, 0
        %2386 = vmatprep.subr.mxu0 0.0
        %2387 = vmatpush1.msra.mxu0 %v2376
        %2388 = vmatprep.subr.mxu0 0.0
        %2389 = vmatpush1.msra.mxu0 %v2377
        %2390 = vmatprep.subr.mxu0 0.0
        %2391 = vmatpush1.msra.mxu0 %v2378
        %2392 = vmatprep.subr.mxu0 0.0
        %2393 = vmatpush1.msra.mxu0 %v2379
        %2394 = vmatprep.subr.mxu0 0.0
        %2395 = vmatpush1.msra.mxu0 0.0
        %2396 = vmatprep.subr.mxu0 0.0
        %2397 = vmatpush1.msra.mxu0 0.0
        %2398 = vmatprep.subr.mxu0 0.0
        %2399 = vmatpush1.msra.mxu0 0.0
        %2400 = vmatprep.subr.mxu0 0.0
        %2401 = vmatpush1.msra.mxu0 0.0
        %2402 = vmatprep.subr.mxu0 0.0
        %2403 = vmatpush1.msra.mxu0 0.0
        %2404 = vmatprep.subr.mxu0 0.0
        %2405 = vmatpush1.msra.mxu0 0.0
        %2406 = vmatprep.subr.mxu0 0.0
        %2407 = vmatpush1.msra.mxu0 0.0
        %2408 = vmatprep.subr.mxu0 0.0
        %2409 = vmatpush1.msra.mxu0 0.0
        %2410 = vmatprep.subr.mxu0 0.0
        %2411 = vmatpush1.msra.mxu0 0.0
        %2412 = vmatprep.subr.mxu0 0.0
        %2413 = vmatpush1.msra.mxu0 0.0
        %2414 = vmatprep.subr.mxu0 0.0
        %2415 = vmatpush1.msra.mxu0 0.0
        %2416 = vmatprep.subr.mxu0 0.0
        %2417 = vmatpush1.msra.mxu0 0.0
        %2418 = vmatprep.subr.mxu0 0.0
        %2419 = vmatpush1.msra.mxu0 0.0
        %2420 = vmatprep.subr.mxu0 0.0
        %2421 = vmatpush1.msra.mxu0 0.0
        %2422 = vmatprep.subr.mxu0 0.0
        %2423 = vmatpush1.msra.mxu0 0.0
        %2424 = vmatprep.subr.mxu0 0.0
        %2425 = vmatpush1.msra.mxu0 0.0
        %2426 = vmatprep.subr.mxu0 0.0
        %2427 = vmatpush1.msra.mxu0 0.0
        %2428 = vmatprep.subr.mxu0 0.0
        %2429 = vmatpush1.msra.mxu0 0.0
        %2430 = vmatprep.subr.mxu0 0.0
        %2431 = vmatpush1.msra.mxu0 0.0
        %2432 = vmatprep.subr.mxu0 0.0
        %2433 = vmatpush1.msra.mxu0 0.0
        %2434 = vmatprep.subr.mxu0 0.0
        %2435 = vmatpush1.msra.mxu0 0.0
        %2436 = vmatprep.subr.mxu0 0.0
        %2437 = vmatpush1.msra.mxu0 0.0
        %2438 = vmatprep.subr.mxu0 0.0
        %2439 = vmatpush1.msra.mxu0 0.0
        %2440 = vmatprep.subr.mxu0 0.0
        %2441 = vmatpush1.msra.mxu0 0.0
        %2442 = vmatprep.subr.mxu0 0.0
        %2443 = vmatpush1.msra.mxu0 0.0
        %2444 = vmatprep.subr.mxu0 0.0
        %2445 = vmatpush1.msra.mxu0 0.0
        %2446 = vmatprep.subr.mxu0 0.0
        %2447 = vmatpush1.msra.mxu0 0.0
        %2448 = vmatprep.subr.mxu0 0.0
        %2449 = vmatpush1.msra.mxu0 0.0
        %2450 = vmatprep.mubr.f32.mxu0 0.0
        %2451 = vmatmul.mubr.f32.gmra.mrb[0].mxu0 %v2381
        %v2452 = vpop.f32.mrb[0].mxu0
        %v2453 = vadd.f32 0.0, %v2452
        %v2454 = vpop.f32.mrb[0].mxu0
        %2455 = vmatprep.mubr.f32.mxu0 0.0
        %2456 = vmatmul.mubr.f32.gmra.mrb[0].mxu0 %v2384
        %v2457 = vpop.f32.mrb[0].mxu0
        %v2458 = vadd.f32 0.0, %v2457
        %v2459 = vpop.f32.mrb[0].mxu0
        %2460 = vdwg.mxu0
        %v2461 = vadd.f32 %v2371, %v2453
        %v2462 = vadd.f32 %v2372, %v2458
        %v2463 = vld [vmem:[#allocation2 + $0x4] sm:$0xff]
        %v2464 = vld [vmem:[#allocation2 + $0x14] sm:$0xff]
        %s2465 = scalar_lea.vmem %s4, 128
        %v2466 = vld [vmem:[%s2465] sm:$0xff]
        %v2467 = vld [vmem:[%s2465 + $0x8] sm:$0xff]
        %v2468 = vld [vmem:[%s2465 + $0x10] sm:$0xff]
        %v2469 = vld [vmem:[%s2465 + $0x18] sm:$0xff]
        %v2471 = vsel %vm279, %v2463, 0
        %v2474 = vsel %vm279, %v2464, 0
        %2476 = vmatprep.subr.mxu0 0.0
        %2477 = vmatpush1.msra.mxu0 %v2466
        %2478 = vmatprep.subr.mxu0 0.0
        %2479 = vmatpush1.msra.mxu0 %v2467
        %2480 = vmatprep.subr.mxu0 0.0
        %2481 = vmatpush1.msra.mxu0 %v2468
        %2482 = vmatprep.subr.mxu0 0.0
        %2483 = vmatpush1.msra.mxu0 %v2469
        %2484 = vmatprep.subr.mxu0 0.0
        %2485 = vmatpush1.msra.mxu0 0.0
        %2486 = vmatprep.subr.mxu0 0.0
        %2487 = vmatpush1.msra.mxu0 0.0
        %2488 = vmatprep.subr.mxu0 0.0
        %2489 = vmatpush1.msra.mxu0 0.0
        %2490 = vmatprep.subr.mxu0 0.0
        %2491 = vmatpush1.msra.mxu0 0.0
        %2492 = vmatprep.subr.mxu0 0.0
        %2493 = vmatpush1.msra.mxu0 0.0
        %2494 = vmatprep.subr.mxu0 0.0
        %2495 = vmatpush1.msra.mxu0 0.0
        %2496 = vmatprep.subr.mxu0 0.0
        %2497 = vmatpush1.msra.mxu0 0.0
        %2498 = vmatprep.subr.mxu0 0.0
        %2499 = vmatpush1.msra.mxu0 0.0
        %2500 = vmatprep.subr.mxu0 0.0
        %2501 = vmatpush1.msra.mxu0 0.0
        %2502 = vmatprep.subr.mxu0 0.0
        %2503 = vmatpush1.msra.mxu0 0.0
        %2504 = vmatprep.subr.mxu0 0.0
        %2505 = vmatpush1.msra.mxu0 0.0
        %2506 = vmatprep.subr.mxu0 0.0
        %2507 = vmatpush1.msra.mxu0 0.0
        %2508 = vmatprep.subr.mxu0 0.0
        %2509 = vmatpush1.msra.mxu0 0.0
        %2510 = vmatprep.subr.mxu0 0.0
        %2511 = vmatpush1.msra.mxu0 0.0
        %2512 = vmatprep.subr.mxu0 0.0
        %2513 = vmatpush1.msra.mxu0 0.0
        %2514 = vmatprep.subr.mxu0 0.0
        %2515 = vmatpush1.msra.mxu0 0.0
        %2516 = vmatprep.subr.mxu0 0.0
        %2517 = vmatpush1.msra.mxu0 0.0
        %2518 = vmatprep.subr.mxu0 0.0
        %2519 = vmatpush1.msra.mxu0 0.0
        %2520 = vmatprep.subr.mxu0 0.0
        %2521 = vmatpush1.msra.mxu0 0.0
        %2522 = vmatprep.subr.mxu0 0.0
        %2523 = vmatpush1.msra.mxu0 0.0
        %2524 = vmatprep.subr.mxu0 0.0
        %2525 = vmatpush1.msra.mxu0 0.0
        %2526 = vmatprep.subr.mxu0 0.0
        %2527 = vmatpush1.msra.mxu0 0.0
        %2528 = vmatprep.subr.mxu0 0.0
        %2529 = vmatpush1.msra.mxu0 0.0
        %2530 = vmatprep.subr.mxu0 0.0
        %2531 = vmatpush1.msra.mxu0 0.0
        %2532 = vmatprep.subr.mxu0 0.0
        %2533 = vmatpush1.msra.mxu0 0.0
        %2534 = vmatprep.subr.mxu0 0.0
        %2535 = vmatpush1.msra.mxu0 0.0
        %2536 = vmatprep.subr.mxu0 0.0
        %2537 = vmatpush1.msra.mxu0 0.0
        %2538 = vmatprep.subr.mxu0 0.0
        %2539 = vmatpush1.msra.mxu0 0.0
        %2540 = vmatprep.mubr.f32.mxu0 0.0
        %2541 = vmatmul.mubr.f32.gmra.mrb[0].mxu0 %v2471
        %v2542 = vpop.f32.mrb[0].mxu0
        %v2543 = vadd.f32 0.0, %v2542
        %v2544 = vpop.f32.mrb[0].mxu0
        %2545 = vmatprep.mubr.f32.mxu0 0.0
        %2546 = vmatmul.mubr.f32.gmra.mrb[0].mxu0 %v2474
        %v2547 = vpop.f32.mrb[0].mxu0
        %v2548 = vadd.f32 0.0, %v2547
        %v2549 = vpop.f32.mrb[0].mxu0
        %2550 = vdwg.mxu0
        %v2551 = vadd.f32 %v2461, %v2543
        %v2552 = vadd.f32 %v2462, %v2548
        %v2553 = vld [vmem:[#allocation2 + $0x5] sm:$0xff]
        %v2554 = vld [vmem:[#allocation2 + $0x15] sm:$0xff]
        %s2555 = scalar_lea.vmem %s4, 160
        %v2556 = vld [vmem:[%s2555] sm:$0xff]
        %v2557 = vld [vmem:[%s2555 + $0x8] sm:$0xff]
        %v2558 = vld [vmem:[%s2555 + $0x10] sm:$0xff]
        %v2559 = vld [vmem:[%s2555 + $0x18] sm:$0xff]
        %v2561 = vsel %vm279, %v2553, 0
        %v2564 = vsel %vm279, %v2554, 0
        %2566 = vmatprep.subr.mxu0 0.0
        %2567 = vmatpush1.msra.mxu0 %v2556
        %2568 = vmatprep.subr.mxu0 0.0
        %2569 = vmatpush1.msra.mxu0 %v2557
        %2570 = vmatprep.subr.mxu0 0.0
        %2571 = vmatpush1.msra.mxu0 %v2558
        %2572 = vmatprep.subr.mxu0 0.0
        %2573 = vmatpush1.msra.mxu0 %v2559
        %2574 = vmatprep.subr.mxu0 0.0
        %2575 = vmatpush1.msra.mxu0 0.0
        %2576 = vmatprep.subr.mxu0 0.0
        %2577 = vmatpush1.msra.mxu0 0.0
        %2578 = vmatprep.subr.mxu0 0.0
        %2579 = vmatpush1.msra.mxu0 0.0
        %2580 = vmatprep.subr.mxu0 0.0
        %2581 = vmatpush1.msra.mxu0 0.0
        %2582 = vmatprep.subr.mxu0 0.0
        %2583 = vmatpush1.msra.mxu0 0.0
        %2584 = vmatprep.subr.mxu0 0.0
        %2585 = vmatpush1.msra.mxu0 0.0
        %2586 = vmatprep.subr.mxu0 0.0
        %2587 = vmatpush1.msra.mxu0 0.0
        %2588 = vmatprep.subr.mxu0 0.0
        %2589 = vmatpush1.msra.mxu0 0.0
        %2590 = vmatprep.subr.mxu0 0.0
        %2591 = vmatpush1.msra.mxu0 0.0
        %2592 = vmatprep.subr.mxu0 0.0
        %2593 = vmatpush1.msra.mxu0 0.0
        %2594 = vmatprep.subr.mxu0 0.0
        %2595 = vmatpush1.msra.mxu0 0.0
        %2596 = vmatprep.subr.mxu0 0.0
        %2597 = vmatpush1.msra.mxu0 0.0
        %2598 = vmatprep.subr.mxu0 0.0
        %2599 = vmatpush1.msra.mxu0 0.0
        %2600 = vmatprep.subr.mxu0 0.0
        %2601 = vmatpush1.msra.mxu0 0.0
        %2602 = vmatprep.subr.mxu0 0.0
        %2603 = vmatpush1.msra.mxu0 0.0
        %2604 = vmatprep.subr.mxu0 0.0
        %2605 = vmatpush1.msra.mxu0 0.0
        %2606 = vmatprep.subr.mxu0 0.0
        %2607 = vmatpush1.msra.mxu0 0.0
        %2608 = vmatprep.subr.mxu0 0.0
        %2609 = vmatpush1.msra.mxu0 0.0
        %2610 = vmatprep.subr.mxu0 0.0
        %2611 = vmatpush1.msra.mxu0 0.0
        %2612 = vmatprep.subr.mxu0 0.0
        %2613 = vmatpush1.msra.mxu0 0.0
        %2614 = vmatprep.subr.mxu0 0.0
        %2615 = vmatpush1.msra.mxu0 0.0
        %2616 = vmatprep.subr.mxu0 0.0
        %2617 = vmatpush1.msra.mxu0 0.0
        %2618 = vmatprep.subr.mxu0 0.0
        %2619 = vmatpush1.msra.mxu0 0.0
        %2620 = vmatprep.subr.mxu0 0.0
        %2621 = vmatpush1.msra.mxu0 0.0
        %2622 = vmatprep.subr.mxu0 0.0
        %2623 = vmatpush1.msra.mxu0 0.0
        %2624 = vmatprep.subr.mxu0 0.0
        %2625 = vmatpush1.msra.mxu0 0.0
        %2626 = vmatprep.subr.mxu0 0.0
        %2627 = vmatpush1.msra.mxu0 0.0
        %2628 = vmatprep.subr.mxu0 0.0
        %2629 = vmatpush1.msra.mxu0 0.0
        %2630 = vmatprep.mubr.f32.mxu0 0.0
        %2631 = vmatmul.mubr.f32.gmra.mrb[0].mxu0 %v2561
        %v2632 = vpop.f32.mrb[0].mxu0
        %v2633 = vadd.f32 0.0, %v2632
        %v2634 = vpop.f32.mrb[0].mxu0
        %2635 = vmatprep.mubr.f32.mxu0 0.0
        %2636 = vmatmul.mubr.f32.gmra.mrb[0].mxu0 %v2564
        %v2637 = vpop.f32.mrb[0].mxu0
        %v2638 = vadd.f32 0.0, %v2637
        %v2639 = vpop.f32.mrb[0].mxu0
        %2640 = vdwg.mxu0
        %v2641 = vadd.f32 %v2551, %v2633
        %v2642 = vadd.f32 %v2552, %v2638
        %v2643 = vld [vmem:[#allocation2 + $0x6] sm:$0xff]
        %v2644 = vld [vmem:[#allocation2 + $0x16] sm:$0xff]
        %s2645 = scalar_lea.vmem %s4, 192
        %v2646 = vld [vmem:[%s2645] sm:$0xff]
        %v2647 = vld [vmem:[%s2645 + $0x8] sm:$0xff]
        %v2648 = vld [vmem:[%s2645 + $0x10] sm:$0xff]
        %v2649 = vld [vmem:[%s2645 + $0x18] sm:$0xff]
        %v2651 = vsel %vm279, %v2643, 0
        %v2654 = vsel %vm279, %v2644, 0
        %2656 = vmatprep.subr.mxu0 0.0
        %2657 = vmatpush1.msra.mxu0 %v2646
        %2658 = vmatprep.subr.mxu0 0.0
        %2659 = vmatpush1.msra.mxu0 %v2647
        %2660 = vmatprep.subr.mxu0 0.0
        %2661 = vmatpush1.msra.mxu0 %v2648
        %2662 = vmatprep.subr.mxu0 0.0
        %2663 = vmatpush1.msra.mxu0 %v2649
        %2664 = vmatprep.subr.mxu0 0.0
        %2665 = vmatpush1.msra.mxu0 0.0
        %2666 = vmatprep.subr.mxu0 0.0
        %2667 = vmatpush1.msra.mxu0 0.0
        %2668 = vmatprep.subr.mxu0 0.0
        %2669 = vmatpush1.msra.mxu0 0.0
        %2670 = vmatprep.subr.mxu0 0.0
        %2671 = vmatpush1.msra.mxu0 0.0
        %2672 = vmatprep.subr.mxu0 0.0
        %2673 = vmatpush1.msra.mxu0 0.0
        %2674 = vmatprep.subr.mxu0 0.0
        %2675 = vmatpush1.msra.mxu0 0.0
        %2676 = vmatprep.subr.mxu0 0.0
        %2677 = vmatpush1.msra.mxu0 0.0
        %2678 = vmatprep.subr.mxu0 0.0
        %2679 = vmatpush1.msra.mxu0 0.0
        %2680 = vmatprep.subr.mxu0 0.0
        %2681 = vmatpush1.msra.mxu0 0.0
        %2682 = vmatprep.subr.mxu0 0.0
        %2683 = vmatpush1.msra.mxu0 0.0
        %2684 = vmatprep.subr.mxu0 0.0
        %2685 = vmatpush1.msra.mxu0 0.0
        %2686 = vmatprep.subr.mxu0 0.0
        %2687 = vmatpush1.msra.mxu0 0.0
        %2688 = vmatprep.subr.mxu0 0.0
        %2689 = vmatpush1.msra.mxu0 0.0
        %2690 = vmatprep.subr.mxu0 0.0
        %2691 = vmatpush1.msra.mxu0 0.0
        %2692 = vmatprep.subr.mxu0 0.0
        %2693 = vmatpush1.msra.mxu0 0.0
        %2694 = vmatprep.subr.mxu0 0.0
        %2695 = vmatpush1.msra.mxu0 0.0
        %2696 = vmatprep.subr.mxu0 0.0
        %2697 = vmatpush1.msra.mxu0 0.0
        %2698 = vmatprep.subr.mxu0 0.0
        %2699 = vmatpush1.msra.mxu0 0.0
        %2700 = vmatprep.subr.mxu0 0.0
        %2701 = vmatpush1.msra.mxu0 0.0
        %2702 = vmatprep.subr.mxu0 0.0
        %2703 = vmatpush1.msra.mxu0 0.0
        %2704 = vmatprep.subr.mxu0 0.0
        %2705 = vmatpush1.msra.mxu0 0.0
        %2706 = vmatprep.subr.mxu0 0.0
        %2707 = vmatpush1.msra.mxu0 0.0
        %2708 = vmatprep.subr.mxu0 0.0
        %2709 = vmatpush1.msra.mxu0 0.0
        %2710 = vmatprep.subr.mxu0 0.0
        %2711 = vmatpush1.msra.mxu0 0.0
        %2712 = vmatprep.subr.mxu0 0.0
        %2713 = vmatpush1.msra.mxu0 0.0
        %2714 = vmatprep.subr.mxu0 0.0
        %2715 = vmatpush1.msra.mxu0 0.0
        %2716 = vmatprep.subr.mxu0 0.0
        %2717 = vmatpush1.msra.mxu0 0.0
        %2718 = vmatprep.subr.mxu0 0.0
        %2719 = vmatpush1.msra.mxu0 0.0
        %2720 = vmatprep.mubr.f32.mxu0 0.0
        %2721 = vmatmul.mubr.f32.gmra.mrb[0].mxu0 %v2651
        %v2722 = vpop.f32.mrb[0].mxu0
        %v2723 = vadd.f32 0.0, %v2722
        %v2724 = vpop.f32.mrb[0].mxu0
        %2725 = vmatprep.mubr.f32.mxu0 0.0
        %2726 = vmatmul.mubr.f32.gmra.mrb[0].mxu0 %v2654
        %v2727 = vpop.f32.mrb[0].mxu0
        %v2728 = vadd.f32 0.0, %v2727
        %v2729 = vpop.f32.mrb[0].mxu0
        %2730 = vdwg.mxu0
        %v2731 = vadd.f32 %v2641, %v2723
        %v2732 = vadd.f32 %v2642, %v2728
        %v2733 = vld [vmem:[#allocation2 + $0x7] sm:$0xff]
        %v2734 = vld [vmem:[#allocation2 + $0x17] sm:$0xff]
        %s2735 = scalar_lea.vmem %s4, 224
        %v2736 = vld [vmem:[%s2735] sm:$0xff]
        %v2737 = vld [vmem:[%s2735 + $0x8] sm:$0xff]
        %v2738 = vld [vmem:[%s2735 + $0x10] sm:$0xff]
        %v2739 = vld [vmem:[%s2735 + $0x18] sm:$0xff]
        %v2741 = vsel %vm279, %v2733, 0
        %v2744 = vsel %vm279, %v2734, 0
        %2746 = vmatprep.subr.mxu0 0.0
        %2747 = vmatpush1.msra.mxu0 %v2736
        %2748 = vmatprep.subr.mxu0 0.0
        %2749 = vmatpush1.msra.mxu0 %v2737
        %2750 = vmatprep.subr.mxu0 0.0
        %2751 = vmatpush1.msra.mxu0 %v2738
        %2752 = vmatprep.subr.mxu0 0.0
        %2753 = vmatpush1.msra.mxu0 %v2739
        %2754 = vmatprep.subr.mxu0 0.0
        %2755 = vmatpush1.msra.mxu0 0.0
        %2756 = vmatprep.subr.mxu0 0.0
        %2757 = vmatpush1.msra.mxu0 0.0
        %2758 = vmatprep.subr.mxu0 0.0
        %2759 = vmatpush1.msra.mxu0 0.0
        %2760 = vmatprep.subr.mxu0 0.0
        %2761 = vmatpush1.msra.mxu0 0.0
        %2762 = vmatprep.subr.mxu0 0.0
        %2763 = vmatpush1.msra.mxu0 0.0
        %2764 = vmatprep.subr.mxu0 0.0
        %2765 = vmatpush1.msra.mxu0 0.0
        %2766 = vmatprep.subr.mxu0 0.0
        %2767 = vmatpush1.msra.mxu0 0.0
        %2768 = vmatprep.subr.mxu0 0.0
        %2769 = vmatpush1.msra.mxu0 0.0
        %2770 = vmatprep.subr.mxu0 0.0
        %2771 = vmatpush1.msra.mxu0 0.0
        %2772 = vmatprep.subr.mxu0 0.0
        %2773 = vmatpush1.msra.mxu0 0.0
        %2774 = vmatprep.subr.mxu0 0.0
        %2775 = vmatpush1.msra.mxu0 0.0
        %2776 = vmatprep.subr.mxu0 0.0
        %2777 = vmatpush1.msra.mxu0 0.0
        %2778 = vmatprep.subr.mxu0 0.0
        %2779 = vmatpush1.msra.mxu0 0.0
        %2780 = vmatprep.subr.mxu0 0.0
        %2781 = vmatpush1.msra.mxu0 0.0
        %2782 = vmatprep.subr.mxu0 0.0
        %2783 = vmatpush1.msra.mxu0 0.0
        %2784 = vmatprep.subr.mxu0 0.0
        %2785 = vmatpush1.msra.mxu0 0.0
        %2786 = vmatprep.subr.mxu0 0.0
        %2787 = vmatpush1.msra.mxu0 0.0
        %2788 = vmatprep.subr.mxu0 0.0
        %2789 = vmatpush1.msra.mxu0 0.0
        %2790 = vmatprep.subr.mxu0 0.0
        %2791 = vmatpush1.msra.mxu0 0.0
        %2792 = vmatprep.subr.mxu0 0.0
        %2793 = vmatpush1.msra.mxu0 0.0
        %2794 = vmatprep.subr.mxu0 0.0
        %2795 = vmatpush1.msra.mxu0 0.0
        %2796 = vmatprep.subr.mxu0 0.0
        %2797 = vmatpush1.msra.mxu0 0.0
        %2798 = vmatprep.subr.mxu0 0.0
        %2799 = vmatpush1.msra.mxu0 0.0
        %2800 = vmatprep.subr.mxu0 0.0
        %2801 = vmatpush1.msra.mxu0 0.0
        %2802 = vmatprep.subr.mxu0 0.0
        %2803 = vmatpush1.msra.mxu0 0.0
        %2804 = vmatprep.subr.mxu0 0.0
        %2805 = vmatpush1.msra.mxu0 0.0
        %2806 = vmatprep.subr.mxu0 0.0
        %2807 = vmatpush1.msra.mxu0 0.0
        %2808 = vmatprep.subr.mxu0 0.0
        %2809 = vmatpush1.msra.mxu0 0.0
        %2810 = vmatprep.mubr.f32.mxu0 0.0
        %2811 = vmatmul.mubr.f32.gmra.mrb[0].mxu0 %v2741
        %v2812 = vpop.f32.mrb[0].mxu0
        %v2813 = vadd.f32 0.0, %v2812
        %v2814 = vpop.f32.mrb[0].mxu0
        %2815 = vmatprep.mubr.f32.mxu0 0.0
        %2816 = vmatmul.mubr.f32.gmra.mrb[0].mxu0 %v2744
        %v2817 = vpop.f32.mrb[0].mxu0
        %v2818 = vadd.f32 0.0, %v2817
        %v2819 = vpop.f32.mrb[0].mxu0
        %2820 = vdwg.mxu0
        %v2821 = vadd.f32 %v2731, %v2813
        %v2822 = vadd.f32 %v2732, %v2818
        %v2823 = vmax.f32 %v2821, 0.0
        %v2824 = vmax.f32 %v2822, 0.0
        %vm2825 = vcmask 257024
        %v2826 = vsel %vm2825, %v2823, -inf
        %v2827 = vrot.slane %v2826, 4
        %v2828 = vmax.f32 %v2826, %v2827
        %v2829 = vrot.slane %v2828, 2
        %v2830 = vmax.f32 %v2828, %v2829
        %v2831 = vrot.slane %v2830, 1
        %v2832 = vmax.f32 %v2830, %v2831
        %v2833 = vsel %vm2825, %v2824, -inf
        %v2834 = vrot.slane %v2833, 4
        %v2835 = vmax.f32 %v2833, %v2834
        %v2836 = vrot.slane %v2835, 2
        %v2837 = vmax.f32 %v2835, %v2836
        %v2838 = vrot.slane %v2837, 1
        %v2839 = vmax.f32 %v2837, %v2838
        %vm2840 = vcmask 261124
        %v2841 = vsel %vm2840, %v2823, -inf
        %v2842 = vrot.slane %v2841, 4
        %v2843 = vmax.f32 %v2841, %v2842
        %v2844 = vrot.slane %v2843, 2
        %v2845 = vmax.f32 %v2843, %v2844
        %v2846 = vrot.slane %v2845, 1
        %v2847 = vmax.f32 %v2845, %v2846
        %v2848 = vsel %vm2840, %v2824, -inf
        %v2849 = vrot.slane %v2848, 4
        %v2850 = vmax.f32 %v2848, %v2849
        %v2851 = vrot.slane %v2850, 2
        %v2852 = vmax.f32 %v2850, %v2851
        %v2853 = vrot.slane %v2852, 1
        %v2854 = vmax.f32 %v2852, %v2853
        %v2857 = vsel %vm645, %v2839, %v2832
        %v2861 = vsel %vm645, %v2854, %v2847
        %2862 = vrot.lane.b32.xlu0 %v2861, 32
        %v2863 = vpop.permute.xlu0 %2862
        %v2865 = vsel %vm279, %v2857, %v2863
        %v2866 = vld [vmem:[%s5] sm:$0xff]
        %v2867 = vld [vmem:[%s5 + $0x8] sm:$0xff]
        %v2868 = vld [vmem:[%s5 + $0x10] sm:$0xff]
        %v2869 = vld [vmem:[%s5 + $0x18] sm:$0xff]
        %v2870 = vld [vmem:[%s5 + $0x20] sm:$0xff]
        %v2871 = vld [vmem:[%s5 + $0x28] sm:$0xff]
        %v2872 = vld [vmem:[%s5 + $0x30] sm:$0xff]
        %v2873 = vld [vmem:[%s5 + $0x38] sm:$0xff]
        %v2874 = vld [vmem:[%s6] sm:$0x1]
        %v2876 = vlaneseq
        %v2877 = vshrl.u32 %v2876, 7
        %v2878 = vsub.s32 0, %v2877
        %v2879 = vrot.slane %v2874, %v2878
        %vm2881 = vcmask 523264
        %v2883 = vsel %vm2881, %v2865, 0
        %2885 = vmatprep.subr.mxu0 0.0
        %2886 = vmatpush1.msra.mxu0 %v2866
        %2887 = vmatprep.subr.mxu0 0.0
        %2888 = vmatpush1.msra.mxu0 %v2867
        %2889 = vmatprep.subr.mxu0 0.0
        %2890 = vmatpush1.msra.mxu0 %v2868
        %2891 = vmatprep.subr.mxu0 0.0
        %2892 = vmatpush1.msra.mxu0 %v2869
        %2893 = vmatprep.subr.mxu0 0.0
        %2894 = vmatpush1.msra.mxu0 %v2870
        %2895 = vmatprep.subr.mxu0 0.0
        %2896 = vmatpush1.msra.mxu0 %v2871
        %2897 = vmatprep.subr.mxu0 0.0
        %2898 = vmatpush1.msra.mxu0 %v2872
        %2899 = vmatprep.subr.mxu0 0.0
        %2900 = vmatpush1.msra.mxu0 %v2873
        %2901 = vmatprep.subr.mxu0 0.0
        %2902 = vmatpush1.msra.mxu0 0.0
        %2903 = vmatprep.subr.mxu0 0.0
        %2904 = vmatpush1.msra.mxu0 0.0
        %2905 = vmatprep.subr.mxu0 0.0
        %2906 = vmatpush1.msra.mxu0 0.0
        %2907 = vmatprep.subr.mxu0 0.0
        %2908 = vmatpush1.msra.mxu0 0.0
        %2909 = vmatprep.subr.mxu0 0.0
        %2910 = vmatpush1.msra.mxu0 0.0
        %2911 = vmatprep.subr.mxu0 0.0
        %2912 = vmatpush1.msra.mxu0 0.0
        %2913 = vmatprep.subr.mxu0 0.0
        %2914 = vmatpush1.msra.mxu0 0.0
        %2915 = vmatprep.subr.mxu0 0.0
        %2916 = vmatpush1.msra.mxu0 0.0
        %2917 = vmatprep.subr.mxu0 0.0
        %2918 = vmatpush1.msra.mxu0 0.0
        %2919 = vmatprep.subr.mxu0 0.0
        %2920 = vmatpush1.msra.mxu0 0.0
        %2921 = vmatprep.subr.mxu0 0.0
        %2922 = vmatpush1.msra.mxu0 0.0
        %2923 = vmatprep.subr.mxu0 0.0
        %2924 = vmatpush1.msra.mxu0 0.0
        %2925 = vmatprep.subr.mxu0 0.0
        %2926 = vmatpush1.msra.mxu0 0.0
        %2927 = vmatprep.subr.mxu0 0.0
        %2928 = vmatpush1.msra.mxu0 0.0
        %2929 = vmatprep.subr.mxu0 0.0
        %2930 = vmatpush1.msra.mxu0 0.0
        %2931 = vmatprep.subr.mxu0 0.0
        %2932 = vmatpush1.msra.mxu0 0.0
        %2933 = vmatprep.subr.mxu0 0.0
        %2934 = vmatpush1.msra.mxu0 0.0
        %2935 = vmatprep.subr.mxu0 0.0
        %2936 = vmatpush1.msra.mxu0 0.0
        %2937 = vmatprep.subr.mxu0 0.0
        %2938 = vmatpush1.msra.mxu0 0.0
        %2939 = vmatprep.subr.mxu0 0.0
        %2940 = vmatpush1.msra.mxu0 0.0
        %2941 = vmatprep.subr.mxu0 0.0
        %2942 = vmatpush1.msra.mxu0 0.0
        %2943 = vmatprep.subr.mxu0 0.0
        %2944 = vmatpush1.msra.mxu0 0.0
        %2945 = vmatprep.subr.mxu0 0.0
        %2946 = vmatpush1.msra.mxu0 0.0
        %2947 = vmatprep.subr.mxu0 0.0
        %2948 = vmatpush1.msra.mxu0 0.0
        %2949 = vmatprep.mubr.f32.mxu0 0.0
        %2950 = vmatmul.mubr.f32.gmra.mrb[0].mxu0 %v2883
        %v2951 = vpop.f32.mrb[0].mxu0
        %v2952 = vadd.f32 %v2879, %v2951
        %v2953 = vpop.f32.mrb[0].mxu0
        %2954 = vdwg.mxu0
        %2955 = vst [vmem:[%s272] sm:$0x3] %v2952
        %s2956 = sand.u32 %s181, 1
        %s2957 = scalar_lea.sflag [#allocation4], %s2956
        %s2958 = sand.u32 %s181, 1
        %s2959 = smul.addr %s2958, 2
        %s2960 = scalar_lea.vmem [#allocation3], %s2959
        // Predicated region
        $region49: #{_lambda_.1} parent=47 // pred_check
          %p2961 = pneg %p191
        $region50: #{_lambda_.1} parent=47 // pred_check_branch
          %2963 = sbr.rel (%p2961) target = $region52
        $region51: #{_lambda_.1} parent=47 // pred_region
          %s2965 = ssub.s32 32, 32
          %2966 = vsyncadd %s2957, %s2965
          %s2967 = smul.addr %s21, 32
          %s2968 = scalar_lea.hbm %s7, %s2967
          %s2970 = sshll.u32 %s2960, 4
          %s2971 = int_to_ptr.vmem [resolvable:$true] %s2970
          %2973 = dma.vmem_to_hbm [thread:$0]  %s2971, 32, %s2968, %s2957
        $region52: #{_lambda_.1} parent=47 // pred_fallthru
          _
      $region48: #{_lambda_.1} parent=5 // pred_fallthru
        _
      %p2974 = scmp.le.s32.totalorder 2, %s16
      // Predicated region
      $region53: #{_lambda_.1} parent=5 // pred_check
        %p2975 = pneg %p2974
      $region54: #{_lambda_.1} parent=5 // pred_check_branch
        %2977 = sbr.rel (%p2975) target = $region56
      $region55: #{_lambda_.1} parent=5 // pred_region
        %s2978 = ssub.s32 %s16, 2
        // Predicated region
        $region57: #{_lambda_.1} parent=55 // pred_check
          %p2979 = pneg %p197
        $region58: #{_lambda_.1} parent=55 // pred_check_branch
          %2981 = sbr.rel (%p2979) target = $region60
        $region59: #{_lambda_.1} parent=55 // pred_region
          %s2982 = sand.u32 %s182, 1
          %s2983 = scalar_lea.sflag [#allocation4], %s2982
          %s2984 = sand.u32 %s182, 1
          %s2985 = smul.addr %s2984, 2
          %s2986 = scalar_lea.vmem [#allocation3], %s2985
          %2987 = dma.done %s2983, 32
        $region60: #{_lambda_.1} parent=55 // pred_fallthru
          _
      $region56: #{_lambda_.1} parent=5 // pred_fallthru
        _
    $region6: #{_lambda_.1} parent=1 // loop_footer
      %s20 = sadd.s32 1, %s16
    $region7: #{_lambda_.1} parent=1 // loop_footer_branch
      %15 = sbr.rel target = $region3
    $region8: #{_lambda_.1} parent=1 // loop_exit
      _
    %2988 = vsyncpa [#allocation4], 1
    %s2989 = scalar_lea.sflag [#allocation4], 1
    %2990 = vsyncpa %s2989, 1

</llo_original>
